<compile_context>
chip_gen: v6e
topology: v6e:2x2x1
jax: 0.10.0
libtpu: 0.0.40
codegen_flags: <defaults>
</compile_context>

<pallas_src>
import functools

import jax
import jax.numpy as jnp
from jax import lax
from jax.experimental import pallas as pl
from jax.experimental.pallas import tpu as pltpu

LN_EPS = 1e-5                 # torch.nn.LayerNorm default
_APPROX_RECIPROCAL = True     # EUP approx reciprocal in softmax; set False for exact 1/x


# ----------------------------------------------------------------------------
# small helpers
# ----------------------------------------------------------------------------
def _row_tile(m, target=512):
    """Row tile: whole array when small (block == full dim is always layout-legal),
    otherwise a 512-row tile; grids use pl.cdiv so the last block may be ragged."""
    return m if m <= target else target


def _vmem_limit(nbytes):
    """Per-kernel scoped-VMEM budget: ~2x working set (double buffering) + headroom,
    clamped to [16 MiB, 64 MiB] so it is safe on v5e/v6e (128 MiB) and v7x (64 MiB)."""
    return int(min(max(2 * int(nbytes) + (4 << 20), 16 << 20), 64 << 20))


def _params(work_bytes):
    return pltpu.CompilerParams(dimension_semantics=("parallel",),
                                vmem_limit_bytes=_vmem_limit(work_bytes))


def _recip(x):
    return pl.reciprocal(x, approx=True) if _APPROX_RECIPROCAL else 1.0 / x


def _layernorm(z, g, b):
    mu = jnp.mean(z, axis=-1, keepdims=True)
    var = jnp.mean((z - mu) ** 2, axis=-1, keepdims=True)
    return (z - mu) * lax.rsqrt(var + LN_EPS) * g + b


# ----------------------------------------------------------------------------
# Kernel bodies
# ----------------------------------------------------------------------------
def _matmul_kernel(x_ref, w_ref, o_ref):
    # bias-free projection (qkv / r nets are bias-free in the torch module)
    o_ref[...] = jnp.dot(x_ref[...], w_ref[...],
                         preferred_element_type=jnp.float32).astype(o_ref.dtype)


def _rel_shift_masks(seq):
    """Binary decomposition of the per-row left-shift amounts (seq - i)."""
    row = lax.broadcasted_iota(jnp.int32, (seq, 1), 0)
    amount = seq - row                                 # shift in [1, seq]
    shifts, masks = [], []
    s = 1
    while s <= seq:
        shifts.append(s)
        masks.append((amount & s) != 0)
        s *= 2
    return shifts, masks


def _rel_shift(bd, shifts, masks):
    """Exact torch _rel_shift (including the no-mask wrap rows) as a vectorized skew.

    Row i of the result equals the flat (qlen, rlen+1)-padded buffer read at offset
    i*rlen + qlen, i.e. the tail of row i followed by a zero and the head of row i+1.
    We build [pad_row_i | pad_row_{i+1}] once and apply a per-row left shift of
    (seq - i) in log2(seq) stages of static-slice shifts + masked selects.
    No per-row slices, no VMEM scratch, no full-buffer zeroing."""
    seq = bd.shape[0]
    pad = jnp.concatenate([jnp.zeros((seq, 1), jnp.float32), bd], axis=1)     # (S, S+1)
    nxt = jnp.concatenate([pad[1:], jnp.zeros((1, seq + 1), jnp.float32)], axis=0)
    buf = jnp.concatenate([pad, nxt], axis=1)                                 # (S, 2S+2)
    for s, m in zip(shifts, masks):
        shifted = jnp.concatenate([buf[:, s:], jnp.zeros((seq, s), jnp.float32)],
                                  axis=1)
        buf = jnp.where(m, shifted, buf)
    return buf[:, :seq]


def _rel_attn_kernel(w_ref, rk_ref, rwb_ref, rrk_ref, o_ref, *,
                     n_head, d_head, scale):
    # One batch element; heads are streamed so only one head's f32 scores are live.
    seq = w_ref.shape[1]
    hd = n_head * d_head
    w = w_ref[0]                                        # (seq, 3*H*Dh) bf16
    # single bf16 copy of q with the 1/sqrt(d_head) scale folded in (f32 mul, bf16 cast)
    q_all = (w[:, :hd].astype(jnp.float32) * scale).astype(jnp.bfloat16)
    k_all = w[:, hd:2 * hd]
    v_all = w[:, 2 * hd:3 * hd]
    rk_all = rk_ref[...]                                # (rlen, H*Dh) bf16
    rwb = rwb_ref[...]                                  # (H, Dh) bf16, pre-scaled
    rrk = rrk_ref[...]                                  # (H, rlen) f32, pre-scaled

    shifts, masks = _rel_shift_masks(seq)               # hoisted out of the head loop
    nt = (((1,), (1,)), ((), ()))                       # contract d_head of both sides

    outs = []
    for h in range(n_head):
        cols = slice(h * d_head, (h + 1) * d_head)
        q, k, v, r = q_all[:, cols], k_all[:, cols], v_all[:, cols], rk_all[:, cols]

        # AC = scale*(q.k^T) + scale*(r_w_bias.k^T)   (rank-1 bias as a tiny matmul)
        ac = lax.dot_general(q, k, nt, preferred_element_type=jnp.float32)
        ac = ac + lax.dot_general(rwb[h:h + 1, :], k, nt,
                                  preferred_element_type=jnp.float32)
        # BD = scale*(q.r^T) + scale*(r_bias.r^T)     (2nd term precomputed outside)
        bd = lax.dot_general(q, r, nt, preferred_element_type=jnp.float32)
        bd = bd + rrk[h:h + 1, :]

        s = ac + _rel_shift(bd, shifts, masks)          # already scaled
        s = s - jnp.max(s, axis=-1, keepdims=True)
        p = jnp.exp(s)
        p = p * _recip(jnp.sum(p, axis=-1, keepdims=True))
        outs.append(jnp.dot(p.astype(jnp.bfloat16), v,
                            preferred_element_type=jnp.float32))

    # lane-dense (seq, H*Dh) output -> one dense store, no external head transpose
    o_ref[0] = jnp.concatenate(outs, axis=-1).astype(o_ref.dtype)


def _epilogue_kernel(a_ref, res_ref, ow_ref, ag_ref, ab_ref,
                     w11_ref, b11_ref, w12_ref, b12_ref, g1_ref, be1_ref,
                     w21_ref, b21_ref, w22_ref, b22_ref, g2_ref, be2_ref, o_ref):
    # o-projection + residual + LayerNorm (attention epilogue)
    x = _layernorm(res_ref[...] + jnp.dot(a_ref[...], ow_ref[...],
                                          preferred_element_type=jnp.float32),
                   ag_ref[...], ab_ref[...])
    # PositionwiseFF #1 (inner RelPartialLearnableEncoderLayer), post-lnorm
    h = jnp.maximum(jnp.dot(x.astype(jnp.bfloat16), w11_ref[...],
                            preferred_element_type=jnp.float32) + b11_ref[...], 0.0)
    x = _layernorm(x + jnp.dot(h.astype(jnp.bfloat16), w12_ref[...],
                               preferred_element_type=jnp.float32) + b12_ref[...],
                   g1_ref[...], be1_ref[...])
    # PositionwiseFF #2 (outer RelLearnableEncoderLayer), post-lnorm
    h = jnp.maximum(jnp.dot(x.astype(jnp.bfloat16), w21_ref[...],
                            preferred_element_type=jnp.float32) + b21_ref[...], 0.0)
    x = _layernorm(x + jnp.dot(h.astype(jnp.bfloat16), w22_ref[...],
                               preferred_element_type=jnp.float32) + b22_ref[...],
                   g2_ref[...], be2_ref[...])
    o_ref[...] = x.astype(o_ref.dtype)


# ----------------------------------------------------------------------------
# Pallas wrappers
# ----------------------------------------------------------------------------
def matmul_rows(x, w, out_dtype=jnp.bfloat16):
    m, k = x.shape
    n = w.shape[1]
    tm = _row_tile(m)
    work = k * n * 2 + tm * (k + n) * 2
    return pl.pallas_call(
        _matmul_kernel,
        grid=(pl.cdiv(m, tm),),
        in_specs=[pl.BlockSpec((tm, k), lambda i: (i, 0)),
                  pl.BlockSpec((k, n), lambda i: (0, 0))],
        out_specs=pl.BlockSpec((tm, n), lambda i: (i, 0)),
        out_shape=jax.ShapeDtypeStruct((m, n), out_dtype),
        compiler_params=_params(work),
    )(x, w)


def fused_rel_attention(w_heads, r_head_k, rwb_scaled, rrk_scaled, *,
                        n_head, d_head, scale):
    bsz, qlen, _ = w_heads.shape
    rlen, hd = r_head_k.shape
    # AC + rel_shift(BD) arithmetic requires matching key/relative lengths (mems=None).
    assert qlen == rlen, "fused rel-attention assumes klen == rlen (mems=None)"
    kern = functools.partial(_rel_attn_kernel, n_head=n_head, d_head=d_head, scale=scale)
    work = (qlen * 3 * hd * 2 + rlen * hd * 2 + qlen * hd * 2     # bf16 blocks
            + n_head * (d_head + rlen) * 4                        # bias inputs
            + 10 * qlen * (2 * rlen + 2) * 4)                     # per-head f32 temps
    return pl.pallas_call(
        kern,
        grid=(bsz,),
        in_specs=[pl.BlockSpec((1, qlen, 3 * hd), lambda b: (b, 0, 0)),
                  pl.BlockSpec((rlen, hd), lambda b: (0, 0)),
                  pl.BlockSpec((n_head, d_head), lambda b: (0, 0)),
                  pl.BlockSpec((n_head, rlen), lambda b: (0, 0))],
        out_specs=pl.BlockSpec((1, qlen, hd), lambda b: (b, 0, 0)),
        out_shape=jax.ShapeDtypeStruct((bsz, qlen, hd), jnp.bfloat16),
        compiler_params=_params(work),
    )(w_heads, r_head_k, rwb_scaled, rrk_scaled)


def attn_epilogue_and_ffs(attn_vec, resid, prep):
    m, hd = attn_vec.shape
    d = resid.shape[1]
    di = prep["ff1_w1T"].shape[1]
    tm = _row_tile(m)
    row = lambda i: (i, 0)
    full = lambda i: (0, 0)
    weights = (prep["o_wT"], prep["attn_ln_g"], prep["attn_ln_b"],
               prep["ff1_w1T"], prep["ff1_b1"], prep["ff1_w2T"], prep["ff1_b2"],
               prep["ff1_ln_g"], prep["ff1_ln_b"],
               prep["ff2_w1T"], prep["ff2_b1"], prep["ff2_w2T"], prep["ff2_b2"],
               prep["ff2_ln_g"], prep["ff2_ln_b"])
    w_specs = [pl.BlockSpec(w.shape, full) for w in weights]
    work = (sum(int(w.size) * w.dtype.itemsize for w in weights)
            + tm * (hd * 2 + 2 * d * 4 + 2 * di * 4))
    return pl.pallas_call(
        _epilogue_kernel,
        grid=(pl.cdiv(m, tm),),
        in_specs=[pl.BlockSpec((tm, hd), row), pl.BlockSpec((tm, d), row)] + w_specs,
        out_specs=pl.BlockSpec((tm, d), row),
        out_shape=jax.ShapeDtypeStruct((m, d), jnp.float32),
        compiler_params=_params(work),
    )(attn_vec, resid, *weights)


# ----------------------------------------------------------------------------
# One-time parameter preparation (transpose + bf16 cast done once, not per forward)
# ----------------------------------------------------------------------------
def prepare_params(p):
    bf = lambda a: a.astype(jnp.bfloat16)
    row = lambda a: a.reshape(1, -1).astype(jnp.float32)
    return {
        "qkv_wT": bf(p["qkv_w"].T),        # (d_model, 3*H*Dh)
        "r_wT": bf(p["r_w"].T),            # (d_model, H*Dh)
        "o_wT": bf(p["o_w"].T),            # (H*Dh, d_model)
        "attn_ln_g": row(p["attn_ln_g"]), "attn_ln_b": row(p["attn_ln_b"]),
        "ff1_w1T": bf(p["ff1_w1"].T), "ff1_b1": row(p["ff1_b1"]),
        "ff1_w2T": bf(p["ff1_w2"].T), "ff1_b2": row(p["ff1_b2"]),
        "ff1_ln_g": row(p["ff1_ln_g"]), "ff1_ln_b": row(p["ff1_ln_b"]),
        "ff2_w1T": bf(p["ff2_w1"].T), "ff2_b1": row(p["ff2_b1"]),
        "ff2_w2T": bf(p["ff2_w2"].T), "ff2_b2": row(p["ff2_b2"]),
        "ff2_ln_g": row(p["ff2_ln_g"]), "ff2_ln_b": row(p["ff2_ln_b"]),
    }


# ----------------------------------------------------------------------------
# Full layer forward (Pallas path)
# ----------------------------------------------------------------------------
def rel_learnable_encoder_layer(prep, dec_inp, r_emb, r_w_bias, r_bias):
    qlen, bsz, d_model = dec_inp.shape
    rlen = r_emb.shape[0]
    n_head, d_head = r_w_bias.shape
    hd = n_head * d_head
    scale = 1.0 / (d_head ** 0.5)

    # batch-major activations: one small relayout here; everything downstream is
    # lane-dense (rows, features) with no per-tensor head transposes.
    x_bmaj = jnp.transpose(dec_inp, (1, 0, 2))                      # (b, q, d) f32
    rows = x_bmaj.reshape(bsz * qlen, d_model)

    # projections (bias-free), bf16 MXU operands / f32 accumulation
    w_heads = matmul_rows(rows.astype(jnp.bfloat16), prep["qkv_wT"])    # (b*q, 3*H*Dh)
    r_head_k = matmul_rows(r_emb.astype(jnp.bfloat16), prep["r_wT"])    # (rlen, H*Dh)

    # rank-1 bias terms (Transformer-XL identity): r_bias . r_k^T is batch-independent
    # -> computed once here in f32; r_w_bias . k^T is batch-dependent -> tiny in-kernel dot.
    rwb_scaled = (r_w_bias.astype(jnp.float32) * scale).astype(jnp.bfloat16)
    rk_f32 = r_head_k.astype(jnp.float32).reshape(rlen, n_head, d_head)
    rrk_scaled = scale * jnp.einsum("hd,rhd->hr", r_bias.astype(jnp.float32), rk_f32)

    # fused: AC + BD (+ rank-1 biases) + rel_shift + softmax + P.V, heads streamed
    attn = fused_rel_attention(w_heads.reshape(bsz, qlen, 3 * hd), r_head_k,
                               rwb_scaled, rrk_scaled,
                               n_head=n_head, d_head=d_head, scale=scale)  # (b, q, H*Dh)

    # fused: o-projection + residual + LN + PositionwiseFF (x2, both post-lnorm)
    out = attn_epilogue_and_ffs(attn.reshape(bsz * qlen, hd), rows, prep)  # (b*q, d)
    return jnp.transpose(out.reshape(bsz, qlen, d_model), (1, 0, 2))


# ----------------------------------------------------------------------------
# Pure-JAX f32 reference (mirror of the PyTorch code) for the self-check
# ----------------------------------------------------------------------------
def _ref_rel_shift(x):  # x: (i, j, b, n)
    i, j, b, n = x.shape
    zp = jnp.zeros((i, 1, b, n), x.dtype)
    xp = jnp.concatenate([zp, x], axis=1).reshape(j + 1, i, b, n)
    return xp[1:].reshape(i, j, b, n)


def _ref_ln(x, g, b):
    mu = x.mean(-1, keepdims=True)
    var = ((x - mu) ** 2).mean(-1, keepdims=True)
    return (x - mu) / jnp.sqrt(var + LN_EPS) * g + b


def reference_forward(p, w, r, r_w_bias, r_bias):
    qlen, bsz, d_model = w.shape
    rlen = r.shape[0]
    H, Dh = r_w_bias.shape
    scale = 1.0 / (Dh ** 0.5)

    w_heads = jnp.einsum("qbd,ed->qbe", w, p["qkv_w"])
    r_head_k = jnp.einsum("rd,ed->re", r, p["r_w"])
    w_head_q, w_head_k, w_head_v = jnp.split(w_heads, 3, axis=-1)
    w_head_q = w_head_q.reshape(qlen, bsz, H, Dh)
    w_head_k = w_head_k.reshape(qlen, bsz, H, Dh)
    w_head_v = w_head_v.reshape(qlen, bsz, H, Dh)
    r_head_k = r_head_k.reshape(rlen, H, Dh)

    AC = jnp.einsum("ibnd,jbnd->ijbn", w_head_q + r_w_bias, w_head_k)
    BD = jnp.einsum("ibnd,jnd->ijbn", w_head_q + r_bias, r_head_k)
    BD = _ref_rel_shift(BD)
    score = (AC + BD) * scale
    prob = jax.nn.softmax(score, axis=1)
    attn_vec = jnp.einsum("ijbn,jbnd->ibnd", prob, w_head_v)
    attn_vec = attn_vec.reshape(qlen, bsz, H * Dh)
    attn_out = attn_vec @ p["o_w"].T
    x = _ref_ln(w + attn_out, p["attn_ln_g"], p["attn_ln_b"])

    def ff(x, w1, b1, w2, b2, g, be):
        core = jnp.maximum(x @ w1.T + b1, 0.0) @ w2.T + b2
        return _ref_ln(x + core, g, be)

    x = ff(x, p["ff1_w1"], p["ff1_b1"], p["ff1_w2"], p["ff1_b2"],
           p["ff1_ln_g"], p["ff1_ln_b"])
    x = ff(x, p["ff2_w1"], p["ff2_b1"], p["ff2_w2"], p["ff2_b2"],
           p["ff2_ln_g"], p["ff2_ln_b"])
    return x


# ----------------------------------------------------------------------------
# Deterministic parameter construction + demo
# ----------------------------------------------------------------------------
def init_params(key, n_head, d_model, d_head, d_inner):
    ks = jax.random.split(key, 12)
    std = 0.05
    p = {
        "qkv_w": jax.random.normal(ks[0], (3 * n_head * d_head, d_model)) * std,
        "r_w": jax.random.normal(ks[1], (n_head * d_head, d_model)) * std,
        "o_w": jax.random.normal(ks[2], (d_model, n_head * d_head)) * std,
        "attn_ln_g": jnp.ones((d_model,), jnp.float32),
        "attn_ln_b": jnp.zeros((d_model,), jnp.float32),
        "ff1_w1": jax.random.normal(ks[3], (d_inner, d_model)) * std,
        "ff1_b1": jax.random.normal(ks[4], (d_inner,)) * std,
        "ff1_w2": jax.random.normal(ks[5], (d_model, d_inner)) * std,
        "ff1_b2": jax.random.normal(ks[6], (d_model,)) * std,
        "ff1_ln_g": jnp.ones((d_model,), jnp.float32),
        "ff1_ln_b": jnp.zeros((d_model,), jnp.float32),
        "ff2_w1": jax.random.normal(ks[7], (d_inner, d_model)) * std,
        "ff2_b1": jax.random.normal(ks[8], (d_inner,)) * std,
        "ff2_w2": jax.random.normal(ks[9], (d_model, d_inner)) * std,
        "ff2_b2": jax.random.normal(ks[10], (d_model,)) * std,
        "ff2_ln_g": jnp.ones((d_model,), jnp.float32),
        "ff2_ln_b": jnp.zeros((d_model,), jnp.float32),
    }
    return jax.tree_util.tree_map(lambda a: a.astype(jnp.float32), p)


if __name__ == "__main__":
    n_head, d_model, d_head, d_inner = 4, 32, 8, 64
    qlen, bsz = 8, 2
    rlen = qlen  # no mems -> klen == qlen == rlen

    key = jax.random.PRNGKey(0)
    kp, k1, k2, k3, k4 = jax.random.split(key, 5)
    params = init_params(kp, n_head, d_model, d_head, d_inner)
    prep = prepare_params(params)          # one-time transpose + bf16 cast of weights

    dec_inp = jax.random.normal(k1, (qlen, bsz, d_model), jnp.float32)
    r_emb = jax.random.normal(k2, (rlen, d_model), jnp.float32)
    r_w_bias = jax.random.normal(k3, (n_head, d_head), jnp.float32) * 0.1
    r_bias = jax.random.normal(k4, (n_head, d_head), jnp.float32) * 0.1

    fwd = jax.jit(rel_learnable_encoder_layer)
    out = jax.block_until_ready(fwd(prep, dec_inp, r_emb, r_w_bias, r_bias))

    ref = jax.block_until_ready(
        reference_forward(params, dec_inp, r_emb, r_w_bias, r_bias))

    max_err = float(jnp.max(jnp.abs(out - ref)))
    assert out.shape == (qlen, bsz, d_model)
    # bf16-aware tolerance: MXU operands are bf16 (f32 accumulation), elementwise f32;
    # approx reciprocal in softmax adds a small relative error on probability rows.
    assert max_err < 3e-2, f"mismatch vs f32 reference: {max_err}"
    print("KERNEL_OK")
</pallas_src>

<mosaic_0001>
module attributes {stable_mosaic.version = 11 : i64} {
  func.func @_matmul_kernel(%arg0: i32, %arg1: memref<8x32xbf16, #tpu.memory_space<vmem>>, %arg2: memref<32x32xbf16, #tpu.memory_space<vmem>>, %arg3: memref<8x32xbf16, #tpu.memory_space<vmem>>) attributes {dimension_semantics = [#tpu.dimension_semantics<parallel>], iteration_bounds = array<i64: 1>, scalar_prefetch = 0 : i64, scratch_operands = 0 : i64, tpu.core_type = #tpu.core_type<tc>, window_params = [{transform_indices = @transform_0, window_bounds = array<i64: 8, 32>}, {pipeline_mode = #tpu.pipeline_mode<synchronous>, transform_indices = @transform_1, window_bounds = array<i64: 32, 32>}, {transform_indices = @transform_2, window_bounds = array<i64: 8, 32>}]} {
    %c0 = arith.constant 0 : index
    %c0_0 = arith.constant 0 : index
    %0 = vector.load %arg1[%c0, %c0_0] : memref<8x32xbf16, #tpu.memory_space<vmem>>, vector<8x32xbf16>
    %c0_1 = arith.constant 0 : index
    %c0_2 = arith.constant 0 : index
    %1 = vector.load %arg2[%c0_1, %c0_2] : memref<32x32xbf16, #tpu.memory_space<vmem>>, vector<32x32xbf16>
    %cst = arith.constant dense<0.000000e+00> : vector<8x32xf32>
    %2 = tpu.matmul %0, %1, %cst {dimension_numbers = #tpu.dot_dimension_numbers<[1], [0], [0], [1], [0, 0, 1, 1], [], []>} : vector<8x32xbf16>, vector<32x32xbf16>, vector<8x32xf32> -> vector<8x32xf32>
    %3 = arith.truncf %2 : vector<8x32xf32> to vector<8x32xbf16>
    %c0_3 = arith.constant 0 : index
    %c0_4 = arith.constant 0 : index
    %4 = vector.load %arg3[%c0_3, %c0_4] : memref<8x32xbf16, #tpu.memory_space<vmem>>, vector<8x32xbf16>
    tpu.vector_store %arg3[%c0_3, %c0_4], %3 {strides = array<i32>} : memref<8x32xbf16, #tpu.memory_space<vmem>>, vector<8x32xbf16>,
    return
  }
  func.func @transform_0(%arg0: i32) -> (i32, i32) {
    %c0_i32 = arith.constant 0 : i32
    %c0_i32_0 = arith.constant 0 : i32
    return %arg0, %c0_i32 : i32, i32
  }
  func.func @transform_1(%arg0: i32) -> (i32, i32) {
    %c0_i32 = arith.constant 0 : i32
    %c0_i32_0 = arith.constant 0 : i32
    %c0_i32_1 = arith.constant 0 : i32
    return %c0_i32, %c0_i32_0 : i32, i32
  }
  func.func @transform_2(%arg0: i32) -> (i32, i32) {
    %c0_i32 = arith.constant 0 : i32
    %c0_i32_0 = arith.constant 0 : i32
    return %arg0, %c0_i32 : i32, i32
  }
}

module attributes {stable_mosaic.version = 11 : i64} {
  func.func @_matmul_kernel(%arg0: i32, %arg1: memref<16x32xbf16, #tpu.memory_space<vmem>>, %arg2: memref<32x96xbf16, #tpu.memory_space<vmem>>, %arg3: memref<16x96xbf16, #tpu.memory_space<vmem>>) attributes {dimension_semantics = [#tpu.dimension_semantics<parallel>], iteration_bounds = array<i64: 1>, scalar_prefetch = 0 : i64, scratch_operands = 0 : i64, tpu.core_type = #tpu.core_type<tc>, window_params = [{transform_indices = @transform_0, window_bounds = array<i64: 16, 32>}, {pipeline_mode = #tpu.pipeline_mode<synchronous>, transform_indices = @transform_1, window_bounds = array<i64: 32, 96>}, {transform_indices = @transform_2, window_bounds = array<i64: 16, 96>}]} {
    %c0 = arith.constant 0 : index
    %c0_0 = arith.constant 0 : index
    %0 = vector.load %arg1[%c0, %c0_0] : memref<16x32xbf16, #tpu.memory_space<vmem>>, vector<16x32xbf16>
    %c0_1 = arith.constant 0 : index
    %c0_2 = arith.constant 0 : index
    %1 = vector.load %arg2[%c0_1, %c0_2] : memref<32x96xbf16, #tpu.memory_space<vmem>>, vector<32x96xbf16>
    %cst = arith.constant dense<0.000000e+00> : vector<16x96xf32>
    %2 = tpu.matmul %0, %1, %cst {dimension_numbers = #tpu.dot_dimension_numbers<[1], [0], [0], [1], [0, 0, 1, 1], [], []>} : vector<16x32xbf16>, vector<32x96xbf16>, vector<16x96xf32> -> vector<16x96xf32>
    %3 = arith.truncf %2 : vector<16x96xf32> to vector<16x96xbf16>
    %c0_3 = arith.constant 0 : index
    %c0_4 = arith.constant 0 : index
    %4 = vector.load %arg3[%c0_3, %c0_4] : memref<16x96xbf16, #tpu.memory_space<vmem>>, vector<16x96xbf16>
    tpu.vector_store %arg3[%c0_3, %c0_4], %3 {strides = array<i32>} : memref<16x96xbf16, #tpu.memory_space<vmem>>, vector<16x96xbf16>,
    return
  }
  func.func @transform_0(%arg0: i32) -> (i32, i32) {
    %c0_i32 = arith.constant 0 : i32
    %c0_i32_0 = arith.constant 0 : i32
    return %arg0, %c0_i32 : i32, i32
  }
  func.func @transform_1(%arg0: i32) -> (i32, i32) {
    %c0_i32 = arith.constant 0 : i32
    %c0_i32_0 = arith.constant 0 : i32
    %c0_i32_1 = arith.constant 0 : i32
    return %c0_i32, %c0_i32_0 : i32, i32
  }
  func.func @transform_2(%arg0: i32) -> (i32, i32) {
    %c0_i32 = arith.constant 0 : i32
    %c0_i32_0 = arith.constant 0 : i32
    return %arg0, %c0_i32 : i32, i32
  }
}

module attributes {stable_mosaic.version = 11 : i64} {
  func.func @_epilogue_kernel(%arg0: i32, %arg1: memref<16x32xbf16, #tpu.memory_space<vmem>>, %arg2: memref<16x32xf32, #tpu.memory_space<vmem>>, %arg3: memref<32x32xbf16, #tpu.memory_space<vmem>>, %arg4: memref<1x32xf32, #tpu.memory_space<vmem>>, %arg5: memref<1x32xf32, #tpu.memory_space<vmem>>, %arg6: memref<32x64xbf16, #tpu.memory_space<vmem>>, %arg7: memref<1x64xf32, #tpu.memory_space<vmem>>, %arg8: memref<64x32xbf16, #tpu.memory_space<vmem>>, %arg9: memref<1x32xf32, #tpu.memory_space<vmem>>, %arg10: memref<1x32xf32, #tpu.memory_space<vmem>>, %arg11: memref<1x32xf32, #tpu.memory_space<vmem>>, %arg12: memref<32x64xbf16, #tpu.memory_space<vmem>>, %arg13: memref<1x64xf32, #tpu.memory_space<vmem>>, %arg14: memref<64x32xbf16, #tpu.memory_space<vmem>>, %arg15: memref<1x32xf32, #tpu.memory_space<vmem>>, %arg16: memref<1x32xf32, #tpu.memory_space<vmem>>, %arg17: memref<1x32xf32, #tpu.memory_space<vmem>>, %arg18: memref<16x32xf32, #tpu.memory_space<vmem>>) attributes {dimension_semantics = [#tpu.dimension_semantics<parallel>], iteration_bounds = array<i64: 1>, scalar_prefetch = 0 : i64, scratch_operands = 0 : i64, tpu.core_type = #tpu.core_type<tc>, window_params = [{transform_indices = @transform_0, window_bounds = array<i64: 16, 32>}, {transform_indices = @transform_1, window_bounds = array<i64: 16, 32>}, {pipeline_mode = #tpu.pipeline_mode<synchronous>, transform_indices = @transform_2, window_bounds = array<i64: 32, 32>}, {pipeline_mode = #tpu.pipeline_mode<synchronous>, transform_indices = @transform_3, window_bounds = array<i64: 1, 32>}, {pipeline_mode = #tpu.pipeline_mode<synchronous>, transform_indices = @transform_4, window_bounds = array<i64: 1, 32>}, {pipeline_mode = #tpu.pipeline_mode<synchronous>, transform_indices = @transform_5, window_bounds = array<i64: 32, 64>}, {pipeline_mode = #tpu.pipeline_mode<synchronous>, transform_indices = @transform_6, window_bounds = array<i64: 1, 64>}, {pipeline_mode = #tpu.pipeline_mode<synchronous>, transform_indices = @transform_7, window_bounds = array<i64: 64, 32>}, {pipeline_mode = #tpu.pipeline_mode<synchronous>, transform_indices = @transform_8, window_bounds = array<i64: 1, 32>}, {pipeline_mode = #tpu.pipeline_mode<synchronous>, transform_indices = @transform_9, window_bounds = array<i64: 1, 32>}, {pipeline_mode = #tpu.pipeline_mode<synchronous>, transform_indices = @transform_10, window_bounds = array<i64: 1, 32>}, {pipeline_mode = #tpu.pipeline_mode<synchronous>, transform_indices = @transform_11, window_bounds = array<i64: 32, 64>}, {pipeline_mode = #tpu.pipeline_mode<synchronous>, transform_indices = @transform_12, window_bounds = array<i64: 1, 64>}, {pipeline_mode = #tpu.pipeline_mode<synchronous>, transform_indices = @transform_13, window_bounds = array<i64: 64, 32>}, {pipeline_mode = #tpu.pipeline_mode<synchronous>, transform_indices = @transform_14, window_bounds = array<i64: 1, 32>}, {pipeline_mode = #tpu.pipeline_mode<synchronous>, transform_indices = @transform_15, window_bounds = array<i64: 1, 32>}, {pipeline_mode = #tpu.pipeline_mode<synchronous>, transform_indices = @transform_16, window_bounds = array<i64: 1, 32>}, {transform_indices = @transform_17, window_bounds = array<i64: 16, 32>}]} {
    %c0 = arith.constant 0 : index
    %c0_0 = arith.constant 0 : index
    %0 = vector.load %arg2[%c0, %c0_0] : memref<16x32xf32, #tpu.memory_space<vmem>>, vector<16x32xf32>
    %c0_1 = arith.constant 0 : index
    %c0_2 = arith.constant 0 : index
    %1 = vector.load %arg1[%c0_1, %c0_2] : memref<16x32xbf16, #tpu.memory_space<vmem>>, vector<16x32xbf16>
    %c0_3 = arith.constant 0 : index
    %c0_4 = arith.constant 0 : index
    %2 = vector.load %arg3[%c0_3, %c0_4] : memref<32x32xbf16, #tpu.memory_space<vmem>>, vector<32x32xbf16>
    %cst = arith.constant dense<0.000000e+00> : vector<16x32xf32>
    %3 = tpu.matmul %1, %2, %cst {dimension_numbers = #tpu.dot_dimension_numbers<[1], [0], [0], [1], [0, 0, 1, 1], [], []>} : vector<16x32xbf16>, vector<32x32xbf16>, vector<16x32xf32> -> vector<16x32xf32>
    %4 = arith.addf %0, %3 : vector<16x32xf32>
    %c0_5 = arith.constant 0 : index
    %c0_6 = arith.constant 0 : index
    %5 = vector.load %arg4[%c0_5, %c0_6] : memref<1x32xf32, #tpu.memory_space<vmem>>, vector<1x32xf32>
    %c0_7 = arith.constant 0 : index
    %c0_8 = arith.constant 0 : index
    %6 = vector.load %arg5[%c0_7, %c0_8] : memref<1x32xf32, #tpu.memory_space<vmem>>, vector<1x32xf32>
    %cst_9 = arith.constant dense<0.000000e+00> : vector<16xf32>
    %7 = vector.multi_reduction <add>, %4, %cst_9 [1] : vector<16x32xf32> to vector<16xf32>
    %8 = vector.shape_cast %7 : vector<16xf32> to vector<16x1xf32>
    %cst_10 = arith.constant 3.200000e+01 : f32
    %9 = vector.broadcast %cst_10 : f32 to vector<16x1xf32>
    %10 = arith.divf %8, %9 : vector<16x1xf32>
    %11 = vector.broadcast %10 : vector<16x1xf32> to vector<16x32xf32>
    %12 = arith.subf %4, %11 : vector<16x32xf32>
    %13 = arith.mulf %12, %12 : vector<16x32xf32>
    %cst_11 = arith.constant dense<0.000000e+00> : vector<16xf32>
    %14 = vector.multi_reduction <add>, %13, %cst_11 [1] : vector<16x32xf32> to vector<16xf32>
    %15 = vector.shape_cast %14 : vector<16xf32> to vector<16x1xf32>
    %cst_12 = arith.constant 3.200000e+01 : f32
    %16 = vector.broadcast %cst_12 : f32 to vector<16x1xf32>
    %17 = arith.divf %15, %16 : vector<16x1xf32>
    %18 = vector.broadcast %10 : vector<16x1xf32> to vector<16x32xf32>
    %19 = arith.subf %4, %18 : vector<16x32xf32>
    %cst_13 = arith.constant 9.99999974E-6 : f32
    %20 = vector.broadcast %cst_13 : f32 to vector<16x1xf32>
    %21 = arith.addf %17, %20 : vector<16x1xf32>
    %22 = math.rsqrt %21 : vector<16x1xf32>
    %23 = vector.broadcast %22 : vector<16x1xf32> to vector<16x32xf32>
    %24 = arith.mulf %19, %23 : vector<16x32xf32>
    %25 = vector.broadcast %5 : vector<1x32xf32> to vector<16x32xf32>
    %26 = arith.mulf %24, %25 : vector<16x32xf32>
    %27 = vector.broadcast %6 : vector<1x32xf32> to vector<16x32xf32>
    %28 = arith.addf %26, %27 : vector<16x32xf32>
    %29 = arith.truncf %28 : vector<16x32xf32> to vector<16x32xbf16>
    %c0_14 = arith.constant 0 : index
    %c0_15 = arith.constant 0 : index
    %30 = vector.load %arg6[%c0_14, %c0_15] : memref<32x64xbf16, #tpu.memory_space<vmem>>, vector<32x64xbf16>
    %cst_16 = arith.constant dense<0.000000e+00> : vector<16x64xf32>
    %31 = tpu.matmul %29, %30, %cst_16 {dimension_numbers = #tpu.dot_dimension_numbers<[1], [0], [0], [1], [0, 0, 1, 1], [], []>} : vector<16x32xbf16>, vector<32x64xbf16>, vector<16x64xf32> -> vector<16x64xf32>
    %c0_17 = arith.constant 0 : index
    %c0_18 = arith.constant 0 : index
    %32 = vector.load %arg7[%c0_17, %c0_18] : memref<1x64xf32, #tpu.memory_space<vmem>>, vector<1x64xf32>
    %33 = vector.broadcast %32 : vector<1x64xf32> to vector<16x64xf32>
    %34 = arith.addf %31, %33 : vector<16x64xf32>
    %cst_19 = arith.constant 0.000000e+00 : f32
    %35 = vector.broadcast %cst_19 : f32 to vector<16x64xf32>
    %36 = arith.maximumf %34, %35 : vector<16x64xf32>
    %37 = arith.truncf %36 : vector<16x64xf32> to vector<16x64xbf16>
    %c0_20 = arith.constant 0 : index
    %c0_21 = arith.constant 0 : index
    %38 = vector.load %arg8[%c0_20, %c0_21] : memref<64x32xbf16, #tpu.memory_space<vmem>>, vector<64x32xbf16>
    %cst_22 = arith.constant dense<0.000000e+00> : vector<16x32xf32>
    %39 = tpu.matmul %37, %38, %cst_22 {dimension_numbers = #tpu.dot_dimension_numbers<[1], [0], [0], [1], [0, 0, 1, 1], [], []>} : vector<16x64xbf16>, vector<64x32xbf16>, vector<16x32xf32> -> vector<16x32xf32>
    %40 = arith.addf %28, %39 : vector<16x32xf32>
    %c0_23 = arith.constant 0 : index
    %c0_24 = arith.constant 0 : index
    %41 = vector.load %arg9[%c0_23, %c0_24] : memref<1x32xf32, #tpu.memory_space<vmem>>, vector<1x32xf32>
    %42 = vector.broadcast %41 : vector<1x32xf32> to vector<16x32xf32>
    %43 = arith.addf %40, %42 : vector<16x32xf32>
    %c0_25 = arith.constant 0 : index
    %c0_26 = arith.constant 0 : index
    %44 = vector.load %arg10[%c0_25, %c0_26] : memref<1x32xf32, #tpu.memory_space<vmem>>, vector<1x32xf32>
    %c0_27 = arith.constant 0 : index
    %c0_28 = arith.constant 0 : index
    %45 = vector.load %arg11[%c0_27, %c0_28] : memref<1x32xf32, #tpu.memory_space<vmem>>, vector<1x32xf32>
    %cst_29 = arith.constant dense<0.000000e+00> : vector<16xf32>
    %46 = vector.multi_reduction <add>, %43, %cst_29 [1] : vector<16x32xf32> to vector<16xf32>
    %47 = vector.shape_cast %46 : vector<16xf32> to vector<16x1xf32>
    %cst_30 = arith.constant 3.200000e+01 : f32
    %48 = vector.broadcast %cst_30 : f32 to vector<16x1xf32>
    %49 = arith.divf %47, %48 : vector<16x1xf32>
    %50 = vector.broadcast %49 : vector<16x1xf32> to vector<16x32xf32>
    %51 = arith.subf %43, %50 : vector<16x32xf32>
    %52 = arith.mulf %51, %51 : vector<16x32xf32>
    %cst_31 = arith.constant dense<0.000000e+00> : vector<16xf32>
    %53 = vector.multi_reduction <add>, %52, %cst_31 [1] : vector<16x32xf32> to vector<16xf32>
    %54 = vector.shape_cast %53 : vector<16xf32> to vector<16x1xf32>
    %cst_32 = arith.constant 3.200000e+01 : f32
    %55 = vector.broadcast %cst_32 : f32 to vector<16x1xf32>
    %56 = arith.divf %54, %55 : vector<16x1xf32>
    %57 = vector.broadcast %49 : vector<16x1xf32> to vector<16x32xf32>
    %58 = arith.subf %43, %57 : vector<16x32xf32>
    %cst_33 = arith.constant 9.99999974E-6 : f32
    %59 = vector.broadcast %cst_33 : f32 to vector<16x1xf32>
    %60 = arith.addf %56, %59 : vector<16x1xf32>
    %61 = math.rsqrt %60 : vector<16x1xf32>
    %62 = vector.broadcast %61 : vector<16x1xf32> to vector<16x32xf32>
    %63 = arith.mulf %58, %62 : vector<16x32xf32>
    %64 = vector.broadcast %44 : vector<1x32xf32> to vector<16x32xf32>
    %65 = arith.mulf %63, %64 : vector<16x32xf32>
    %66 = vector.broadcast %45 : vector<1x32xf32> to vector<16x32xf32>
    %67 = arith.addf %65, %66 : vector<16x32xf32>
    %68 = arith.truncf %67 : vector<16x32xf32> to vector<16x32xbf16>
    %c0_34 = arith.constant 0 : index
    %c0_35 = arith.constant 0 : index
    %69 = vector.load %arg12[%c0_34, %c0_35] : memref<32x64xbf16, #tpu.memory_space<vmem>>, vector<32x64xbf16>
    %cst_36 = arith.constant dense<0.000000e+00> : vector<16x64xf32>
    %70 = tpu.matmul %68, %69, %cst_36 {dimension_numbers = #tpu.dot_dimension_numbers<[1], [0], [0], [1], [0, 0, 1, 1], [], []>} : vector<16x32xbf16>, vector<32x64xbf16>, vector<16x64xf32> -> vector<16x64xf32>
    %c0_37 = arith.constant 0 : index
    %c0_38 = arith.constant 0 : index
    %71 = vector.load %arg13[%c0_37, %c0_38] : memref<1x64xf32, #tpu.memory_space<vmem>>, vector<1x64xf32>
    %72 = vector.broadcast %71 : vector<1x64xf32> to vector<16x64xf32>
    %73 = arith.addf %70, %72 : vector<16x64xf32>
    %cst_39 = arith.constant 0.000000e+00 : f32
    %74 = vector.broadcast %cst_39 : f32 to vector<16x64xf32>
    %75 = arith.maximumf %73, %74 : vector<16x64xf32>
    %76 = arith.truncf %75 : vector<16x64xf32> to vector<16x64xbf16>
    %c0_40 = arith.constant 0 : index
    %c0_41 = arith.constant 0 : index
    %77 = vector.load %arg14[%c0_40, %c0_41] : memref<64x32xbf16, #tpu.memory_space<vmem>>, vector<64x32xbf16>
    %cst_42 = arith.constant dense<0.000000e+00> : vector<16x32xf32>
    %78 = tpu.matmul %76, %77, %cst_42 {dimension_numbers = #tpu.dot_dimension_numbers<[1], [0], [0], [1], [0, 0, 1, 1], [], []>} : vector<16x64xbf16>, vector<64x32xbf16>, vector<16x32xf32> -> vector<16x32xf32>
    %79 = arith.addf %67, %78 : vector<16x32xf32>
    %c0_43 = arith.constant 0 : index
    %c0_44 = arith.constant 0 : index
    %80 = vector.load %arg15[%c0_43, %c0_44] : memref<1x32xf32, #tpu.memory_space<vmem>>, vector<1x32xf32>
    %81 = vector.broadcast %80 : vector<1x32xf32> to vector<16x32xf32>
    %82 = arith.addf %79, %81 : vector<16x32xf32>
    %c0_45 = arith.constant 0 : index
    %c0_46 = arith.constant 0 : index
    %83 = vector.load %arg16[%c0_45, %c0_46] : memref<1x32xf32, #tpu.memory_space<vmem>>, vector<1x32xf32>
    %c0_47 = arith.constant 0 : index
    %c0_48 = arith.constant 0 : index
    %84 = vector.load %arg17[%c0_47, %c0_48] : memref<1x32xf32, #tpu.memory_space<vmem>>, vector<1x32xf32>
    %cst_49 = arith.constant dense<0.000000e+00> : vector<16xf32>
    %85 = vector.multi_reduction <add>, %82, %cst_49 [1] : vector<16x32xf32> to vector<16xf32>
    %86 = vector.shape_cast %85 : vector<16xf32> to vector<16x1xf32>
    %cst_50 = arith.constant 3.200000e+01 : f32
    %87 = vector.broadcast %cst_50 : f32 to vector<16x1xf32>
    %88 = arith.divf %86, %87 : vector<16x1xf32>
    %89 = vector.broadcast %88 : vector<16x1xf32> to vector<16x32xf32>
    %90 = arith.subf %82, %89 : vector<16x32xf32>
    %91 = arith.mulf %90, %90 : vector<16x32xf32>
    %cst_51 = arith.constant dense<0.000000e+00> : vector<16xf32>
    %92 = vector.multi_reduction <add>, %91, %cst_51 [1] : vector<16x32xf32> to vector<16xf32>
    %93 = vector.shape_cast %92 : vector<16xf32> to vector<16x1xf32>
    %cst_52 = arith.constant 3.200000e+01 : f32
    %94 = vector.broadcast %cst_52 : f32 to vector<16x1xf32>
    %95 = arith.divf %93, %94 : vector<16x1xf32>
    %96 = vector.broadcast %88 : vector<16x1xf32> to vector<16x32xf32>
    %97 = arith.subf %82, %96 : vector<16x32xf32>
    %cst_53 = arith.constant 9.99999974E-6 : f32
    %98 = vector.broadcast %cst_53 : f32 to vector<16x1xf32>
    %99 = arith.addf %95, %98 : vector<16x1xf32>
    %100 = math.rsqrt %99 : vector<16x1xf32>
    %101 = vector.broadcast %100 : vector<16x1xf32> to vector<16x32xf32>
    %102 = arith.mulf %97, %101 : vector<16x32xf32>
    %103 = vector.broadcast %83 : vector<1x32xf32> to vector<16x32xf32>
    %104 = arith.mulf %102, %103 : vector<16x32xf32>
    %105 = vector.broadcast %84 : vector<1x32xf32> to vector<16x32xf32>
    %106 = arith.addf %104, %105 : vector<16x32xf32>
    %c0_54 = arith.constant 0 : index
    %c0_55 = arith.constant 0 : index
    %107 = vector.load %arg18[%c0_54, %c0_55] : memref<16x32xf32, #tpu.memory_space<vmem>>, vector<16x32xf32>
    tpu.vector_store %arg18[%c0_54, %c0_55], %106 {strides = array<i32>} : memref<16x32xf32, #tpu.memory_space<vmem>>, vector<16x32xf32>,
    return
  }
  func.func @transform_0(%arg0: i32) -> (i32, i32) {
    %c0_i32 = arith.constant 0 : i32
    %c0_i32_0 = arith.constant 0 : i32
    return %arg0, %c0_i32 : i32, i32
  }
  func.func @transform_1(%arg0: i32) -> (i32, i32) {
    %c0_i32 = arith.constant 0 : i32
    %c0_i32_0 = arith.constant 0 : i32
    return %arg0, %c0_i32 : i32, i32
  }
  func.func @transform_2(%arg0: i32) -> (i32, i32) {
    %c0_i32 = arith.constant 0 : i32
    %c0_i32_0 = arith.constant 0 : i32
    %c0_i32_1 = arith.constant 0 : i32
    return %c0_i32, %c0_i32_0 : i32, i32
  }
  func.func @transform_3(%arg0: i32) -> (i32, i32) {
    %c0_i32 = arith.constant 0 : i32
    %c0_i32_0 = arith.constant 0 : i32
    %c0_i32_1 = arith.constant 0 : i32
    return %c0_i32, %c0_i32_0 : i32, i32
  }
  func.func @transform_4(%arg0: i32) -> (i32, i32) {
    %c0_i32 = arith.constant 0 : i32
    %c0_i32_0 = arith.constant 0 : i32
    %c0_i32_1 = arith.constant 0 : i32
    return %c0_i32, %c0_i32_0 : i32, i32
  }
  func.func @transform_5(%arg0: i32) -> (i32, i32) {
    %c0_i32 = arith.constant 0 : i32
    %c0_i32_0 = arith.constant 0 : i32
    %c0_i32_1 = arith.constant 0 : i32
    return %c0_i32, %c0_i32_0 : i32, i32
  }
  func.func @transform_6(%arg0: i32) -> (i32, i32) {
    %c0_i32 = arith.constant 0 : i32
    %c0_i32_0 = arith.constant 0 : i32
    %c0_i32_1 = arith.constant 0 : i32
    return %c0_i32, %c0_i32_0 : i32, i32
  }
  func.func @transform_7(%arg0: i32) -> (i32, i32) {
    %c0_i32 = arith.constant 0 : i32
    %c0_i32_0 = arith.constant 0 : i32
    %c0_i32_1 = arith.constant 0 : i32
    return %c0_i32, %c0_i32_0 : i32, i32
  }
  func.func @transform_8(%arg0: i32) -> (i32, i32) {
    %c0_i32 = arith.constant 0 : i32
    %c0_i32_0 = arith.constant 0 : i32
    %c0_i32_1 = arith.constant 0 : i32
    return %c0_i32, %c0_i32_0 : i32, i32
  }
  func.func @transform_9(%arg0: i32) -> (i32, i32) {
    %c0_i32 = arith.constant 0 : i32
    %c0_i32_0 = arith.constant 0 : i32
    %c0_i32_1 = arith.constant 0 : i32
    return %c0_i32, %c0_i32_0 : i32, i32
  }
  func.func @transform_10(%arg0: i32) -> (i32, i32) {
    %c0_i32 = arith.constant 0 : i32
    %c0_i32_0 = arith.constant 0 : i32
    %c0_i32_1 = arith.constant 0 : i32
    return %c0_i32, %c0_i32_0 : i32, i32
  }
  func.func @transform_11(%arg0: i32) -> (i32, i32) {
    %c0_i32 = arith.constant 0 : i32
    %c0_i32_0 = arith.constant 0 : i32
    %c0_i32_1 = arith.constant 0 : i32
    return %c0_i32, %c0_i32_0 : i32, i32
  }
  func.func @transform_12(%arg0: i32) -> (i32, i32) {
    %c0_i32 = arith.constant 0 : i32
    %c0_i32_0 = arith.constant 0 : i32
    %c0_i32_1 = arith.constant 0 : i32
    return %c0_i32, %c0_i32_0 : i32, i32
  }
  func.func @transform_13(%arg0: i32) -> (i32, i32) {
    %c0_i32 = arith.constant 0 : i32
    %c0_i32_0 = arith.constant 0 : i32
    %c0_i32_1 = arith.constant 0 : i32
    return %c0_i32, %c0_i32_0 : i32, i32
  }
  func.func @transform_14(%arg0: i32) -> (i32, i32) {
    %c0_i32 = arith.constant 0 : i32
    %c0_i32_0 = arith.constant 0 : i32
    %c0_i32_1 = arith.constant 0 : i32
    return %c0_i32, %c0_i32_0 : i32, i32
  }
  func.func @transform_15(%arg0: i32) -> (i32, i32) {
    %c0_i32 = arith.constant 0 : i32
    %c0_i32_0 = arith.constant 0 : i32
    %c0_i32_1 = arith.constant 0 : i32
    return %c0_i32, %c0_i32_0 : i32, i32
  }
  func.func @transform_16(%arg0: i32) -> (i32, i32) {
    %c0_i32 = arith.constant 0 : i32
    %c0_i32_0 = arith.constant 0 : i32
    %c0_i32_1 = arith.constant 0 : i32
    return %c0_i32, %c0_i32_0 : i32, i32
  }
  func.func @transform_17(%arg0: i32) -> (i32, i32) {
    %c0_i32 = arith.constant 0 : i32
    %c0_i32_0 = arith.constant 0 : i32
    return %arg0, %c0_i32 : i32, i32
  }
}

module attributes {stable_mosaic.version = 11 : i64} {
  func.func @_rel_attn_kernel(%arg0: i32, %arg1: memref<1x8x96xbf16, #tpu.memory_space<vmem>>, %arg2: memref<8x32xbf16, #tpu.memory_space<vmem>>, %arg3: memref<4x8xbf16, #tpu.memory_space<vmem>>, %arg4: memref<4x8xf32, #tpu.memory_space<vmem>>, %arg5: memref<1x8x32xbf16, #tpu.memory_space<vmem>>) attributes {dimension_semantics = [#tpu.dimension_semantics<parallel>], iteration_bounds = array<i64: 2>, scalar_prefetch = 0 : i64, scratch_operands = 0 : i64, tpu.core_type = #tpu.core_type<tc>, window_params = [{transform_indices = @transform_0, window_bounds = array<i64: 1, 8, 96>}, {pipeline_mode = #tpu.pipeline_mode<synchronous>, transform_indices = @transform_1, window_bounds = array<i64: 8, 32>}, {pipeline_mode = #tpu.pipeline_mode<synchronous>, transform_indices = @transform_2, window_bounds = array<i64: 4, 8>}, {pipeline_mode = #tpu.pipeline_mode<synchronous>, transform_indices = @transform_3, window_bounds = array<i64: 4, 8>}, {transform_indices = @transform_4, window_bounds = array<i64: 1, 8, 32>}]} {
    %c0 = arith.constant 0 : index
    %c0_0 = arith.constant 0 : index
    %c0_1 = arith.constant 0 : index
    %0 = vector.load %arg1[%c0, %c0_0, %c0_1] : memref<1x8x96xbf16, #tpu.memory_space<vmem>>, vector<1x8x96xbf16>
    %1 = vector.shape_cast %0 : vector<1x8x96xbf16> to vector<8x96xbf16>
    %2 = vector.extract_strided_slice %1 {offsets = [0, 0], sizes = [8, 32], strides = [1, 1]} : vector<8x96xbf16> to vector<8x32xbf16>
    %3 = arith.extf %2 : vector<8x32xbf16> to vector<8x32xf32>
    %cst = arith.constant 0.353553385 : f32
    %4 = vector.broadcast %cst : f32 to vector<8x32xf32>
    %5 = arith.mulf %3, %4 : vector<8x32xf32>
    %6 = arith.truncf %5 : vector<8x32xf32> to vector<8x32xbf16>
    %7 = vector.extract_strided_slice %1 {offsets = [0, 32], sizes = [8, 32], strides = [1, 1]} : vector<8x96xbf16> to vector<8x32xbf16>
    %8 = vector.extract_strided_slice %1 {offsets = [0, 64], sizes = [8, 32], strides = [1, 1]} : vector<8x96xbf16> to vector<8x32xbf16>
    %c0_2 = arith.constant 0 : index
    %c0_3 = arith.constant 0 : index
    %9 = vector.load %arg2[%c0_2, %c0_3] : memref<8x32xbf16, #tpu.memory_space<vmem>>, vector<8x32xbf16>
    %c0_4 = arith.constant 0 : index
    %c0_5 = arith.constant 0 : index
    %10 = vector.load %arg3[%c0_4, %c0_5] : memref<4x8xbf16, #tpu.memory_space<vmem>>, vector<4x8xbf16>
    %c0_6 = arith.constant 0 : index
    %c0_7 = arith.constant 0 : index
    %11 = vector.load %arg4[%c0_6, %c0_7] : memref<4x8xf32, #tpu.memory_space<vmem>>, vector<4x8xf32>
    %12 = tpu.iota {dimensions = array<i32: 0>} : vector<8x1xi32>
    %c8_i32 = arith.constant 8 : i32
    %13 = vector.broadcast %c8_i32 : i32 to vector<8x1xi32>
    %14 = arith.subi %13, %12 : vector<8x1xi32>
    %c1_i32 = arith.constant 1 : i32
    %15 = vector.broadcast %c1_i32 : i32 to vector<8x1xi32>
    %16 = arith.andi %14, %15 : vector<8x1xi32>
    %c0_i32 = arith.constant 0 : i32
    %17 = vector.broadcast %c0_i32 : i32 to vector<8x1xi32>
    %18 = arith.cmpi ne, %16, %17 : vector<8x1xi32>
    %c2_i32 = arith.constant 2 : i32
    %19 = vector.broadcast %c2_i32 : i32 to vector<8x1xi32>
    %20 = arith.andi %14, %19 : vector<8x1xi32>
    %c0_i32_8 = arith.constant 0 : i32
    %21 = vector.broadcast %c0_i32_8 : i32 to vector<8x1xi32>
    %22 = arith.cmpi ne, %20, %21 : vector<8x1xi32>
    %c4_i32 = arith.constant 4 : i32
    %23 = vector.broadcast %c4_i32 : i32 to vector<8x1xi32>
    %24 = arith.andi %14, %23 : vector<8x1xi32>
    %c0_i32_9 = arith.constant 0 : i32
    %25 = vector.broadcast %c0_i32_9 : i32 to vector<8x1xi32>
    %26 = arith.cmpi ne, %24, %25 : vector<8x1xi32>
    %c8_i32_10 = arith.constant 8 : i32
    %27 = vector.broadcast %c8_i32_10 : i32 to vector<8x1xi32>
    %28 = arith.andi %14, %27 : vector<8x1xi32>
    %c0_i32_11 = arith.constant 0 : i32
    %29 = vector.broadcast %c0_i32_11 : i32 to vector<8x1xi32>
    %30 = arith.cmpi ne, %28, %29 : vector<8x1xi32>
    %31 = vector.extract_strided_slice %6 {offsets = [0, 0], sizes = [8, 8], strides = [1, 1]} : vector<8x32xbf16> to vector<8x8xbf16>
    %32 = vector.extract_strided_slice %7 {offsets = [0, 0], sizes = [8, 8], strides = [1, 1]} : vector<8x32xbf16> to vector<8x8xbf16>
    %33 = vector.extract_strided_slice %8 {offsets = [0, 0], sizes = [8, 8], strides = [1, 1]} : vector<8x32xbf16> to vector<8x8xbf16>
    %34 = vector.extract_strided_slice %9 {offsets = [0, 0], sizes = [8, 8], strides = [1, 1]} : vector<8x32xbf16> to vector<8x8xbf16>
    %cst_12 = arith.constant dense<0.000000e+00> : vector<8x8xf32>
    %35 = tpu.matmul %31, %32, %cst_12 {dimension_numbers = #tpu.dot_dimension_numbers<[1], [1], [0], [0], [0, 0, 1, 0], [], []>} : vector<8x8xbf16>, vector<8x8xbf16>, vector<8x8xf32> -> vector<8x8xf32>
    %36 = vector.extract_strided_slice %10 {offsets = [0, 0], sizes = [1, 8], strides = [1, 1]} : vector<4x8xbf16> to vector<1x8xbf16>
    %cst_13 = arith.constant dense<0.000000e+00> : vector<1x8xf32>
    %37 = tpu.matmul %36, %32, %cst_13 {dimension_numbers = #tpu.dot_dimension_numbers<[1], [1], [0], [0], [0, 0, 1, 0], [], []>} : vector<1x8xbf16>, vector<8x8xbf16>, vector<1x8xf32> -> vector<1x8xf32>
    %38 = vector.broadcast %37 : vector<1x8xf32> to vector<8x8xf32>
    %39 = arith.addf %35, %38 : vector<8x8xf32>
    %cst_14 = arith.constant dense<0.000000e+00> : vector<8x8xf32>
    %40 = tpu.matmul %31, %34, %cst_14 {dimension_numbers = #tpu.dot_dimension_numbers<[1], [1], [0], [0], [0, 0, 1, 0], [], []>} : vector<8x8xbf16>, vector<8x8xbf16>, vector<8x8xf32> -> vector<8x8xf32>
    %41 = vector.extract_strided_slice %11 {offsets = [0, 0], sizes = [1, 8], strides = [1, 1]} : vector<4x8xf32> to vector<1x8xf32>
    %42 = vector.broadcast %41 : vector<1x8xf32> to vector<8x8xf32>
    %43 = arith.addf %40, %42 : vector<8x8xf32>
    %cst_15 = arith.constant 0.000000e+00 : f32
    %44 = vector.broadcast %cst_15 : f32 to vector<8x1xf32>
    %45 = tpu.concatenate %44, %43 in 1 : vector<8x1xf32>, vector<8x8xf32> -> vector<8x9xf32>
    %46 = vector.extract_strided_slice %45 {offsets = [1, 0], sizes = [7, 9], strides = [1, 1]} : vector<8x9xf32> to vector<7x9xf32>
    %cst_16 = arith.constant 0.000000e+00 : f32
    %47 = vector.broadcast %cst_16 : f32 to vector<1x9xf32>
    %48 = tpu.concatenate %46, %47 in 0 : vector<7x9xf32>, vector<1x9xf32> -> vector<8x9xf32>
    %49 = tpu.concatenate %45, %48 in 1 : vector<8x9xf32>, vector<8x9xf32> -> vector<8x18xf32>
    %50 = vector.extract_strided_slice %49 {offsets = [0, 1], sizes = [8, 17], strides = [1, 1]} : vector<8x18xf32> to vector<8x17xf32>
    %cst_17 = arith.constant 0.000000e+00 : f32
    %51 = vector.broadcast %cst_17 : f32 to vector<8x1xf32>
    %52 = tpu.concatenate %50, %51 in 1 : vector<8x17xf32>, vector<8x1xf32> -> vector<8x18xf32>
    %53 = vector.shape_cast %18 : vector<8x1xi1> to vector<8x1xi1>
    %54 = vector.broadcast %53 : vector<8x1xi1> to vector<8x18xi1>
    %55 = arith.select %54, %52, %49 : vector<8x18xi1>, vector<8x18xf32>
    %56 = vector.extract_strided_slice %55 {offsets = [0, 2], sizes = [8, 16], strides = [1, 1]} : vector<8x18xf32> to vector<8x16xf32>
    %cst_18 = arith.constant 0.000000e+00 : f32
    %57 = vector.broadcast %cst_18 : f32 to vector<8x2xf32>
    %58 = tpu.concatenate %56, %57 in 1 : vector<8x16xf32>, vector<8x2xf32> -> vector<8x18xf32>
    %59 = vector.shape_cast %22 : vector<8x1xi1> to vector<8x1xi1>
    %60 = vector.broadcast %59 : vector<8x1xi1> to vector<8x18xi1>
    %61 = arith.select %60, %58, %55 : vector<8x18xi1>, vector<8x18xf32>
    %62 = vector.extract_strided_slice %61 {offsets = [0, 4], sizes = [8, 14], strides = [1, 1]} : vector<8x18xf32> to vector<8x14xf32>
    %cst_19 = arith.constant 0.000000e+00 : f32
    %63 = vector.broadcast %cst_19 : f32 to vector<8x4xf32>
    %64 = tpu.concatenate %62, %63 in 1 : vector<8x14xf32>, vector<8x4xf32> -> vector<8x18xf32>
    %65 = vector.shape_cast %26 : vector<8x1xi1> to vector<8x1xi1>
    %66 = vector.broadcast %65 : vector<8x1xi1> to vector<8x18xi1>
    %67 = arith.select %66, %64, %61 : vector<8x18xi1>, vector<8x18xf32>
    %68 = vector.extract_strided_slice %67 {offsets = [0, 8], sizes = [8, 10], strides = [1, 1]} : vector<8x18xf32> to vector<8x10xf32>
    %cst_20 = arith.constant 0.000000e+00 : f32
    %69 = vector.broadcast %cst_20 : f32 to vector<8x8xf32>
    %70 = tpu.concatenate %68, %69 in 1 : vector<8x10xf32>, vector<8x8xf32> -> vector<8x18xf32>
    %71 = vector.shape_cast %30 : vector<8x1xi1> to vector<8x1xi1>
    %72 = vector.broadcast %71 : vector<8x1xi1> to vector<8x18xi1>
    %73 = arith.select %72, %70, %67 : vector<8x18xi1>, vector<8x18xf32>
    %74 = vector.extract_strided_slice %73 {offsets = [0, 0], sizes = [8, 8], strides = [1, 1]} : vector<8x18xf32> to vector<8x8xf32>
    %75 = arith.addf %39, %74 : vector<8x8xf32>
    %cst_21 = arith.constant dense<0xFF800000> : vector<8xf32>
    %76 = vector.multi_reduction <maximumf>, %75, %cst_21 [1] : vector<8x8xf32> to vector<8xf32>
    %77 = vector.shape_cast %76 : vector<8xf32> to vector<8x1xf32>
    %78 = vector.broadcast %77 : vector<8x1xf32> to vector<8x8xf32>
    %79 = arith.subf %75, %78 : vector<8x8xf32>
    %80 = math.exp %79 : vector<8x8xf32>
    %cst_22 = arith.constant dense<0.000000e+00> : vector<8xf32>
    %81 = vector.multi_reduction <add>, %80, %cst_22 [1] : vector<8x8xf32> to vector<8xf32>
    %82 = vector.shape_cast %81 : vector<8xf32> to vector<8x1xf32>
    %83 = tpu.reciprocal %82 {approx = true} : vector<8x1xf32> -> vector<8x1xf32>
    %84 = vector.broadcast %83 : vector<8x1xf32> to vector<8x8xf32>
    %85 = arith.mulf %80, %84 : vector<8x8xf32>
    %86 = arith.truncf %85 : vector<8x8xf32> to vector<8x8xbf16>
    %cst_23 = arith.constant dense<0.000000e+00> : vector<8x8xf32>
    %87 = tpu.matmul %86, %33, %cst_23 {dimension_numbers = #tpu.dot_dimension_numbers<[1], [0], [0], [1], [0, 0, 1, 1], [], []>} : vector<8x8xbf16>, vector<8x8xbf16>, vector<8x8xf32> -> vector<8x8xf32>
    %88 = vector.extract_strided_slice %6 {offsets = [0, 8], sizes = [8, 8], strides = [1, 1]} : vector<8x32xbf16> to vector<8x8xbf16>
    %89 = vector.extract_strided_slice %7 {offsets = [0, 8], sizes = [8, 8], strides = [1, 1]} : vector<8x32xbf16> to vector<8x8xbf16>
    %90 = vector.extract_strided_slice %8 {offsets = [0, 8], sizes = [8, 8], strides = [1, 1]} : vector<8x32xbf16> to vector<8x8xbf16>
    %91 = vector.extract_strided_slice %9 {offsets = [0, 8], sizes = [8, 8], strides = [1, 1]} : vector<8x32xbf16> to vector<8x8xbf16>
    %cst_24 = arith.constant dense<0.000000e+00> : vector<8x8xf32>
    %92 = tpu.matmul %88, %89, %cst_24 {dimension_numbers = #tpu.dot_dimension_numbers<[1], [1], [0], [0], [0, 0, 1, 0], [], []>} : vector<8x8xbf16>, vector<8x8xbf16>, vector<8x8xf32> -> vector<8x8xf32>
    %93 = vector.extract_strided_slice %10 {offsets = [1, 0], sizes = [1, 8], strides = [1, 1]} : vector<4x8xbf16> to vector<1x8xbf16>
    %cst_25 = arith.constant dense<0.000000e+00> : vector<1x8xf32>
    %94 = tpu.matmul %93, %89, %cst_25 {dimension_numbers = #tpu.dot_dimension_numbers<[1], [1], [0], [0], [0, 0, 1, 0], [], []>} : vector<1x8xbf16>, vector<8x8xbf16>, vector<1x8xf32> -> vector<1x8xf32>
    %95 = vector.broadcast %94 : vector<1x8xf32> to vector<8x8xf32>
    %96 = arith.addf %92, %95 : vector<8x8xf32>
    %cst_26 = arith.constant dense<0.000000e+00> : vector<8x8xf32>
    %97 = tpu.matmul %88, %91, %cst_26 {dimension_numbers = #tpu.dot_dimension_numbers<[1], [1], [0], [0], [0, 0, 1, 0], [], []>} : vector<8x8xbf16>, vector<8x8xbf16>, vector<8x8xf32> -> vector<8x8xf32>
    %98 = vector.extract_strided_slice %11 {offsets = [1, 0], sizes = [1, 8], strides = [1, 1]} : vector<4x8xf32> to vector<1x8xf32>
    %99 = vector.broadcast %98 : vector<1x8xf32> to vector<8x8xf32>
    %100 = arith.addf %97, %99 : vector<8x8xf32>
    %cst_27 = arith.constant 0.000000e+00 : f32
    %101 = vector.broadcast %cst_27 : f32 to vector<8x1xf32>
    %102 = tpu.concatenate %101, %100 in 1 : vector<8x1xf32>, vector<8x8xf32> -> vector<8x9xf32>
    %103 = vector.extract_strided_slice %102 {offsets = [1, 0], sizes = [7, 9], strides = [1, 1]} : vector<8x9xf32> to vector<7x9xf32>
    %cst_28 = arith.constant 0.000000e+00 : f32
    %104 = vector.broadcast %cst_28 : f32 to vector<1x9xf32>
    %105 = tpu.concatenate %103, %104 in 0 : vector<7x9xf32>, vector<1x9xf32> -> vector<8x9xf32>
    %106 = tpu.concatenate %102, %105 in 1 : vector<8x9xf32>, vector<8x9xf32> -> vector<8x18xf32>
    %107 = vector.extract_strided_slice %106 {offsets = [0, 1], sizes = [8, 17], strides = [1, 1]} : vector<8x18xf32> to vector<8x17xf32>
    %cst_29 = arith.constant 0.000000e+00 : f32
    %108 = vector.broadcast %cst_29 : f32 to vector<8x1xf32>
    %109 = tpu.concatenate %107, %108 in 1 : vector<8x17xf32>, vector<8x1xf32> -> vector<8x18xf32>
    %110 = vector.shape_cast %18 : vector<8x1xi1> to vector<8x1xi1>
    %111 = vector.broadcast %110 : vector<8x1xi1> to vector<8x18xi1>
    %112 = arith.select %111, %109, %106 : vector<8x18xi1>, vector<8x18xf32>
    %113 = vector.extract_strided_slice %112 {offsets = [0, 2], sizes = [8, 16], strides = [1, 1]} : vector<8x18xf32> to vector<8x16xf32>
    %cst_30 = arith.constant 0.000000e+00 : f32
    %114 = vector.broadcast %cst_30 : f32 to vector<8x2xf32>
    %115 = tpu.concatenate %113, %114 in 1 : vector<8x16xf32>, vector<8x2xf32> -> vector<8x18xf32>
    %116 = vector.shape_cast %22 : vector<8x1xi1> to vector<8x1xi1>
    %117 = vector.broadcast %116 : vector<8x1xi1> to vector<8x18xi1>
    %118 = arith.select %117, %115, %112 : vector<8x18xi1>, vector<8x18xf32>
    %119 = vector.extract_strided_slice %118 {offsets = [0, 4], sizes = [8, 14], strides = [1, 1]} : vector<8x18xf32> to vector<8x14xf32>
    %cst_31 = arith.constant 0.000000e+00 : f32
    %120 = vector.broadcast %cst_31 : f32 to vector<8x4xf32>
    %121 = tpu.concatenate %119, %120 in 1 : vector<8x14xf32>, vector<8x4xf32> -> vector<8x18xf32>
    %122 = vector.shape_cast %26 : vector<8x1xi1> to vector<8x1xi1>
    %123 = vector.broadcast %122 : vector<8x1xi1> to vector<8x18xi1>
    %124 = arith.select %123, %121, %118 : vector<8x18xi1>, vector<8x18xf32>
    %125 = vector.extract_strided_slice %124 {offsets = [0, 8], sizes = [8, 10], strides = [1, 1]} : vector<8x18xf32> to vector<8x10xf32>
    %cst_32 = arith.constant 0.000000e+00 : f32
    %126 = vector.broadcast %cst_32 : f32 to vector<8x8xf32>
    %127 = tpu.concatenate %125, %126 in 1 : vector<8x10xf32>, vector<8x8xf32> -> vector<8x18xf32>
    %128 = vector.shape_cast %30 : vector<8x1xi1> to vector<8x1xi1>
    %129 = vector.broadcast %128 : vector<8x1xi1> to vector<8x18xi1>
    %130 = arith.select %129, %127, %124 : vector<8x18xi1>, vector<8x18xf32>
    %131 = vector.extract_strided_slice %130 {offsets = [0, 0], sizes = [8, 8], strides = [1, 1]} : vector<8x18xf32> to vector<8x8xf32>
    %132 = arith.addf %96, %131 : vector<8x8xf32>
    %cst_33 = arith.constant dense<0xFF800000> : vector<8xf32>
    %133 = vector.multi_reduction <maximumf>, %132, %cst_33 [1] : vector<8x8xf32> to vector<8xf32>
    %134 = vector.shape_cast %133 : vector<8xf32> to vector<8x1xf32>
    %135 = vector.broadcast %134 : vector<8x1xf32> to vector<8x8xf32>
    %136 = arith.subf %132, %135 : vector<8x8xf32>
    %137 = math.exp %136 : vector<8x8xf32>
    %cst_34 = arith.constant dense<0.000000e+00> : vector<8xf32>
    %138 = vector.multi_reduction <add>, %137, %cst_34 [1] : vector<8x8xf32> to vector<8xf32>
    %139 = vector.shape_cast %138 : vector<8xf32> to vector<8x1xf32>
    %140 = tpu.reciprocal %139 {approx = true} : vector<8x1xf32> -> vector<8x1xf32>
    %141 = vector.broadcast %140 : vector<8x1xf32> to vector<8x8xf32>
    %142 = arith.mulf %137, %141 : vector<8x8xf32>
    %143 = arith.truncf %142 : vector<8x8xf32> to vector<8x8xbf16>
    %cst_35 = arith.constant dense<0.000000e+00> : vector<8x8xf32>
    %144 = tpu.matmul %143, %90, %cst_35 {dimension_numbers = #tpu.dot_dimension_numbers<[1], [0], [0], [1], [0, 0, 1, 1], [], []>} : vector<8x8xbf16>, vector<8x8xbf16>, vector<8x8xf32> -> vector<8x8xf32>
    %145 = vector.extract_strided_slice %6 {offsets = [0, 16], sizes = [8, 8], strides = [1, 1]} : vector<8x32xbf16> to vector<8x8xbf16>
    %146 = vector.extract_strided_slice %7 {offsets = [0, 16], sizes = [8, 8], strides = [1, 1]} : vector<8x32xbf16> to vector<8x8xbf16>
    %147 = vector.extract_strided_slice %8 {offsets = [0, 16], sizes = [8, 8], strides = [1, 1]} : vector<8x32xbf16> to vector<8x8xbf16>
    %148 = vector.extract_strided_slice %9 {offsets = [0, 16], sizes = [8, 8], strides = [1, 1]} : vector<8x32xbf16> to vector<8x8xbf16>
    %cst_36 = arith.constant dense<0.000000e+00> : vector<8x8xf32>
    %149 = tpu.matmul %145, %146, %cst_36 {dimension_numbers = #tpu.dot_dimension_numbers<[1], [1], [0], [0], [0, 0, 1, 0], [], []>} : vector<8x8xbf16>, vector<8x8xbf16>, vector<8x8xf32> -> vector<8x8xf32>
    %150 = vector.extract_strided_slice %10 {offsets = [2, 0], sizes = [1, 8], strides = [1, 1]} : vector<4x8xbf16> to vector<1x8xbf16>
    %cst_37 = arith.constant dense<0.000000e+00> : vector<1x8xf32>
    %151 = tpu.matmul %150, %146, %cst_37 {dimension_numbers = #tpu.dot_dimension_numbers<[1], [1], [0], [0], [0, 0, 1, 0], [], []>} : vector<1x8xbf16>, vector<8x8xbf16>, vector<1x8xf32> -> vector<1x8xf32>
    %152 = vector.broadcast %151 : vector<1x8xf32> to vector<8x8xf32>
    %153 = arith.addf %149, %152 : vector<8x8xf32>
    %cst_38 = arith.constant dense<0.000000e+00> : vector<8x8xf32>
    %154 = tpu.matmul %145, %148, %cst_38 {dimension_numbers = #tpu.dot_dimension_numbers<[1], [1], [0], [0], [0, 0, 1, 0], [], []>} : vector<8x8xbf16>, vector<8x8xbf16>, vector<8x8xf32> -> vector<8x8xf32>
    %155 = vector.extract_strided_slice %11 {offsets = [2, 0], sizes = [1, 8], strides = [1, 1]} : vector<4x8xf32> to vector<1x8xf32>
    %156 = vector.broadcast %155 : vector<1x8xf32> to vector<8x8xf32>
    %157 = arith.addf %154, %156 : vector<8x8xf32>
    %cst_39 = arith.constant 0.000000e+00 : f32
    %158 = vector.broadcast %cst_39 : f32 to vector<8x1xf32>
    %159 = tpu.concatenate %158, %157 in 1 : vector<8x1xf32>, vector<8x8xf32> -> vector<8x9xf32>
    %160 = vector.extract_strided_slice %159 {offsets = [1, 0], sizes = [7, 9], strides = [1, 1]} : vector<8x9xf32> to vector<7x9xf32>
    %cst_40 = arith.constant 0.000000e+00 : f32
    %161 = vector.broadcast %cst_40 : f32 to vector<1x9xf32>
    %162 = tpu.concatenate %160, %161 in 0 : vector<7x9xf32>, vector<1x9xf32> -> vector<8x9xf32>
    %163 = tpu.concatenate %159, %162 in 1 : vector<8x9xf32>, vector<8x9xf32> -> vector<8x18xf32>
    %164 = vector.extract_strided_slice %163 {offsets = [0, 1], sizes = [8, 17], strides = [1, 1]} : vector<8x18xf32> to vector<8x17xf32>
    %cst_41 = arith.constant 0.000000e+00 : f32
    %165 = vector.broadcast %cst_41 : f32 to vector<8x1xf32>
    %166 = tpu.concatenate %164, %165 in 1 : vector<8x17xf32>, vector<8x1xf32> -> vector<8x18xf32>
    %167 = vector.shape_cast %18 : vector<8x1xi1> to vector<8x1xi1>
    %168 = vector.broadcast %167 : vector<8x1xi1> to vector<8x18xi1>
    %169 = arith.select %168, %166, %163 : vector<8x18xi1>, vector<8x18xf32>
    %170 = vector.extract_strided_slice %169 {offsets = [0, 2], sizes = [8, 16], strides = [1, 1]} : vector<8x18xf32> to vector<8x16xf32>
    %cst_42 = arith.constant 0.000000e+00 : f32
    %171 = vector.broadcast %cst_42 : f32 to vector<8x2xf32>
    %172 = tpu.concatenate %170, %171 in 1 : vector<8x16xf32>, vector<8x2xf32> -> vector<8x18xf32>
    %173 = vector.shape_cast %22 : vector<8x1xi1> to vector<8x1xi1>
    %174 = vector.broadcast %173 : vector<8x1xi1> to vector<8x18xi1>
    %175 = arith.select %174, %172, %169 : vector<8x18xi1>, vector<8x18xf32>
    %176 = vector.extract_strided_slice %175 {offsets = [0, 4], sizes = [8, 14], strides = [1, 1]} : vector<8x18xf32> to vector<8x14xf32>
    %cst_43 = arith.constant 0.000000e+00 : f32
    %177 = vector.broadcast %cst_43 : f32 to vector<8x4xf32>
    %178 = tpu.concatenate %176, %177 in 1 : vector<8x14xf32>, vector<8x4xf32> -> vector<8x18xf32>
    %179 = vector.shape_cast %26 : vector<8x1xi1> to vector<8x1xi1>
    %180 = vector.broadcast %179 : vector<8x1xi1> to vector<8x18xi1>
    %181 = arith.select %180, %178, %175 : vector<8x18xi1>, vector<8x18xf32>
    %182 = vector.extract_strided_slice %181 {offsets = [0, 8], sizes = [8, 10], strides = [1, 1]} : vector<8x18xf32> to vector<8x10xf32>
    %cst_44 = arith.constant 0.000000e+00 : f32
    %183 = vector.broadcast %cst_44 : f32 to vector<8x8xf32>
    %184 = tpu.concatenate %182, %183 in 1 : vector<8x10xf32>, vector<8x8xf32> -> vector<8x18xf32>
    %185 = vector.shape_cast %30 : vector<8x1xi1> to vector<8x1xi1>
    %186 = vector.broadcast %185 : vector<8x1xi1> to vector<8x18xi1>
    %187 = arith.select %186, %184, %181 : vector<8x18xi1>, vector<8x18xf32>
    %188 = vector.extract_strided_slice %187 {offsets = [0, 0], sizes = [8, 8], strides = [1, 1]} : vector<8x18xf32> to vector<8x8xf32>
    %189 = arith.addf %153, %188 : vector<8x8xf32>
    %cst_45 = arith.constant dense<0xFF800000> : vector<8xf32>
    %190 = vector.multi_reduction <maximumf>, %189, %cst_45 [1] : vector<8x8xf32> to vector<8xf32>
    %191 = vector.shape_cast %190 : vector<8xf32> to vector<8x1xf32>
    %192 = vector.broadcast %191 : vector<8x1xf32> to vector<8x8xf32>
    %193 = arith.subf %189, %192 : vector<8x8xf32>
    %194 = math.exp %193 : vector<8x8xf32>
    %cst_46 = arith.constant dense<0.000000e+00> : vector<8xf32>
    %195 = vector.multi_reduction <add>, %194, %cst_46 [1] : vector<8x8xf32> to vector<8xf32>
    %196 = vector.shape_cast %195 : vector<8xf32> to vector<8x1xf32>
    %197 = tpu.reciprocal %196 {approx = true} : vector<8x1xf32> -> vector<8x1xf32>
    %198 = vector.broadcast %197 : vector<8x1xf32> to vector<8x8xf32>
    %199 = arith.mulf %194, %198 : vector<8x8xf32>
    %200 = arith.truncf %199 : vector<8x8xf32> to vector<8x8xbf16>
    %cst_47 = arith.constant dense<0.000000e+00> : vector<8x8xf32>
    %201 = tpu.matmul %200, %147, %cst_47 {dimension_numbers = #tpu.dot_dimension_numbers<[1], [0], [0], [1], [0, 0, 1, 1], [], []>} : vector<8x8xbf16>, vector<8x8xbf16>, vector<8x8xf32> -> vector<8x8xf32>
    %202 = vector.extract_strided_slice %6 {offsets = [0, 24], sizes = [8, 8], strides = [1, 1]} : vector<8x32xbf16> to vector<8x8xbf16>
    %203 = vector.extract_strided_slice %7 {offsets = [0, 24], sizes = [8, 8], strides = [1, 1]} : vector<8x32xbf16> to vector<8x8xbf16>
    %204 = vector.extract_strided_slice %8 {offsets = [0, 24], sizes = [8, 8], strides = [1, 1]} : vector<8x32xbf16> to vector<8x8xbf16>
    %205 = vector.extract_strided_slice %9 {offsets = [0, 24], sizes = [8, 8], strides = [1, 1]} : vector<8x32xbf16> to vector<8x8xbf16>
    %cst_48 = arith.constant dense<0.000000e+00> : vector<8x8xf32>
    %206 = tpu.matmul %202, %203, %cst_48 {dimension_numbers = #tpu.dot_dimension_numbers<[1], [1], [0], [0], [0, 0, 1, 0], [], []>} : vector<8x8xbf16>, vector<8x8xbf16>, vector<8x8xf32> -> vector<8x8xf32>
    %207 = vector.extract_strided_slice %10 {offsets = [3, 0], sizes = [1, 8], strides = [1, 1]} : vector<4x8xbf16> to vector<1x8xbf16>
    %cst_49 = arith.constant dense<0.000000e+00> : vector<1x8xf32>
    %208 = tpu.matmul %207, %203, %cst_49 {dimension_numbers = #tpu.dot_dimension_numbers<[1], [1], [0], [0], [0, 0, 1, 0], [], []>} : vector<1x8xbf16>, vector<8x8xbf16>, vector<1x8xf32> -> vector<1x8xf32>
    %209 = vector.broadcast %208 : vector<1x8xf32> to vector<8x8xf32>
    %210 = arith.addf %206, %209 : vector<8x8xf32>
    %cst_50 = arith.constant dense<0.000000e+00> : vector<8x8xf32>
    %211 = tpu.matmul %202, %205, %cst_50 {dimension_numbers = #tpu.dot_dimension_numbers<[1], [1], [0], [0], [0, 0, 1, 0], [], []>} : vector<8x8xbf16>, vector<8x8xbf16>, vector<8x8xf32> -> vector<8x8xf32>
    %212 = vector.extract_strided_slice %11 {offsets = [3, 0], sizes = [1, 8], strides = [1, 1]} : vector<4x8xf32> to vector<1x8xf32>
    %213 = vector.broadcast %212 : vector<1x8xf32> to vector<8x8xf32>
    %214 = arith.addf %211, %213 : vector<8x8xf32>
    %cst_51 = arith.constant 0.000000e+00 : f32
    %215 = vector.broadcast %cst_51 : f32 to vector<8x1xf32>
    %216 = tpu.concatenate %215, %214 in 1 : vector<8x1xf32>, vector<8x8xf32> -> vector<8x9xf32>
    %217 = vector.extract_strided_slice %216 {offsets = [1, 0], sizes = [7, 9], strides = [1, 1]} : vector<8x9xf32> to vector<7x9xf32>
    %cst_52 = arith.constant 0.000000e+00 : f32
    %218 = vector.broadcast %cst_52 : f32 to vector<1x9xf32>
    %219 = tpu.concatenate %217, %218 in 0 : vector<7x9xf32>, vector<1x9xf32> -> vector<8x9xf32>
    %220 = tpu.concatenate %216, %219 in 1 : vector<8x9xf32>, vector<8x9xf32> -> vector<8x18xf32>
    %221 = vector.extract_strided_slice %220 {offsets = [0, 1], sizes = [8, 17], strides = [1, 1]} : vector<8x18xf32> to vector<8x17xf32>
    %cst_53 = arith.constant 0.000000e+00 : f32
    %222 = vector.broadcast %cst_53 : f32 to vector<8x1xf32>
    %223 = tpu.concatenate %221, %222 in 1 : vector<8x17xf32>, vector<8x1xf32> -> vector<8x18xf32>
    %224 = vector.shape_cast %18 : vector<8x1xi1> to vector<8x1xi1>
    %225 = vector.broadcast %224 : vector<8x1xi1> to vector<8x18xi1>
    %226 = arith.select %225, %223, %220 : vector<8x18xi1>, vector<8x18xf32>
    %227 = vector.extract_strided_slice %226 {offsets = [0, 2], sizes = [8, 16], strides = [1, 1]} : vector<8x18xf32> to vector<8x16xf32>
    %cst_54 = arith.constant 0.000000e+00 : f32
    %228 = vector.broadcast %cst_54 : f32 to vector<8x2xf32>
    %229 = tpu.concatenate %227, %228 in 1 : vector<8x16xf32>, vector<8x2xf32> -> vector<8x18xf32>
    %230 = vector.shape_cast %22 : vector<8x1xi1> to vector<8x1xi1>
    %231 = vector.broadcast %230 : vector<8x1xi1> to vector<8x18xi1>
    %232 = arith.select %231, %229, %226 : vector<8x18xi1>, vector<8x18xf32>
    %233 = vector.extract_strided_slice %232 {offsets = [0, 4], sizes = [8, 14], strides = [1, 1]} : vector<8x18xf32> to vector<8x14xf32>
    %cst_55 = arith.constant 0.000000e+00 : f32
    %234 = vector.broadcast %cst_55 : f32 to vector<8x4xf32>
    %235 = tpu.concatenate %233, %234 in 1 : vector<8x14xf32>, vector<8x4xf32> -> vector<8x18xf32>
    %236 = vector.shape_cast %26 : vector<8x1xi1> to vector<8x1xi1>
    %237 = vector.broadcast %236 : vector<8x1xi1> to vector<8x18xi1>
    %238 = arith.select %237, %235, %232 : vector<8x18xi1>, vector<8x18xf32>
    %239 = vector.extract_strided_slice %238 {offsets = [0, 8], sizes = [8, 10], strides = [1, 1]} : vector<8x18xf32> to vector<8x10xf32>
    %cst_56 = arith.constant 0.000000e+00 : f32
    %240 = vector.broadcast %cst_56 : f32 to vector<8x8xf32>
    %241 = tpu.concatenate %239, %240 in 1 : vector<8x10xf32>, vector<8x8xf32> -> vector<8x18xf32>
    %242 = vector.shape_cast %30 : vector<8x1xi1> to vector<8x1xi1>
    %243 = vector.broadcast %242 : vector<8x1xi1> to vector<8x18xi1>
    %244 = arith.select %243, %241, %238 : vector<8x18xi1>, vector<8x18xf32>
    %245 = vector.extract_strided_slice %244 {offsets = [0, 0], sizes = [8, 8], strides = [1, 1]} : vector<8x18xf32> to vector<8x8xf32>
    %246 = arith.addf %210, %245 : vector<8x8xf32>
    %cst_57 = arith.constant dense<0xFF800000> : vector<8xf32>
    %247 = vector.multi_reduction <maximumf>, %246, %cst_57 [1] : vector<8x8xf32> to vector<8xf32>
    %248 = vector.shape_cast %247 : vector<8xf32> to vector<8x1xf32>
    %249 = vector.broadcast %248 : vector<8x1xf32> to vector<8x8xf32>
    %250 = arith.subf %246, %249 : vector<8x8xf32>
    %251 = math.exp %250 : vector<8x8xf32>
    %cst_58 = arith.constant dense<0.000000e+00> : vector<8xf32>
    %252 = vector.multi_reduction <add>, %251, %cst_58 [1] : vector<8x8xf32> to vector<8xf32>
    %253 = vector.shape_cast %252 : vector<8xf32> to vector<8x1xf32>
    %254 = tpu.reciprocal %253 {approx = true} : vector<8x1xf32> -> vector<8x1xf32>
    %255 = vector.broadcast %254 : vector<8x1xf32> to vector<8x8xf32>
    %256 = arith.mulf %251, %255 : vector<8x8xf32>
    %257 = arith.truncf %256 : vector<8x8xf32> to vector<8x8xbf16>
    %cst_59 = arith.constant dense<0.000000e+00> : vector<8x8xf32>
    %258 = tpu.matmul %257, %204, %cst_59 {dimension_numbers = #tpu.dot_dimension_numbers<[1], [0], [0], [1], [0, 0, 1, 1], [], []>} : vector<8x8xbf16>, vector<8x8xbf16>, vector<8x8xf32> -> vector<8x8xf32>
    %259 = tpu.concatenate %87, %144, %201, %258 in 1 : vector<8x8xf32>, vector<8x8xf32>, vector<8x8xf32>, vector<8x8xf32> -> vector<8x32xf32>
    %260 = arith.truncf %259 : vector<8x32xf32> to vector<8x32xbf16>
    %c0_60 = arith.constant 0 : index
    %c0_61 = arith.constant 0 : index
    %c0_62 = arith.constant 0 : index
    %261 = vector.load %arg5[%c0_60, %c0_61, %c0_62] : memref<1x8x32xbf16, #tpu.memory_space<vmem>>, vector<1x8x32xbf16>
    %262 = vector.shape_cast %261 : vector<1x8x32xbf16> to vector<8x32xbf16>
    %263 = vector.shape_cast %260 : vector<8x32xbf16> to vector<1x8x32xbf16>
    tpu.vector_store %arg5[%c0_60, %c0_61, %c0_62], %263 {strides = array<i32>} : memref<1x8x32xbf16, #tpu.memory_space<vmem>>, vector<1x8x32xbf16>,
    return
  }
  func.func @transform_0(%arg0: i32) -> (i32, i32, i32) {
    %c0_i32 = arith.constant 0 : i32
    %c0_i32_0 = arith.constant 0 : i32
    %c0_i32_1 = arith.constant 0 : i32
    return %arg0, %c0_i32, %c0_i32_0 : i32, i32, i32
  }
  func.func @transform_1(%arg0: i32) -> (i32, i32) {
    %c0_i32 = arith.constant 0 : i32
    %c0_i32_0 = arith.constant 0 : i32
    %c0_i32_1 = arith.constant 0 : i32
    return %c0_i32, %c0_i32_0 : i32, i32
  }
  func.func @transform_2(%arg0: i32) -> (i32, i32) {
    %c0_i32 = arith.constant 0 : i32
    %c0_i32_0 = arith.constant 0 : i32
    %c0_i32_1 = arith.constant 0 : i32
    return %c0_i32, %c0_i32_0 : i32, i32
  }
  func.func @transform_3(%arg0: i32) -> (i32, i32) {
    %c0_i32 = arith.constant 0 : i32
    %c0_i32_0 = arith.constant 0 : i32
    %c0_i32_1 = arith.constant 0 : i32
    return %c0_i32, %c0_i32_0 : i32, i32
  }
  func.func @transform_4(%arg0: i32) -> (i32, i32, i32) {
    %c0_i32 = arith.constant 0 : i32
    %c0_i32_0 = arith.constant 0 : i32
    %c0_i32_1 = arith.constant 0 : i32
    return %arg0, %c0_i32, %c0_i32_0 : i32, i32, i32
  }
}

</mosaic_0001>

<llo_original>
// kernel: rel_learnable_encoder_layer.4
$region0: #{rel_learnable_encoder_layer.4}
  #allocation0 [shape = 'u32[]', space=smem, size = 0x4, offset = 0x4, fixed_abs, tag = 'smem constant byte address 0x4 - core index']
  #allocation1 [shape = 'u32[144,128]{1,0:T(1,128)}', space=vmem, size = 0x12000, scoped, tag = 'internal scratch']
  %s0 = inlined_call_operand.vmem [shape: bf16[16,32], index: 0, kind: input, shape index: {}]
  %s1 = inlined_call_operand.vmem [shape: bf16[32,96], index: 1, kind: input, shape index: {}]
  %s2 = inlined_call_operand.vmem [shape: bf16[16,96], index: 2, kind: output, shape index: {}]
  %s3 = sld [smem:[#allocation0]]
  $region18: #{rel_learnable_encoder_layer.4} parent=0
    _
  %s5 = ssub.s32 1, %s3
  %s6 = scalar_select 0, %s5, %s3
  // Predicated region
  $region2: #{rel_learnable_encoder_layer.4} parent=0 // pred_check
    _
  $region3: #{rel_learnable_encoder_layer.4} parent=0 // pred_check_branch
    %8 = sbr.rel (0) target = $region5
  $region4: #{rel_learnable_encoder_layer.4} parent=0 // pred_region
    _
  $region5: #{rel_learnable_encoder_layer.4} parent=0 // pred_fallthru
    _
  // Predicated region
  $region6: #{rel_learnable_encoder_layer.4} parent=0 // pred_check
    _
  $region7: #{rel_learnable_encoder_layer.4} parent=0 // pred_check_branch
    %10 = sbr.rel (0) target = $region9
  $region8: #{rel_learnable_encoder_layer.4} parent=0 // pred_region
    _
  $region9: #{rel_learnable_encoder_layer.4} parent=0 // pred_fallthru
    _
  %v12 = vld [vmem:[%s0] sm:$0xf]
  %v13 = vld [vmem:[%s0 + $0x4] sm:$0xf]
  %v14 = vld [vmem:[%s1] sm:$0xf]
  %v15 = vld [vmem:[%s1 + $0x4] sm:$0xf]
  %v16 = vld [vmem:[%s1 + $0x8] sm:$0xf]
  %v17 = vld [vmem:[%s1 + $0xc] sm:$0xf]
  %v20 = vunpack.c.l.b16 %v12
  %v21 = vunpack.c.l.b16 %v13
  %v22 = vpack.c.b16 %v21, %v20
  %v27 = vunpack.c.l.b16 %v14
  %v28 = vunpack.c.l.b16 %v15
  %v29 = vunpack.c.l.b16 %v16
  %v30 = vunpack.c.l.b16 %v17
  %v31 = vpack.c.b16 %v28, %v27
  %v32 = vpack.c.b16 %v30, %v29
  %vm35 = vcmask 261120
  %v37 = vsel %vm35, %v22, 0
  %39 = vmatprep.subr.bf16.mxu0 0
  %40 = vmatpush1.bf16.msra.mxu0 0
  %41 = vmatprep.subr.bf16.mxu0 0
  %42 = vmatpush1.bf16.msra.mxu0 0
  %43 = vmatprep.subr.bf16.mxu0 0
  %44 = vmatpush1.bf16.msra.mxu0 0
  %45 = vmatprep.subr.bf16.mxu0 0
  %46 = vmatpush1.bf16.msra.mxu0 0
  %47 = vmatprep.subr.bf16.mxu0 0
  %48 = vmatpush1.bf16.msra.mxu0 0
  %49 = vmatprep.subr.bf16.mxu0 0
  %50 = vmatpush1.bf16.msra.mxu0 0
  %51 = vmatprep.subr.bf16.mxu0 0
  %52 = vmatpush1.bf16.msra.mxu0 %v32
  %53 = vmatprep.subr.bf16.mxu0 0
  %54 = vmatpush1.bf16.msra.mxu0 %v31
  %55 = vmatprep.subr.bf16.mxu0 0
  %56 = vmatpush2.bf16.msra.mxu0 0
  %57 = vmatprep.subr.bf16.mxu0 0
  %58 = vmatpush2.bf16.msra.mxu0 0
  %59 = vmatprep.subr.bf16.mxu0 0
  %60 = vmatpush2.bf16.msra.mxu0 0
  %61 = vmatprep.subr.bf16.mxu0 0
  %62 = vmatpush2.bf16.msra.mxu0 0
  %63 = vmatprep.subr.bf16.mxu0 0
  %64 = vmatpush2.bf16.msra.mxu0 0
  %65 = vmatprep.subr.bf16.mxu0 0
  %66 = vmatpush2.bf16.msra.mxu0 0
  %67 = vmatprep.subr.bf16.mxu0 0
  %68 = vmatpush2.bf16.msra.mxu0 0
  %69 = vmatprep.subr.bf16.mxu0 0
  %70 = vmatpush2.bf16.msra.mxu0 0
  %71 = vmatprep.mubr.bf16.mxu0 0
  %72 = vmatmul.mubr.bf16.gmra.mxu0 %v37
  %v73 = vpop.f32.mrf.mxu0
  %v74 = vadd.f32 0.0, %v73
  %v75 = vpop.f32.mrf.mxu0
  %v76 = vpop.f32.mrf.mxu0
  %v77 = vadd.f32 0.0, %v76
  %v78 = vpop.f32.mrf.mxu0
  %79 = vdwg.mxu0
  %v80 = vpack.c.bf16 %v77, %v74
  %v82 = vunpack.c.l.b16 %v80
  %v83 = vunpack.c.h.b16 %v80
  %v84 = vpack.c.b16 %v82, %v82
  %v85 = vpack.c.b16 %v83, %v83
  %vm88 = vcmask 781312
  %89 = vst.msk [vmem:[%s2] sm:$0xf] %vm88, %v84
  %90 = vst.msk [vmem:[%s2 + $0x4] sm:$0xf] %vm88, %v85
  // Predicated region
  $region10: #{rel_learnable_encoder_layer.4} parent=0 // pred_check
    _
  $region11: #{rel_learnable_encoder_layer.4} parent=0 // pred_check_branch
    %92 = sbr.rel (0) target = $region13
  $region12: #{rel_learnable_encoder_layer.4} parent=0 // pred_region
    _
  $region13: #{rel_learnable_encoder_layer.4} parent=0 // pred_fallthru
    _
  // Predicated region
  $region14: #{rel_learnable_encoder_layer.4} parent=0 // pred_check
    _
  $region15: #{rel_learnable_encoder_layer.4} parent=0 // pred_check_branch
    %94 = sbr.rel (0) target = $region17
  $region16: #{rel_learnable_encoder_layer.4} parent=0 // pred_region
    _
  $region17: #{rel_learnable_encoder_layer.4} parent=0 // pred_fallthru
    _

// kernel: rel_learnable_encoder_layer.5
$region0: #{rel_learnable_encoder_layer.5}
  #allocation0 [shape = 'u32[]', space=smem, size = 0x4, offset = 0x4, fixed_abs, tag = 'smem constant byte address 0x4 - core index']
  #allocation1 [shape = 'u32[144,128]{1,0:T(1,128)}', space=vmem, size = 0x12000, scoped, tag = 'internal scratch']
  %s0 = inlined_call_operand.vmem [shape: bf16[8,32], index: 0, kind: input, shape index: {}]
  %s1 = inlined_call_operand.vmem [shape: bf16[32,32], index: 1, kind: input, shape index: {}]
  %s2 = inlined_call_operand.vmem [shape: bf16[8,32], index: 2, kind: output, shape index: {}]
  %s3 = sld [smem:[#allocation0]]
  $region18: #{rel_learnable_encoder_layer.5} parent=0
    _
  %s5 = ssub.s32 1, %s3
  %s6 = scalar_select 0, %s5, %s3
  // Predicated region
  $region2: #{rel_learnable_encoder_layer.5} parent=0 // pred_check
    _
  $region3: #{rel_learnable_encoder_layer.5} parent=0 // pred_check_branch
    %8 = sbr.rel (0) target = $region5
  $region4: #{rel_learnable_encoder_layer.5} parent=0 // pred_region
    _
  $region5: #{rel_learnable_encoder_layer.5} parent=0 // pred_fallthru
    _
  // Predicated region
  $region6: #{rel_learnable_encoder_layer.5} parent=0 // pred_check
    _
  $region7: #{rel_learnable_encoder_layer.5} parent=0 // pred_check_branch
    %10 = sbr.rel (0) target = $region9
  $region8: #{rel_learnable_encoder_layer.5} parent=0 // pred_region
    _
  $region9: #{rel_learnable_encoder_layer.5} parent=0 // pred_fallthru
    _
  %v12 = vld [vmem:[%s0] sm:$0xf]
  %v13 = vld [vmem:[%s1] sm:$0xf]
  %v14 = vld [vmem:[%s1 + $0x4] sm:$0xf]
  %v15 = vld [vmem:[%s1 + $0x8] sm:$0xf]
  %v16 = vld [vmem:[%s1 + $0xc] sm:$0xf]
  %v21 = vunpack.c.l.b16 %v13
  %v22 = vunpack.c.l.b16 %v14
  %v23 = vunpack.c.l.b16 %v15
  %v24 = vunpack.c.l.b16 %v16
  %v25 = vpack.c.b16 %v22, %v21
  %v26 = vpack.c.b16 %v24, %v23
  %vm29 = vcmask 261120
  %v31 = vsel %vm29, %v12, 0
  %33 = vmatprep.subr.bf16.mxu0 0
  %34 = vmatpush1.bf16.msra.mxu0 0
  %35 = vmatprep.subr.bf16.mxu0 0
  %36 = vmatpush1.bf16.msra.mxu0 0
  %37 = vmatprep.subr.bf16.mxu0 0
  %38 = vmatpush1.bf16.msra.mxu0 0
  %39 = vmatprep.subr.bf16.mxu0 0
  %40 = vmatpush1.bf16.msra.mxu0 0
  %41 = vmatprep.subr.bf16.mxu0 0
  %42 = vmatpush1.bf16.msra.mxu0 0
  %43 = vmatprep.subr.bf16.mxu0 0
  %44 = vmatpush1.bf16.msra.mxu0 0
  %45 = vmatprep.subr.bf16.mxu0 0
  %46 = vmatpush1.bf16.msra.mxu0 %v26
  %47 = vmatprep.subr.bf16.mxu0 0
  %48 = vmatpush1.bf16.msra.mxu0 %v25
  %49 = vmatprep.subr.bf16.mxu0 0
  %50 = vmatpush2.bf16.msra.mxu0 0
  %51 = vmatprep.subr.bf16.mxu0 0
  %52 = vmatpush2.bf16.msra.mxu0 0
  %53 = vmatprep.subr.bf16.mxu0 0
  %54 = vmatpush2.bf16.msra.mxu0 0
  %55 = vmatprep.subr.bf16.mxu0 0
  %56 = vmatpush2.bf16.msra.mxu0 0
  %57 = vmatprep.subr.bf16.mxu0 0
  %58 = vmatpush2.bf16.msra.mxu0 0
  %59 = vmatprep.subr.bf16.mxu0 0
  %60 = vmatpush2.bf16.msra.mxu0 0
  %61 = vmatprep.subr.bf16.mxu0 0
  %62 = vmatpush2.bf16.msra.mxu0 0
  %63 = vmatprep.subr.bf16.mxu0 0
  %64 = vmatpush2.bf16.msra.mxu0 0
  %65 = vmatprep.mubr.bf16.mxu0 0
  %66 = vmatmul.mubr.bf16.gmra.mxu0 %v31
  %v67 = vpop.f32.mrf.mxu0
  %v68 = vadd.f32 0.0, %v67
  %v69 = vpop.f32.mrf.mxu0
  %v70 = vpop.f32.mrf.mxu0
  %v71 = vpop.f32.mrf.mxu0
  %72 = vdwg.mxu0
  %v73 = vpack.c.bf16 %v68, %v68
  %vm74 = vcmask 257024
  %75 = vst.msk [vmem:[%s2] sm:$0xf] %vm74, %v73
  // Predicated region
  $region10: #{rel_learnable_encoder_layer.5} parent=0 // pred_check
    _
  $region11: #{rel_learnable_encoder_layer.5} parent=0 // pred_check_branch
    %77 = sbr.rel (0) target = $region13
  $region12: #{rel_learnable_encoder_layer.5} parent=0 // pred_region
    _
  $region13: #{rel_learnable_encoder_layer.5} parent=0 // pred_fallthru
    _
  // Predicated region
  $region14: #{rel_learnable_encoder_layer.5} parent=0 // pred_check
    _
  $region15: #{rel_learnable_encoder_layer.5} parent=0 // pred_check_branch
    %79 = sbr.rel (0) target = $region17
  $region16: #{rel_learnable_encoder_layer.5} parent=0 // pred_region
    _
  $region17: #{rel_learnable_encoder_layer.5} parent=0 // pred_fallthru
    _

// kernel: rel_learnable_encoder_layer.7
$region0: #{rel_learnable_encoder_layer.7}
  #allocation0 [shape = 'u32[]', space=smem, size = 0x4, offset = 0x4, fixed_abs, tag = 'smem constant byte address 0x4 - core index']
  #allocation1 [shape = 'u32[144,128]{1,0:T(1,128)}', space=vmem, size = 0x12000, scoped, tag = 'internal scratch']
  %s0 = inlined_call_operand.vmem [shape: bf16[16,32], index: 0, kind: input, shape index: {}]
  %s1 = inlined_call_operand.vmem [shape: f32[16,32], index: 1, kind: input, shape index: {}]
  %s2 = inlined_call_operand.vmem [shape: bf16[32,32], index: 2, kind: input, shape index: {}]
  %s3 = inlined_call_operand.vmem [shape: f32[1,32], index: 3, kind: input, shape index: {}]
  %s4 = inlined_call_operand.vmem [shape: f32[1,32], index: 4, kind: input, shape index: {}]
  %s5 = inlined_call_operand.vmem [shape: bf16[32,64], index: 5, kind: input, shape index: {}]
  %s6 = inlined_call_operand.vmem [shape: f32[1,64], index: 6, kind: input, shape index: {}]
  %s7 = inlined_call_operand.vmem [shape: bf16[64,32], index: 7, kind: input, shape index: {}]
  %s8 = inlined_call_operand.vmem [shape: f32[1,32], index: 8, kind: input, shape index: {}]
  %s9 = inlined_call_operand.vmem [shape: f32[1,32], index: 9, kind: input, shape index: {}]
  %s10 = inlined_call_operand.vmem [shape: f32[1,32], index: 10, kind: input, shape index: {}]
  %s11 = inlined_call_operand.vmem [shape: bf16[32,64], index: 11, kind: input, shape index: {}]
  %s12 = inlined_call_operand.vmem [shape: f32[1,64], index: 12, kind: input, shape index: {}]
  %s13 = inlined_call_operand.vmem [shape: bf16[64,32], index: 13, kind: input, shape index: {}]
  %s14 = inlined_call_operand.vmem [shape: f32[1,32], index: 14, kind: input, shape index: {}]
  %s15 = inlined_call_operand.vmem [shape: f32[1,32], index: 15, kind: input, shape index: {}]
  %s16 = inlined_call_operand.vmem [shape: f32[1,32], index: 16, kind: input, shape index: {}]
  %s17 = inlined_call_operand.vmem [shape: f32[16,32], index: 17, kind: output, shape index: {}]
  %s18 = sld [smem:[#allocation0]]
  $region78: #{rel_learnable_encoder_layer.7} parent=0
    _
  %s20 = ssub.s32 1, %s18
  %s21 = scalar_select 0, %s20, %s18
  // Predicated region
  $region2: #{rel_learnable_encoder_layer.7} parent=0 // pred_check
    _
  $region3: #{rel_learnable_encoder_layer.7} parent=0 // pred_check_branch
    %23 = sbr.rel (0) target = $region5
  $region4: #{rel_learnable_encoder_layer.7} parent=0 // pred_region
    _
  $region5: #{rel_learnable_encoder_layer.7} parent=0 // pred_fallthru
    _
  // Predicated region
  $region6: #{rel_learnable_encoder_layer.7} parent=0 // pred_check
    _
  $region7: #{rel_learnable_encoder_layer.7} parent=0 // pred_check_branch
    %25 = sbr.rel (0) target = $region9
  $region8: #{rel_learnable_encoder_layer.7} parent=0 // pred_region
    _
  $region9: #{rel_learnable_encoder_layer.7} parent=0 // pred_fallthru
    _
  // Predicated region
  $region10: #{rel_learnable_encoder_layer.7} parent=0 // pred_check
    _
  $region11: #{rel_learnable_encoder_layer.7} parent=0 // pred_check_branch
    %27 = sbr.rel (0) target = $region13
  $region12: #{rel_learnable_encoder_layer.7} parent=0 // pred_region
    _
  $region13: #{rel_learnable_encoder_layer.7} parent=0 // pred_fallthru
    _
  // Predicated region
  $region14: #{rel_learnable_encoder_layer.7} parent=0 // pred_check
    _
  $region15: #{rel_learnable_encoder_layer.7} parent=0 // pred_check_branch
    %29 = sbr.rel (0) target = $region17
  $region16: #{rel_learnable_encoder_layer.7} parent=0 // pred_region
    _
  $region17: #{rel_learnable_encoder_layer.7} parent=0 // pred_fallthru
    _
  // Predicated region
  $region18: #{rel_learnable_encoder_layer.7} parent=0 // pred_check
    _
  $region19: #{rel_learnable_encoder_layer.7} parent=0 // pred_check_branch
    %31 = sbr.rel (0) target = $region21
  $region20: #{rel_learnable_encoder_layer.7} parent=0 // pred_region
    _
  $region21: #{rel_learnable_encoder_layer.7} parent=0 // pred_fallthru
    _
  // Predicated region
  $region22: #{rel_learnable_encoder_layer.7} parent=0 // pred_check
    _
  $region23: #{rel_learnable_encoder_layer.7} parent=0 // pred_check_branch
    %33 = sbr.rel (0) target = $region25
  $region24: #{rel_learnable_encoder_layer.7} parent=0 // pred_region
    _
  $region25: #{rel_learnable_encoder_layer.7} parent=0 // pred_fallthru
    _
  // Predicated region
  $region26: #{rel_learnable_encoder_layer.7} parent=0 // pred_check
    _
  $region27: #{rel_learnable_encoder_layer.7} parent=0 // pred_check_branch
    %35 = sbr.rel (0) target = $region29
  $region28: #{rel_learnable_encoder_layer.7} parent=0 // pred_region
    _
  $region29: #{rel_learnable_encoder_layer.7} parent=0 // pred_fallthru
    _
  // Predicated region
  $region30: #{rel_learnable_encoder_layer.7} parent=0 // pred_check
    _
  $region31: #{rel_learnable_encoder_layer.7} parent=0 // pred_check_branch
    %37 = sbr.rel (0) target = $region33
  $region32: #{rel_learnable_encoder_layer.7} parent=0 // pred_region
    _
  $region33: #{rel_learnable_encoder_layer.7} parent=0 // pred_fallthru
    _
  // Predicated region
  $region34: #{rel_learnable_encoder_layer.7} parent=0 // pred_check
    _
  $region35: #{rel_learnable_encoder_layer.7} parent=0 // pred_check_branch
    %39 = sbr.rel (0) target = $region37
  $region36: #{rel_learnable_encoder_layer.7} parent=0 // pred_region
    _
  $region37: #{rel_learnable_encoder_layer.7} parent=0 // pred_fallthru
    _
  // Predicated region
  $region38: #{rel_learnable_encoder_layer.7} parent=0 // pred_check
    _
  $region39: #{rel_learnable_encoder_layer.7} parent=0 // pred_check_branch
    %41 = sbr.rel (0) target = $region41
  $region40: #{rel_learnable_encoder_layer.7} parent=0 // pred_region
    _
  $region41: #{rel_learnable_encoder_layer.7} parent=0 // pred_fallthru
    _
  // Predicated region
  $region42: #{rel_learnable_encoder_layer.7} parent=0 // pred_check
    _
  $region43: #{rel_learnable_encoder_layer.7} parent=0 // pred_check_branch
    %43 = sbr.rel (0) target = $region45
  $region44: #{rel_learnable_encoder_layer.7} parent=0 // pred_region
    _
  $region45: #{rel_learnable_encoder_layer.7} parent=0 // pred_fallthru
    _
  // Predicated region
  $region46: #{rel_learnable_encoder_layer.7} parent=0 // pred_check
    _
  $region47: #{rel_learnable_encoder_layer.7} parent=0 // pred_check_branch
    %45 = sbr.rel (0) target = $region49
  $region48: #{rel_learnable_encoder_layer.7} parent=0 // pred_region
    _
  $region49: #{rel_learnable_encoder_layer.7} parent=0 // pred_fallthru
    _
  // Predicated region
  $region50: #{rel_learnable_encoder_layer.7} parent=0 // pred_check
    _
  $region51: #{rel_learnable_encoder_layer.7} parent=0 // pred_check_branch
    %47 = sbr.rel (0) target = $region53
  $region52: #{rel_learnable_encoder_layer.7} parent=0 // pred_region
    _
  $region53: #{rel_learnable_encoder_layer.7} parent=0 // pred_fallthru
    _
  // Predicated region
  $region54: #{rel_learnable_encoder_layer.7} parent=0 // pred_check
    _
  $region55: #{rel_learnable_encoder_layer.7} parent=0 // pred_check_branch
    %49 = sbr.rel (0) target = $region57
  $region56: #{rel_learnable_encoder_layer.7} parent=0 // pred_region
    _
  $region57: #{rel_learnable_encoder_layer.7} parent=0 // pred_fallthru
    _
  // Predicated region
  $region58: #{rel_learnable_encoder_layer.7} parent=0 // pred_check
    _
  $region59: #{rel_learnable_encoder_layer.7} parent=0 // pred_check_branch
    %51 = sbr.rel (0) target = $region61
  $region60: #{rel_learnable_encoder_layer.7} parent=0 // pred_region
    _
  $region61: #{rel_learnable_encoder_layer.7} parent=0 // pred_fallthru
    _
  // Predicated region
  $region62: #{rel_learnable_encoder_layer.7} parent=0 // pred_check
    _
  $region63: #{rel_learnable_encoder_layer.7} parent=0 // pred_check_branch
    %53 = sbr.rel (0) target = $region65
  $region64: #{rel_learnable_encoder_layer.7} parent=0 // pred_region
    _
  $region65: #{rel_learnable_encoder_layer.7} parent=0 // pred_fallthru
    _
  // Predicated region
  $region66: #{rel_learnable_encoder_layer.7} parent=0 // pred_check
    _
  $region67: #{rel_learnable_encoder_layer.7} parent=0 // pred_check_branch
    %55 = sbr.rel (0) target = $region69
  $region68: #{rel_learnable_encoder_layer.7} parent=0 // pred_region
    _
  $region69: #{rel_learnable_encoder_layer.7} parent=0 // pred_fallthru
    _
  %v57 = vld [vmem:[%s1] sm:$0xff]
  %v58 = vld [vmem:[%s1 + $0x8] sm:$0xff]
  %v59 = vld [vmem:[%s0] sm:$0xf]
  %v60 = vld [vmem:[%s0 + $0x4] sm:$0xf]
  %v61 = vld [vmem:[%s2] sm:$0xf]
  %v62 = vld [vmem:[%s2 + $0x4] sm:$0xf]
  %v63 = vld [vmem:[%s2 + $0x8] sm:$0xf]
  %v64 = vld [vmem:[%s2 + $0xc] sm:$0xf]
  %v67 = vunpack.c.l.b16 %v59
  %v68 = vunpack.c.l.b16 %v60
  %v69 = vpack.c.b16 %v68, %v67
  %v74 = vunpack.c.l.b16 %v61
  %v75 = vunpack.c.l.b16 %v62
  %v76 = vunpack.c.l.b16 %v63
  %v77 = vunpack.c.l.b16 %v64
  %v78 = vpack.c.b16 %v75, %v74
  %v79 = vpack.c.b16 %v77, %v76
  %vm82 = vcmask 261120
  %v84 = vsel %vm82, %v69, 0
  %86 = vmatprep.subr.bf16.mxu0 0
  %87 = vmatpush1.bf16.msra.mxu0 0
  %88 = vmatprep.subr.bf16.mxu0 0
  %89 = vmatpush1.bf16.msra.mxu0 0
  %90 = vmatprep.subr.bf16.mxu0 0
  %91 = vmatpush1.bf16.msra.mxu0 0
  %92 = vmatprep.subr.bf16.mxu0 0
  %93 = vmatpush1.bf16.msra.mxu0 0
  %94 = vmatprep.subr.bf16.mxu0 0
  %95 = vmatpush1.bf16.msra.mxu0 0
  %96 = vmatprep.subr.bf16.mxu0 0
  %97 = vmatpush1.bf16.msra.mxu0 0
  %98 = vmatprep.subr.bf16.mxu0 0
  %99 = vmatpush1.bf16.msra.mxu0 %v79
  %100 = vmatprep.subr.bf16.mxu0 0
  %101 = vmatpush1.bf16.msra.mxu0 %v78
  %102 = vmatprep.subr.bf16.mxu0 0
  %103 = vmatpush2.bf16.msra.mxu0 0
  %104 = vmatprep.subr.bf16.mxu0 0
  %105 = vmatpush2.bf16.msra.mxu0 0
  %106 = vmatprep.subr.bf16.mxu0 0
  %107 = vmatpush2.bf16.msra.mxu0 0
  %108 = vmatprep.subr.bf16.mxu0 0
  %109 = vmatpush2.bf16.msra.mxu0 0
  %110 = vmatprep.subr.bf16.mxu0 0
  %111 = vmatpush2.bf16.msra.mxu0 0
  %112 = vmatprep.subr.bf16.mxu0 0
  %113 = vmatpush2.bf16.msra.mxu0 0
  %114 = vmatprep.subr.bf16.mxu0 0
  %115 = vmatpush2.bf16.msra.mxu0 0
  %116 = vmatprep.subr.bf16.mxu0 0
  %117 = vmatpush2.bf16.msra.mxu0 0
  %118 = vmatprep.mubr.bf16.mxu0 0
  %119 = vmatmul.mubr.bf16.gmra.mxu0 %v84
  %v120 = vpop.f32.mrf.mxu0
  %v121 = vadd.f32 0.0, %v120
  %v122 = vpop.f32.mrf.mxu0
  %v123 = vpop.f32.mrf.mxu0
  %v124 = vadd.f32 0.0, %v123
  %v125 = vpop.f32.mrf.mxu0
  %126 = vdwg.mxu0
  %v127 = vadd.f32 %v57, %v121
  %v128 = vadd.f32 %v58, %v124
  %v129 = vld [vmem:[%s3] sm:$0x1]
  %v130 = vld [vmem:[%s4] sm:$0x1]
  %v131 = vsel %vm82, %v127, 0.0
  %132 = vadd.xlane.f32.xlu0 %v131
  %v133 = vpop.xlane.xlu0 %132
  %v134 = vsel %vm82, %v128, 0.0
  %135 = vadd.xlane.f32.xlu0 %v134
  %v136 = vpop.xlane.xlu0 %135
  %v137 = vrcp.pop 32.0
  %v138 = vmul.f32 %v133, %v137
  %v139 = vmul.f32 %v136, %v137
  %v140 = vsub.f32 %v127, %v138
  %v141 = vsub.f32 %v128, %v139
  %v142 = vmul.f32 %v140, %v140
  %v143 = vmul.f32 %v141, %v141
  %v144 = vsel %vm82, %v142, 0.0
  %145 = vadd.xlane.f32.xlu0 %v144
  %v146 = vpop.xlane.xlu0 %145
  %v147 = vsel %vm82, %v143, 0.0
  %148 = vadd.xlane.f32.xlu0 %v147
  %v149 = vpop.xlane.xlu0 %148
  %v150 = vmul.f32 %v146, %v137
  %v151 = vmul.f32 %v149, %v137
  %v152 = vadd.f32 %v150, 1e-05
  %v153 = vadd.f32 %v151, 1e-05
  %v154 = vrsqrt.pop %v152
  %v155 = vrsqrt.pop %v153
  %v156 = vmul.f32 %v140, %v154
  %v157 = vmul.f32 %v141, %v155
  %v159 = vlaneseq
  %v160 = vshrl.u32 %v159, 7
  %v161 = vsub.s32 0, %v160
  %v162 = vrot.slane %v129, %v161
  %v164 = vmul.f32 %v156, %v162
  %v165 = vmul.f32 %v157, %v162
  %v167 = vlaneseq
  %v168 = vshrl.u32 %v167, 7
  %v169 = vsub.s32 0, %v168
  %v170 = vrot.slane %v130, %v169
  %v172 = vadd.f32 %v164, %v170
  %v173 = vadd.f32 %v165, %v170
  %v174 = vpack.c.bf16 %v173, %v172
  %v175 = vld [vmem:[%s5] sm:$0xf]
  %v176 = vld [vmem:[%s5 + $0x4] sm:$0xf]
  %v177 = vld [vmem:[%s5 + $0x8] sm:$0xf]
  %v178 = vld [vmem:[%s5 + $0xc] sm:$0xf]
  %v179 = vld [vmem:[%s6] sm:$0x1]
  %v181 = vlaneseq
  %v182 = vshrl.u32 %v181, 7
  %v183 = vsub.s32 0, %v182
  %v184 = vrot.slane %v179, %v183
  %v190 = vunpack.c.l.b16 %v175
  %v191 = vunpack.c.l.b16 %v176
  %v192 = vunpack.c.l.b16 %v177
  %v193 = vunpack.c.l.b16 %v178
  %v194 = vpack.c.b16 %v191, %v190
  %v195 = vpack.c.b16 %v193, %v192
  %v199 = vsel %vm82, %v174, 0
  %201 = vmatprep.subr.bf16.mxu0 0
  %202 = vmatpush1.bf16.msra.mxu0 0
  %203 = vmatprep.subr.bf16.mxu0 0
  %204 = vmatpush1.bf16.msra.mxu0 0
  %205 = vmatprep.subr.bf16.mxu0 0
  %206 = vmatpush1.bf16.msra.mxu0 0
  %207 = vmatprep.subr.bf16.mxu0 0
  %208 = vmatpush1.bf16.msra.mxu0 0
  %209 = vmatprep.subr.bf16.mxu0 0
  %210 = vmatpush1.bf16.msra.mxu0 0
  %211 = vmatprep.subr.bf16.mxu0 0
  %212 = vmatpush1.bf16.msra.mxu0 0
  %213 = vmatprep.subr.bf16.mxu0 0
  %214 = vmatpush1.bf16.msra.mxu0 %v195
  %215 = vmatprep.subr.bf16.mxu0 0
  %216 = vmatpush1.bf16.msra.mxu0 %v194
  %217 = vmatprep.subr.bf16.mxu0 0
  %218 = vmatpush2.bf16.msra.mxu0 0
  %219 = vmatprep.subr.bf16.mxu0 0
  %220 = vmatpush2.bf16.msra.mxu0 0
  %221 = vmatprep.subr.bf16.mxu0 0
  %222 = vmatpush2.bf16.msra.mxu0 0
  %223 = vmatprep.subr.bf16.mxu0 0
  %224 = vmatpush2.bf16.msra.mxu0 0
  %225 = vmatprep.subr.bf16.mxu0 0
  %226 = vmatpush2.bf16.msra.mxu0 0
  %227 = vmatprep.subr.bf16.mxu0 0
  %228 = vmatpush2.bf16.msra.mxu0 0
  %229 = vmatprep.subr.bf16.mxu0 0
  %230 = vmatpush2.bf16.msra.mxu0 0
  %231 = vmatprep.subr.bf16.mxu0 0
  %232 = vmatpush2.bf16.msra.mxu0 0
  %233 = vmatprep.mubr.bf16.mxu0 0
  %234 = vmatmul.mubr.bf16.gmra.mxu0 %v199
  %v235 = vpop.f32.mrf.mxu0
  %v236 = vadd.f32 %v184, %v235
  %v237 = vpop.f32.mrf.mxu0
  %v238 = vpop.f32.mrf.mxu0
  %v239 = vadd.f32 %v184, %v238
  %v240 = vpop.f32.mrf.mxu0
  %241 = vdwg.mxu0
  %v242 = vmax.f32 %v236, 0.0
  %v243 = vmax.f32 %v239, 0.0
  %v244 = vpack.c.bf16 %v243, %v242
  %v245 = vld [vmem:[%s7] sm:$0xf]
  %v246 = vld [vmem:[%s7 + $0x4] sm:$0xf]
  %v247 = vld [vmem:[%s7 + $0x8] sm:$0xf]
  %v248 = vld [vmem:[%s7 + $0xc] sm:$0xf]
  %v249 = vld [vmem:[%s7 + $0x10] sm:$0xf]
  %v250 = vld [vmem:[%s7 + $0x14] sm:$0xf]
  %v251 = vld [vmem:[%s7 + $0x18] sm:$0xf]
  %v252 = vld [vmem:[%s7 + $0x1c] sm:$0xf]
  %v261 = vunpack.c.l.b16 %v245
  %v262 = vunpack.c.l.b16 %v246
  %v263 = vunpack.c.l.b16 %v247
  %v264 = vunpack.c.l.b16 %v248
  %v265 = vunpack.c.l.b16 %v249
  %v266 = vunpack.c.l.b16 %v250
  %v267 = vunpack.c.l.b16 %v251
  %v268 = vunpack.c.l.b16 %v252
  %v269 = vpack.c.b16 %v262, %v261
  %v270 = vpack.c.b16 %v264, %v263
  %v271 = vpack.c.b16 %v266, %v265
  %v272 = vpack.c.b16 %v268, %v267
  %vm277 = vcmask 523264
  %v279 = vsel %vm277, %v244, 0
  %281 = vmatprep.subr.bf16.mxu0 0
  %282 = vmatpush1.bf16.msra.mxu0 0
  %283 = vmatprep.subr.bf16.mxu0 0
  %284 = vmatpush1.bf16.msra.mxu0 0
  %285 = vmatprep.subr.bf16.mxu0 0
  %286 = vmatpush1.bf16.msra.mxu0 0
  %287 = vmatprep.subr.bf16.mxu0 0
  %288 = vmatpush1.bf16.msra.mxu0 0
  %289 = vmatprep.subr.bf16.mxu0 0
  %290 = vmatpush1.bf16.msra.mxu0 %v272
  %291 = vmatprep.subr.bf16.mxu0 0
  %292 = vmatpush1.bf16.msra.mxu0 %v271
  %293 = vmatprep.subr.bf16.mxu0 0
  %294 = vmatpush1.bf16.msra.mxu0 %v270
  %295 = vmatprep.subr.bf16.mxu0 0
  %296 = vmatpush1.bf16.msra.mxu0 %v269
  %297 = vmatprep.subr.bf16.mxu0 0
  %298 = vmatpush2.bf16.msra.mxu0 0
  %299 = vmatprep.subr.bf16.mxu0 0
  %300 = vmatpush2.bf16.msra.mxu0 0
  %301 = vmatprep.subr.bf16.mxu0 0
  %302 = vmatpush2.bf16.msra.mxu0 0
  %303 = vmatprep.subr.bf16.mxu0 0
  %304 = vmatpush2.bf16.msra.mxu0 0
  %305 = vmatprep.subr.bf16.mxu0 0
  %306 = vmatpush2.bf16.msra.mxu0 0
  %307 = vmatprep.subr.bf16.mxu0 0
  %308 = vmatpush2.bf16.msra.mxu0 0
  %309 = vmatprep.subr.bf16.mxu0 0
  %310 = vmatpush2.bf16.msra.mxu0 0
  %311 = vmatprep.subr.bf16.mxu0 0
  %312 = vmatpush2.bf16.msra.mxu0 0
  %313 = vmatprep.mubr.bf16.mxu0 0
  %314 = vmatmul.mubr.bf16.gmra.mxu0 %v279
  %v315 = vpop.f32.mrf.mxu0
  %v316 = vadd.f32 0.0, %v315
  %v317 = vpop.f32.mrf.mxu0
  %v318 = vpop.f32.mrf.mxu0
  %v319 = vadd.f32 0.0, %v318
  %v320 = vpop.f32.mrf.mxu0
  %321 = vdwg.mxu0
  %v322 = vadd.f32 %v172, %v316
  %v323 = vadd.f32 %v173, %v319
  %v324 = vld [vmem:[%s8] sm:$0x1]
  %v326 = vlaneseq
  %v327 = vshrl.u32 %v326, 7
  %v328 = vsub.s32 0, %v327
  %v329 = vrot.slane %v324, %v328
  %v331 = vadd.f32 %v322, %v329
  %v332 = vadd.f32 %v323, %v329
  %v333 = vld [vmem:[%s9] sm:$0x1]
  %v334 = vld [vmem:[%s10] sm:$0x1]
  %v335 = vsel %vm82, %v331, 0.0
  %336 = vadd.xlane.f32.xlu0 %v335
  %v337 = vpop.xlane.xlu0 %336
  %v338 = vsel %vm82, %v332, 0.0
  %339 = vadd.xlane.f32.xlu0 %v338
  %v340 = vpop.xlane.xlu0 %339
  %v341 = vmul.f32 %v337, %v137
  %v342 = vmul.f32 %v340, %v137
  %v343 = vsub.f32 %v331, %v341
  %v344 = vsub.f32 %v332, %v342
  %v345 = vmul.f32 %v343, %v343
  %v346 = vmul.f32 %v344, %v344
  %v347 = vsel %vm82, %v345, 0.0
  %348 = vadd.xlane.f32.xlu0 %v347
  %v349 = vpop.xlane.xlu0 %348
  %v350 = vsel %vm82, %v346, 0.0
  %351 = vadd.xlane.f32.xlu0 %v350
  %v352 = vpop.xlane.xlu0 %351
  %v353 = vmul.f32 %v349, %v137
  %v354 = vmul.f32 %v352, %v137
  %v355 = vadd.f32 %v353, 1e-05
  %v356 = vadd.f32 %v354, 1e-05
  %v357 = vrsqrt.pop %v355
  %v358 = vrsqrt.pop %v356
  %v359 = vmul.f32 %v343, %v357
  %v360 = vmul.f32 %v344, %v358
  %v362 = vlaneseq
  %v363 = vshrl.u32 %v362, 7
  %v364 = vsub.s32 0, %v363
  %v365 = vrot.slane %v333, %v364
  %v367 = vmul.f32 %v359, %v365
  %v368 = vmul.f32 %v360, %v365
  %v370 = vlaneseq
  %v371 = vshrl.u32 %v370, 7
  %v372 = vsub.s32 0, %v371
  %v373 = vrot.slane %v334, %v372
  %v375 = vadd.f32 %v367, %v373
  %v376 = vadd.f32 %v368, %v373
  %v377 = vpack.c.bf16 %v376, %v375
  %v378 = vld [vmem:[%s11] sm:$0xf]
  %v379 = vld [vmem:[%s11 + $0x4] sm:$0xf]
  %v380 = vld [vmem:[%s11 + $0x8] sm:$0xf]
  %v381 = vld [vmem:[%s11 + $0xc] sm:$0xf]
  %v382 = vld [vmem:[%s12] sm:$0x1]
  %v384 = vlaneseq
  %v385 = vshrl.u32 %v384, 7
  %v386 = vsub.s32 0, %v385
  %v387 = vrot.slane %v382, %v386
  %v393 = vunpack.c.l.b16 %v378
  %v394 = vunpack.c.l.b16 %v379
  %v395 = vunpack.c.l.b16 %v380
  %v396 = vunpack.c.l.b16 %v381
  %v397 = vpack.c.b16 %v394, %v393
  %v398 = vpack.c.b16 %v396, %v395
  %v402 = vsel %vm82, %v377, 0
  %404 = vmatprep.subr.bf16.mxu0 0
  %405 = vmatpush1.bf16.msra.mxu0 0
  %406 = vmatprep.subr.bf16.mxu0 0
  %407 = vmatpush1.bf16.msra.mxu0 0
  %408 = vmatprep.subr.bf16.mxu0 0
  %409 = vmatpush1.bf16.msra.mxu0 0
  %410 = vmatprep.subr.bf16.mxu0 0
  %411 = vmatpush1.bf16.msra.mxu0 0
  %412 = vmatprep.subr.bf16.mxu0 0
  %413 = vmatpush1.bf16.msra.mxu0 0
  %414 = vmatprep.subr.bf16.mxu0 0
  %415 = vmatpush1.bf16.msra.mxu0 0
  %416 = vmatprep.subr.bf16.mxu0 0
  %417 = vmatpush1.bf16.msra.mxu0 %v398
  %418 = vmatprep.subr.bf16.mxu0 0
  %419 = vmatpush1.bf16.msra.mxu0 %v397
  %420 = vmatprep.subr.bf16.mxu0 0
  %421 = vmatpush2.bf16.msra.mxu0 0
  %422 = vmatprep.subr.bf16.mxu0 0
  %423 = vmatpush2.bf16.msra.mxu0 0
  %424 = vmatprep.subr.bf16.mxu0 0
  %425 = vmatpush2.bf16.msra.mxu0 0
  %426 = vmatprep.subr.bf16.mxu0 0
  %427 = vmatpush2.bf16.msra.mxu0 0
  %428 = vmatprep.subr.bf16.mxu0 0
  %429 = vmatpush2.bf16.msra.mxu0 0
  %430 = vmatprep.subr.bf16.mxu0 0
  %431 = vmatpush2.bf16.msra.mxu0 0
  %432 = vmatprep.subr.bf16.mxu0 0
  %433 = vmatpush2.bf16.msra.mxu0 0
  %434 = vmatprep.subr.bf16.mxu0 0
  %435 = vmatpush2.bf16.msra.mxu0 0
  %436 = vmatprep.mubr.bf16.mxu0 0
  %437 = vmatmul.mubr.bf16.gmra.mxu0 %v402
  %v438 = vpop.f32.mrf.mxu0
  %v439 = vadd.f32 %v387, %v438
  %v440 = vpop.f32.mrf.mxu0
  %v441 = vpop.f32.mrf.mxu0
  %v442 = vadd.f32 %v387, %v441
  %v443 = vpop.f32.mrf.mxu0
  %444 = vdwg.mxu0
  %v445 = vmax.f32 %v439, 0.0
  %v446 = vmax.f32 %v442, 0.0
  %v447 = vpack.c.bf16 %v446, %v445
  %v448 = vld [vmem:[%s13] sm:$0xf]
  %v449 = vld [vmem:[%s13 + $0x4] sm:$0xf]
  %v450 = vld [vmem:[%s13 + $0x8] sm:$0xf]
  %v451 = vld [vmem:[%s13 + $0xc] sm:$0xf]
  %v452 = vld [vmem:[%s13 + $0x10] sm:$0xf]
  %v453 = vld [vmem:[%s13 + $0x14] sm:$0xf]
  %v454 = vld [vmem:[%s13 + $0x18] sm:$0xf]
  %v455 = vld [vmem:[%s13 + $0x1c] sm:$0xf]
  %v464 = vunpack.c.l.b16 %v448
  %v465 = vunpack.c.l.b16 %v449
  %v466 = vunpack.c.l.b16 %v450
  %v467 = vunpack.c.l.b16 %v451
  %v468 = vunpack.c.l.b16 %v452
  %v469 = vunpack.c.l.b16 %v453
  %v470 = vunpack.c.l.b16 %v454
  %v471 = vunpack.c.l.b16 %v455
  %v472 = vpack.c.b16 %v465, %v464
  %v473 = vpack.c.b16 %v467, %v466
  %v474 = vpack.c.b16 %v469, %v468
  %v475 = vpack.c.b16 %v471, %v470
  %v481 = vsel %vm277, %v447, 0
  %483 = vmatprep.subr.bf16.mxu0 0
  %484 = vmatpush1.bf16.msra.mxu0 0
  %485 = vmatprep.subr.bf16.mxu0 0
  %486 = vmatpush1.bf16.msra.mxu0 0
  %487 = vmatprep.subr.bf16.mxu0 0
  %488 = vmatpush1.bf16.msra.mxu0 0
  %489 = vmatprep.subr.bf16.mxu0 0
  %490 = vmatpush1.bf16.msra.mxu0 0
  %491 = vmatprep.subr.bf16.mxu0 0
  %492 = vmatpush1.bf16.msra.mxu0 %v475
  %493 = vmatprep.subr.bf16.mxu0 0
  %494 = vmatpush1.bf16.msra.mxu0 %v474
  %495 = vmatprep.subr.bf16.mxu0 0
  %496 = vmatpush1.bf16.msra.mxu0 %v473
  %497 = vmatprep.subr.bf16.mxu0 0
  %498 = vmatpush1.bf16.msra.mxu0 %v472
  %499 = vmatprep.subr.bf16.mxu0 0
  %500 = vmatpush2.bf16.msra.mxu0 0
  %501 = vmatprep.subr.bf16.mxu0 0
  %502 = vmatpush2.bf16.msra.mxu0 0
  %503 = vmatprep.subr.bf16.mxu0 0
  %504 = vmatpush2.bf16.msra.mxu0 0
  %505 = vmatprep.subr.bf16.mxu0 0
  %506 = vmatpush2.bf16.msra.mxu0 0
  %507 = vmatprep.subr.bf16.mxu0 0
  %508 = vmatpush2.bf16.msra.mxu0 0
  %509 = vmatprep.subr.bf16.mxu0 0
  %510 = vmatpush2.bf16.msra.mxu0 0
  %511 = vmatprep.subr.bf16.mxu0 0
  %512 = vmatpush2.bf16.msra.mxu0 0
  %513 = vmatprep.subr.bf16.mxu0 0
  %514 = vmatpush2.bf16.msra.mxu0 0
  %515 = vmatprep.mubr.bf16.mxu0 0
  %516 = vmatmul.mubr.bf16.gmra.mxu0 %v481
  %v517 = vpop.f32.mrf.mxu0
  %v518 = vadd.f32 0.0, %v517
  %v519 = vpop.f32.mrf.mxu0
  %v520 = vpop.f32.mrf.mxu0
  %v521 = vadd.f32 0.0, %v520
  %v522 = vpop.f32.mrf.mxu0
  %523 = vdwg.mxu0
  %v524 = vadd.f32 %v375, %v518
  %v525 = vadd.f32 %v376, %v521
  %v526 = vld [vmem:[%s14] sm:$0x1]
  %v528 = vlaneseq
  %v529 = vshrl.u32 %v528, 7
  %v530 = vsub.s32 0, %v529
  %v531 = vrot.slane %v526, %v530
  %v533 = vadd.f32 %v524, %v531
  %v534 = vadd.f32 %v525, %v531
  %v535 = vld [vmem:[%s15] sm:$0x1]
  %v536 = vld [vmem:[%s16] sm:$0x1]
  %v537 = vsel %vm82, %v533, 0.0
  %538 = vadd.xlane.f32.xlu0 %v537
  %v539 = vpop.xlane.xlu0 %538
  %v540 = vsel %vm82, %v534, 0.0
  %541 = vadd.xlane.f32.xlu0 %v540
  %v542 = vpop.xlane.xlu0 %541
  %v543 = vmul.f32 %v539, %v137
  %v544 = vmul.f32 %v542, %v137
  %v545 = vsub.f32 %v533, %v543
  %v546 = vsub.f32 %v534, %v544
  %v547 = vmul.f32 %v545, %v545
  %v548 = vmul.f32 %v546, %v546
  %v549 = vsel %vm82, %v547, 0.0
  %550 = vadd.xlane.f32.xlu0 %v549
  %v551 = vpop.xlane.xlu0 %550
  %v552 = vsel %vm82, %v548, 0.0
  %553 = vadd.xlane.f32.xlu0 %v552
  %v554 = vpop.xlane.xlu0 %553
  %v555 = vmul.f32 %v551, %v137
  %v556 = vmul.f32 %v554, %v137
  %v557 = vadd.f32 %v555, 1e-05
  %v558 = vadd.f32 %v556, 1e-05
  %v559 = vrsqrt.pop %v557
  %v560 = vrsqrt.pop %v558
  %v561 = vmul.f32 %v545, %v559
  %v562 = vmul.f32 %v546, %v560
  %v564 = vlaneseq
  %v565 = vshrl.u32 %v564, 7
  %v566 = vsub.s32 0, %v565
  %v567 = vrot.slane %v535, %v566
  %v569 = vmul.f32 %v561, %v567
  %v570 = vmul.f32 %v562, %v567
  %v572 = vlaneseq
  %v573 = vshrl.u32 %v572, 7
  %v574 = vsub.s32 0, %v573
  %v575 = vrot.slane %v536, %v574
  %v577 = vadd.f32 %v569, %v575
  %v578 = vadd.f32 %v570, %v575
  %579 = vst.msk [vmem:[%s17] sm:$0xff] %vm82, %v577
  %580 = vst.msk [vmem:[%s17 + $0x8] sm:$0xff] %vm82, %v578
  // Predicated region
  $region70: #{rel_learnable_encoder_layer.7} parent=0 // pred_check
    _
  $region71: #{rel_learnable_encoder_layer.7} parent=0 // pred_check_branch
    %582 = sbr.rel (0) target = $region73
  $region72: #{rel_learnable_encoder_layer.7} parent=0 // pred_region
    _
  $region73: #{rel_learnable_encoder_layer.7} parent=0 // pred_fallthru
    _
  // Predicated region
  $region74: #{rel_learnable_encoder_layer.7} parent=0 // pred_check
    _
  $region75: #{rel_learnable_encoder_layer.7} parent=0 // pred_check_branch
    %584 = sbr.rel (0) target = $region77
  $region76: #{rel_learnable_encoder_layer.7} parent=0 // pred_region
    _
  $region77: #{rel_learnable_encoder_layer.7} parent=0 // pred_fallthru
    _

// kernel: rel_learnable_encoder_layer.6
$region0: #{rel_learnable_encoder_layer.6}
  #allocation0 [shape = 'u32[]', space=smem, size = 0x4, offset = 0x4, fixed_abs, tag = 'smem constant byte address 0x4 - core index']
  #allocation1 [shape = 'u32[144,128]{1,0:T(1,128)}', space=vmem, size = 0x12000, scoped, tag = 'internal scratch']
  %s0 = inlined_call_operand.vmem [shape: bf16[2,8,96], index: 0, kind: input, shape index: {}]
  %s1 = inlined_call_operand.vmem [shape: bf16[8,32], index: 1, kind: input, shape index: {}]
  %s2 = inlined_call_operand.vmem [shape: bf16[4,8], index: 2, kind: input, shape index: {}]
  %s3 = inlined_call_operand.vmem [shape: f32[4,8], index: 3, kind: input, shape index: {}]
  %s4 = inlined_call_operand.vmem [shape: bf16[2,8,32], index: 4, kind: output, shape index: {}]
  %s5 = sld [smem:[#allocation0]]
  $region49: #{rel_learnable_encoder_layer.6} parent=0
    _
  %s7 = ssub.s32 1, %s5
  %s8 = scalar_select 0, %s7, %s5
  loop: start=0, step=1, limit=4
  $region2: #{rel_learnable_encoder_layer.6} parent=0 // loop_pre_header
    _
  $region3: #{rel_learnable_encoder_layer.6} parent=0 // loop_header
    %s10 = sphi 0, %s14
    %p11 = scmp.ge.s32.totalorder %s10, 4
    %s20 = sphi 0, %s22
    %s23 = sphi 0, %s20
    %s24 = sphi 0, %s23
    %s40 = sphi 0, %s24
    %s44 = sphi 0, %s44
    %s46 = sphi 0, %s44
    %s47 = sphi 0, %s46
    %s61 = sphi 0, %s47
    %s65 = sphi 0, %s65
    %s67 = sphi 0, %s65
    %s68 = sphi 0, %s67
    %s82 = sphi 0, %s68
    %s86 = sphi 0, %s86
    %s88 = sphi 0, %s86
    %s89 = sphi 0, %s88
    %s103 = sphi 0, %s89
    %s109 = sphi 0, %s111
    %s112 = sphi 0, %s109
    %s113 = sphi 0, %s112
    %s129 = sphi 0, %s113
  $region4: #{rel_learnable_encoder_layer.6} parent=0 // loop_header_branch
    %13 = sbr.rel (%p11) target = $region8
  $region5: #{rel_learnable_encoder_layer.6} parent=0 // loop_body
    %s15 = ssub.s32 %s10, 1
    %s16 = ssub.s32 %s10, 2
    %s17 = sadd.s32 %s10, 1
    %s18 = ssub.s32 %s10, %s17
    %p19 = scmp.eq.s32.totalorder %s18, 0
    %s21 = sadd.s32 %s20, 1
    %s22 = scalar_select %p19, %s20, %s21
    %p25 = pneg %p19
    %p26 = scmp.eq.s32.totalorder %s10, 1
    %p27 = por %p25, %p26
    %p28 = scmp.ne.s32.totalorder %s20, %s23
    %p29 = scmp.eq.s32.totalorder %s10, 0
    %p30 = por %p28, %p29
    %p31 = scmp.ne.s32.totalorder %s20, %s23
    %p32 = scmp.eq.s32.totalorder %s15, 1
    %p33 = por %p31, %p32
    %p34 = scmp.ne.s32.totalorder %s23, %s24
    %p35 = scmp.eq.s32.totalorder %s15, 0
    %p36 = por %p34, %p35
    %p37 = scmp.ne.s32.totalorder %s23, %s24
    %p38 = scmp.eq.s32.totalorder %s16, 1
    %p39 = por %p37, %p38
    %p41 = scmp.ne.s32.totalorder %s24, %s40
    %p42 = scmp.eq.s32.totalorder %s16, 0
    %p43 = por %p41, %p42
    %s45 = sadd.s32 %s44, 1
    %p48 = scmp.eq.s32.totalorder %s10, 1
    %p49 = scmp.ne.s32.totalorder %s44, %s46
    %p50 = scmp.eq.s32.totalorder %s10, 0
    %p51 = por %p49, %p50
    %p52 = scmp.ne.s32.totalorder %s44, %s46
    %p53 = scmp.eq.s32.totalorder %s15, 1
    %p54 = por %p52, %p53
    %p55 = scmp.ne.s32.totalorder %s46, %s47
    %p56 = scmp.eq.s32.totalorder %s15, 0
    %p57 = por %p55, %p56
    %p58 = scmp.ne.s32.totalorder %s46, %s47
    %p59 = scmp.eq.s32.totalorder %s16, 1
    %p60 = por %p58, %p59
    %p62 = scmp.ne.s32.totalorder %s47, %s61
    %p63 = scmp.eq.s32.totalorder %s16, 0
    %p64 = por %p62, %p63
    %s66 = sadd.s32 %s65, 1
    %p69 = scmp.eq.s32.totalorder %s10, 1
    %p70 = scmp.ne.s32.totalorder %s65, %s67
    %p71 = scmp.eq.s32.totalorder %s10, 0
    %p72 = por %p70, %p71
    %p73 = scmp.ne.s32.totalorder %s65, %s67
    %p74 = scmp.eq.s32.totalorder %s15, 1
    %p75 = por %p73, %p74
    %p76 = scmp.ne.s32.totalorder %s67, %s68
    %p77 = scmp.eq.s32.totalorder %s15, 0
    %p78 = por %p76, %p77
    %p79 = scmp.ne.s32.totalorder %s67, %s68
    %p80 = scmp.eq.s32.totalorder %s16, 1
    %p81 = por %p79, %p80
    %p83 = scmp.ne.s32.totalorder %s68, %s82
    %p84 = scmp.eq.s32.totalorder %s16, 0
    %p85 = por %p83, %p84
    %s87 = sadd.s32 %s86, 1
    %p90 = scmp.eq.s32.totalorder %s10, 1
    %p91 = scmp.ne.s32.totalorder %s86, %s88
    %p92 = scmp.eq.s32.totalorder %s10, 0
    %p93 = por %p91, %p92
    %p94 = scmp.ne.s32.totalorder %s86, %s88
    %p95 = scmp.eq.s32.totalorder %s15, 1
    %p96 = por %p94, %p95
    %p97 = scmp.ne.s32.totalorder %s88, %s89
    %p98 = scmp.eq.s32.totalorder %s15, 0
    %p99 = por %p97, %p98
    %p100 = scmp.ne.s32.totalorder %s88, %s89
    %p101 = scmp.eq.s32.totalorder %s16, 1
    %p102 = por %p100, %p101
    %p104 = scmp.ne.s32.totalorder %s89, %s103
    %p105 = scmp.eq.s32.totalorder %s16, 0
    %p106 = por %p104, %p105
    %s107 = ssub.s32 %s10, %s17
    %p108 = scmp.eq.s32.totalorder %s107, 0
    %s110 = sadd.s32 %s109, 1
    %s111 = scalar_select %p108, %s109, %s110
    %p114 = pneg %p108
    %p115 = scmp.eq.s32.totalorder %s10, 1
    %p116 = por %p114, %p115
    %p117 = scmp.ne.s32.totalorder %s109, %s112
    %p118 = scmp.eq.s32.totalorder %s10, 0
    %p119 = por %p117, %p118
    %p120 = scmp.ne.s32.totalorder %s109, %s112
    %p121 = scmp.eq.s32.totalorder %s15, 1
    %p122 = por %p120, %p121
    %p123 = scmp.ne.s32.totalorder %s112, %s113
    %p124 = scmp.eq.s32.totalorder %s15, 0
    %p125 = por %p123, %p124
    %p126 = scmp.ne.s32.totalorder %s112, %s113
    %p127 = scmp.eq.s32.totalorder %s16, 1
    %p128 = por %p126, %p127
    %p130 = scmp.ne.s32.totalorder %s113, %s129
    %p131 = scmp.eq.s32.totalorder %s16, 0
    %p132 = por %p130, %p131
    %p133 = scmp.le.s32.totalorder 1, %s10
    %p134 = scmp.lt.s32.totalorder %s10, 3
    %p135 = pnand %p133, %p134
    %p136 = pneg %p135
    // Predicated region
    $region9: #{rel_learnable_encoder_layer.6} parent=5 // pred_check
      _
    $region10: #{rel_learnable_encoder_layer.6} parent=5 // pred_check_branch
      %138 = sbr.rel (%p135) target = $region12
    $region11: #{rel_learnable_encoder_layer.6} parent=5 // pred_region
      %s139 = ssub.s32 %s10, 1
      // Predicated region
      $region13: #{rel_learnable_encoder_layer.6} parent=11 // pred_check
        %p140 = pneg %p57
      $region14: #{rel_learnable_encoder_layer.6} parent=11 // pred_check_branch
        %142 = sbr.rel (%p140) target = $region16
      $region15: #{rel_learnable_encoder_layer.6} parent=11 // pred_region
        _
      $region16: #{rel_learnable_encoder_layer.6} parent=11 // pred_fallthru
        _
      // Predicated region
      $region17: #{rel_learnable_encoder_layer.6} parent=11 // pred_check
        %p143 = pneg %p78
      $region18: #{rel_learnable_encoder_layer.6} parent=11 // pred_check_branch
        %145 = sbr.rel (%p143) target = $region20
      $region19: #{rel_learnable_encoder_layer.6} parent=11 // pred_region
        _
      $region20: #{rel_learnable_encoder_layer.6} parent=11 // pred_fallthru
        _
      // Predicated region
      $region21: #{rel_learnable_encoder_layer.6} parent=11 // pred_check
        %p146 = pneg %p99
      $region22: #{rel_learnable_encoder_layer.6} parent=11 // pred_check_branch
        %148 = sbr.rel (%p146) target = $region24
      $region23: #{rel_learnable_encoder_layer.6} parent=11 // pred_region
        _
      $region24: #{rel_learnable_encoder_layer.6} parent=11 // pred_fallthru
        _
    $region12: #{rel_learnable_encoder_layer.6} parent=5 // pred_fallthru
      _
    %p149 = scmp.lt.s32.totalorder %s10, 2
    // Predicated region
    $region25: #{rel_learnable_encoder_layer.6} parent=5 // pred_check
      %p150 = pneg %p149
    $region26: #{rel_learnable_encoder_layer.6} parent=5 // pred_check_branch
      %152 = sbr.rel (%p150) target = $region28
    $region27: #{rel_learnable_encoder_layer.6} parent=5 // pred_region
      // Predicated region
      $region29: #{rel_learnable_encoder_layer.6} parent=27 // pred_check
        %p153 = pneg %p30
      $region30: #{rel_learnable_encoder_layer.6} parent=27 // pred_check_branch
        %155 = sbr.rel (%p153) target = $region32
      $region31: #{rel_learnable_encoder_layer.6} parent=27 // pred_region
        %p156 = scmp.lt.s32.totalorder %s10, 1
        %s157 = scalar_select %p156, %s10, 1
        %s158 = smul.addr %s157, 4
        %s159 = scalar_lea.vmem %s0, %s158
      $region32: #{rel_learnable_encoder_layer.6} parent=27 // pred_fallthru
        _
    $region28: #{rel_learnable_encoder_layer.6} parent=5 // pred_fallthru
      _
    %p160 = scmp.le.s32.totalorder 1, %s10
    %p161 = scmp.lt.s32.totalorder %s10, 3
    %p162 = pnand %p160, %p161
    %p163 = pneg %p162
    // Predicated region
    $region33: #{rel_learnable_encoder_layer.6} parent=5 // pred_check
      _
    $region34: #{rel_learnable_encoder_layer.6} parent=5 // pred_check_branch
      %165 = sbr.rel (%p162) target = $region36
    $region35: #{rel_learnable_encoder_layer.6} parent=5 // pred_region
      %s166 = ssub.s32 %s10, 1
      %p167 = scmp.lt.s32.totalorder %s15, 1
      %s168 = scalar_select %p167, %s15, 1
      %s169 = smul.addr %s168, 4
      %s170 = scalar_lea.vmem %s0, %s169
      %p171 = pneg %p36
      %p172 = pneg %p33
      %p173 = pneg %p57
      %p174 = pneg %p54
      %p175 = pneg %p78
      %p176 = pneg %p75
      %p177 = pneg %p99
      %p178 = pneg %p96
      %p179 = pneg %p125
      %p180 = pneg %p122
      %p181 = scmp.lt.s32.totalorder %s15, 1
      %s182 = scalar_select %p181, %s15, 1
      %s183 = smul.addr %s182, 4
      %s184 = scalar_lea.vmem %s4, %s183
      %p185 = scmp.lt.s32.totalorder %s15, 1
      %s186 = scalar_select %p185, %s15, 1
      %s187 = smul.addr %s186, 4
      %s188 = scalar_lea.vmem %s0, %s187
      %p189 = scmp.lt.s32.totalorder %s15, 1
      %s190 = scalar_select %p189, %s15, 1
      %s191 = smul.addr %s190, 4
      %s192 = scalar_lea.vmem %s4, %s191
      %v194 = vld [vmem:[%s188] sm:$0xf]
      %v195 = vunpack.c.l.bf16 %v194
      %v196 = vmul.f32 %v195, 0.35355338
      %v197 = vpack.c.bf16 %v196, %v196
      %v198 = vld [vmem:[%s1] sm:$0xf]
      %v199 = vld [vmem:[%s2] sm:$0x3]
      %v200 = vld [vmem:[%s3] sm:$0xf]
      %v201 = vlaneseq
      %v202 = vshrl.u32 %v201, 7
      %v203 = vsub.s32 8, %v202
      %v204 = vand.u32 %v203, 1
      %vm205 = vcmp.ne.s32.totalorder %v204, 0
      %v206 = vand.u32 %v203, 2
      %vm207 = vcmp.ne.s32.totalorder %v206, 0
      %v208 = vand.u32 %v203, 4
      %vm209 = vcmp.ne.s32.totalorder %v208, 0
      %v210 = vand.u32 %v203, 8
      %vm211 = vcmp.ne.s32.totalorder %v210, 0
      %v213 = vunpack.c.l.b16 %v194
      %v214 = vpack.c.b16 %v213, %v213
      %215 = vrot.lane.b32.xlu0 %v214, 96
      %v216 = vpop.permute.xlu0 %215
      %vm217 = vcmask 64512
      %v219 = vsel %vm217, %v199, 0
      %v222 = vsel %vm217, %v216, 0
      %224 = vmatprep.subr.bf16.mxu0 0
      %225 = vmatpush1.bf16.xpose.msra.mxu0 0
      %226 = vmatprep.subr.bf16.mxu0 0
      %227 = vmatpush1.bf16.xpose.msra.mxu0 0
      %228 = vmatprep.subr.bf16.mxu0 0
      %229 = vmatpush1.bf16.xpose.msra.mxu0 0
      %230 = vmatprep.subr.bf16.mxu0 0
      %231 = vmatpush1.bf16.xpose.msra.mxu0 0
      %232 = vmatprep.subr.bf16.mxu0 0
      %233 = vmatpush1.bf16.xpose.msra.mxu0 0
      %234 = vmatprep.subr.bf16.mxu0 0
      %235 = vmatpush1.bf16.xpose.msra.mxu0 0
      %236 = vmatprep.subr.bf16.mxu0 0
      %237 = vmatpush1.bf16.xpose.msra.mxu0 0
      %238 = vmatprep.subr.bf16.mxu0 0
      %239 = vmatpush1.bf16.xpose.msra.mxu0 %v222
      %240 = vmatprep.subr.bf16.mxu0 0
      %241 = vmatpush2.bf16.xpose.msra.mxu0 0
      %242 = vmatprep.subr.bf16.mxu0 0
      %243 = vmatpush2.bf16.xpose.msra.mxu0 0
      %244 = vmatprep.subr.bf16.mxu0 0
      %245 = vmatpush2.bf16.xpose.msra.mxu0 0
      %246 = vmatprep.subr.bf16.mxu0 0
      %247 = vmatpush2.bf16.xpose.msra.mxu0 0
      %248 = vmatprep.subr.bf16.mxu0 0
      %249 = vmatpush2.bf16.xpose.msra.mxu0 0
      %250 = vmatprep.subr.bf16.mxu0 0
      %251 = vmatpush2.bf16.xpose.msra.mxu0 0
      %252 = vmatprep.subr.bf16.mxu0 0
      %253 = vmatpush2.bf16.xpose.msra.mxu0 0
      %254 = vmatprep.subr.bf16.mxu0 0
      %255 = vmatpush2.bf16.xpose.msra.mxu0 0
      %256 = vmatprep.mubr.bf16.mxu0 0
      %257 = vmatmul.mubr.bf16.gmra.mxu0 %v219
      %v258 = vpop.f32.mrf.mxu0
      %v259 = vadd.f32 0.0, %v258
      %v260 = vpop.f32.mrf.mxu0
      %v261 = vpop.f32.mrf.mxu0
      %v262 = vpop.f32.mrf.mxu0
      %263 = vdwg.mxu0
      %v264 = vlaneseq
      %v265 = vshrl.u32 %v264, 7
      %v266 = vsub.s32 0, %v265
      %v267 = vrot.slane %v259, %v266
      %v269 = vsel %vm217, %v197, 0
      %271 = vmatprep.subr.bf16.mxu0 0
      %272 = vmatpush1.bf16.xpose.msra.mxu0 0
      %273 = vmatprep.subr.bf16.mxu0 0
      %274 = vmatpush1.bf16.xpose.msra.mxu0 0
      %275 = vmatprep.subr.bf16.mxu0 0
      %276 = vmatpush1.bf16.xpose.msra.mxu0 0
      %277 = vmatprep.subr.bf16.mxu0 0
      %278 = vmatpush1.bf16.xpose.msra.mxu0 0
      %279 = vmatprep.subr.bf16.mxu0 0
      %280 = vmatpush1.bf16.xpose.msra.mxu0 0
      %281 = vmatprep.subr.bf16.mxu0 0
      %282 = vmatpush1.bf16.xpose.msra.mxu0 0
      %283 = vmatprep.subr.bf16.mxu0 0
      %284 = vmatpush1.bf16.xpose.msra.mxu0 0
      %285 = vmatprep.subr.bf16.mxu0 0
      %286 = vmatpush1.bf16.xpose.msra.mxu0 %v222
      %287 = vmatprep.subr.bf16.mxu0 0
      %288 = vmatpush2.bf16.xpose.msra.mxu0 0
      %289 = vmatprep.subr.bf16.mxu0 0
      %290 = vmatpush2.bf16.xpose.msra.mxu0 0
      %291 = vmatprep.subr.bf16.mxu0 0
      %292 = vmatpush2.bf16.xpose.msra.mxu0 0
      %293 = vmatprep.subr.bf16.mxu0 0
      %294 = vmatpush2.bf16.xpose.msra.mxu0 0
      %295 = vmatprep.subr.bf16.mxu0 0
      %296 = vmatpush2.bf16.xpose.msra.mxu0 0
      %297 = vmatprep.subr.bf16.mxu0 0
      %298 = vmatpush2.bf16.xpose.msra.mxu0 0
      %299 = vmatprep.subr.bf16.mxu0 0
      %300 = vmatpush2.bf16.xpose.msra.mxu0 0
      %301 = vmatprep.subr.bf16.mxu0 0
      %302 = vmatpush2.bf16.xpose.msra.mxu0 0
      %303 = vmatprep.mubr.bf16.mxu0 0
      %304 = vmatmul.mubr.bf16.gmra.mxu0 %v269
      %v305 = vpop.f32.mrf.mxu0
      %v306 = vadd.f32 %v267, %v305
      %v307 = vpop.f32.mrf.mxu0
      %v308 = vpop.f32.mrf.mxu0
      %v309 = vpop.f32.mrf.mxu0
      %310 = vdwg.mxu0
      %v311 = vlaneseq
      %v312 = vshrl.u32 %v311, 7
      %v313 = vsub.s32 0, %v312
      %v314 = vrot.slane %v200, %v313
      %v316 = vsel %vm217, %v198, 0
      %318 = vmatprep.subr.bf16.mxu0 0
      %319 = vmatpush1.bf16.xpose.msra.mxu0 0
      %320 = vmatprep.subr.bf16.mxu0 0
      %321 = vmatpush1.bf16.xpose.msra.mxu0 0
      %322 = vmatprep.subr.bf16.mxu0 0
      %323 = vmatpush1.bf16.xpose.msra.mxu0 0
      %324 = vmatprep.subr.bf16.mxu0 0
      %325 = vmatpush1.bf16.xpose.msra.mxu0 0
      %326 = vmatprep.subr.bf16.mxu0 0
      %327 = vmatpush1.bf16.xpose.msra.mxu0 0
      %328 = vmatprep.subr.bf16.mxu0 0
      %329 = vmatpush1.bf16.xpose.msra.mxu0 0
      %330 = vmatprep.subr.bf16.mxu0 0
      %331 = vmatpush1.bf16.xpose.msra.mxu0 0
      %332 = vmatprep.subr.bf16.mxu0 0
      %333 = vmatpush1.bf16.xpose.msra.mxu0 %v316
      %334 = vmatprep.subr.bf16.mxu0 0
      %335 = vmatpush2.bf16.xpose.msra.mxu0 0
      %336 = vmatprep.subr.bf16.mxu0 0
      %337 = vmatpush2.bf16.xpose.msra.mxu0 0
      %338 = vmatprep.subr.bf16.mxu0 0
      %339 = vmatpush2.bf16.xpose.msra.mxu0 0
      %340 = vmatprep.subr.bf16.mxu0 0
      %341 = vmatpush2.bf16.xpose.msra.mxu0 0
      %342 = vmatprep.subr.bf16.mxu0 0
      %343 = vmatpush2.bf16.xpose.msra.mxu0 0
      %344 = vmatprep.subr.bf16.mxu0 0
      %345 = vmatpush2.bf16.xpose.msra.mxu0 0
      %346 = vmatprep.subr.bf16.mxu0 0
      %347 = vmatpush2.bf16.xpose.msra.mxu0 0
      %348 = vmatprep.subr.bf16.mxu0 0
      %349 = vmatpush2.bf16.xpose.msra.mxu0 0
      %350 = vmatprep.mubr.bf16.mxu0 0
      %351 = vmatmul.mubr.bf16.gmra.mxu0 %v269
      %v352 = vpop.f32.mrf.mxu0
      %v353 = vadd.f32 %v314, %v352
      %v354 = vpop.f32.mrf.mxu0
      %v355 = vpop.f32.mrf.mxu0
      %v356 = vpop.f32.mrf.mxu0
      %357 = vdwg.mxu0
      %359 = vrot.lane.b32.xlu0 %v353, 1
      %v360 = vpop.permute.xlu0 %359
      %vm362 = vcmask 7168
      %v363 = vsel %vm362, 0.0, %v360
      %v365 = vrot.slane %v363, 1
      %vm367 = vcmask 1046528
      %v368 = vsel %vm367, %v365, 0.0
      %370 = vrot.lane.b32.xlu0 %v368, 9
      %v371 = vpop.permute.xlu0 %370
      %vm373 = vcmask 72704
      %v374 = vsel %vm373, %v363, %v371
      %376 = vrot.lane.b32.xlu0 %v374, 127
      %v377 = vpop.permute.xlu0 %376
      %vm379 = vcmask 138240
      %v380 = vsel %vm379, %v377, 0.0
      %v381 = vsel %vm205, 1, 0
      %vm382 = vcmp.eq.s32.totalorder %v381, 1
      %v383 = vsel %vm382, %v380, %v374
      %385 = vrot.lane.b32.xlu0 %v383, 126
      %v386 = vpop.permute.xlu0 %385
      %vm388 = vcmask 130048
      %v389 = vsel %vm388, %v386, 0.0
      %v390 = vsel %vm207, 1, 0
      %vm391 = vcmp.eq.s32.totalorder %v390, 1
      %v392 = vsel %vm391, %v389, %v383
      %394 = vrot.lane.b32.xlu0 %v392, 124
      %v395 = vpop.permute.xlu0 %394
      %vm397 = vcmask 113664
      %v398 = vsel %vm397, %v395, 0.0
      %v399 = vsel %vm209, 1, 0
      %vm400 = vcmp.eq.s32.totalorder %v399, 1
      %v401 = vsel %vm400, %v398, %v392
      %403 = vrot.lane.b32.xlu0 %v401, 120
      %v404 = vpop.permute.xlu0 %403
      %vm406 = vcmask 80896
      %v407 = vsel %vm406, %v404, 0.0
      %v408 = vsel %vm211, 1, 0
      %vm409 = vcmp.eq.s32.totalorder %v408, 1
      %v410 = vsel %vm409, %v407, %v401
      %v411 = vadd.f32 %v306, %v410
      %v412 = vsel %vm217, %v411, -inf
      %413 = vmax.xlane.f32.xlu0 %v412
      %v414 = vpop.xlane.xlu0 %413
      %v415 = vsub.f32 %v411, %v414
      %v416 = vmul.f32 %v415, 1.442695
      %v417 = vpow.pop %v416
      %v418 = vsel %vm217, %v417, 0.0
      %419 = vadd.xlane.f32.xlu0 %v418
      %v420 = vpop.xlane.xlu0 %419
      %v421 = vrcp.pop %v420
      %v422 = vmul.f32 %v417, %v421
      %v423 = vpack.c.bf16 %v422, %v422
      %424 = vrot.lane.b32.xlu0 %v214, 64
      %v425 = vpop.permute.xlu0 %424
      %v427 = vsel %vm217, %v423, 0
      %vm429 = vcmask 1043456
      %v431 = vsel %vm429, %v425, 0
      %433 = vmatprep.subr.bf16.mxu0 0
      %434 = vmatpush1.bf16.msra.mxu0 0
      %435 = vmatprep.subr.bf16.mxu0 0
      %436 = vmatpush1.bf16.msra.mxu0 0
      %437 = vmatprep.subr.bf16.mxu0 0
      %438 = vmatpush1.bf16.msra.mxu0 0
      %439 = vmatprep.subr.bf16.mxu0 0
      %440 = vmatpush1.bf16.msra.mxu0 0
      %441 = vmatprep.subr.bf16.mxu0 0
      %442 = vmatpush1.bf16.msra.mxu0 0
      %443 = vmatprep.subr.bf16.mxu0 0
      %444 = vmatpush1.bf16.msra.mxu0 0
      %445 = vmatprep.subr.bf16.mxu0 0
      %446 = vmatpush1.bf16.msra.mxu0 0
      %447 = vmatprep.subr.bf16.mxu0 0
      %448 = vmatpush1.bf16.msra.mxu0 %v431
      %449 = vmatprep.subr.bf16.mxu0 0
      %450 = vmatpush2.bf16.msra.mxu0 0
      %451 = vmatprep.subr.bf16.mxu0 0
      %452 = vmatpush2.bf16.msra.mxu0 0
      %453 = vmatprep.subr.bf16.mxu0 0
      %454 = vmatpush2.bf16.msra.mxu0 0
      %455 = vmatprep.subr.bf16.mxu0 0
      %456 = vmatpush2.bf16.msra.mxu0 0
      %457 = vmatprep.subr.bf16.mxu0 0
      %458 = vmatpush2.bf16.msra.mxu0 0
      %459 = vmatprep.subr.bf16.mxu0 0
      %460 = vmatpush2.bf16.msra.mxu0 0
      %461 = vmatprep.subr.bf16.mxu0 0
      %462 = vmatpush2.bf16.msra.mxu0 0
      %463 = vmatprep.subr.bf16.mxu0 0
      %464 = vmatpush2.bf16.msra.mxu0 0
      %465 = vmatprep.mubr.bf16.mxu0 0
      %466 = vmatmul.mubr.bf16.gmra.mxu0 %v427
      %v467 = vpop.f32.mrf.mxu0
      %v468 = vadd.f32 0.0, %v467
      %v469 = vpop.f32.mrf.mxu0
      %v470 = vpop.f32.mrf.mxu0
      %v471 = vpop.f32.mrf.mxu0
      %472 = vdwg.mxu0
      %v475 = vunpack.c.l.s4 1983009808
      %v476 = vunpack.c.0.s8 %v475
      %v477 = vlaneseq
      %v478 = vshrl.u32 %v477, 7
      %v479 = vsub.s32 %v476, %v478
      %v480 = vrot.slane %v199, %v479
      %v482 = vshrl.u32 %v480, 16
      %484 = vrot.lane.b32.xlu0 %v214, 88
      %v485 = vpop.permute.xlu0 %484
      %v487 = vsel %vm217, %v482, 0
      %v490 = vsel %vm217, %v485, 0
      %492 = vmatprep.subr.bf16.mxu0 0
      %493 = vmatpush1.bf16.xpose.msra.mxu0 0
      %494 = vmatprep.subr.bf16.mxu0 0
      %495 = vmatpush1.bf16.xpose.msra.mxu0 0
      %496 = vmatprep.subr.bf16.mxu0 0
      %497 = vmatpush1.bf16.xpose.msra.mxu0 0
      %498 = vmatprep.subr.bf16.mxu0 0
      %499 = vmatpush1.bf16.xpose.msra.mxu0 0
      %500 = vmatprep.subr.bf16.mxu0 0
      %501 = vmatpush1.bf16.xpose.msra.mxu0 0
      %502 = vmatprep.subr.bf16.mxu0 0
      %503 = vmatpush1.bf16.xpose.msra.mxu0 0
      %504 = vmatprep.subr.bf16.mxu0 0
      %505 = vmatpush1.bf16.xpose.msra.mxu0 0
      %506 = vmatprep.subr.bf16.mxu0 0
      %507 = vmatpush1.bf16.xpose.msra.mxu0 %v490
      %508 = vmatprep.subr.bf16.mxu0 0
      %509 = vmatpush2.bf16.xpose.msra.mxu0 0
      %510 = vmatprep.subr.bf16.mxu0 0
      %511 = vmatpush2.bf16.xpose.msra.mxu0 0
      %512 = vmatprep.subr.bf16.mxu0 0
      %513 = vmatpush2.bf16.xpose.msra.mxu0 0
      %514 = vmatprep.subr.bf16.mxu0 0
      %515 = vmatpush2.bf16.xpose.msra.mxu0 0
      %516 = vmatprep.subr.bf16.mxu0 0
      %517 = vmatpush2.bf16.xpose.msra.mxu0 0
      %518 = vmatprep.subr.bf16.mxu0 0
      %519 = vmatpush2.bf16.xpose.msra.mxu0 0
      %520 = vmatprep.subr.bf16.mxu0 0
      %521 = vmatpush2.bf16.xpose.msra.mxu0 0
      %522 = vmatprep.subr.bf16.mxu0 0
      %523 = vmatpush2.bf16.xpose.msra.mxu0 0
      %524 = vmatprep.mubr.bf16.mxu0 0
      %525 = vmatmul.mubr.bf16.gmra.mxu0 %v487
      %v526 = vpop.f32.mrf.mxu0
      %v527 = vadd.f32 0.0, %v526
      %v528 = vpop.f32.mrf.mxu0
      %v529 = vpop.f32.mrf.mxu0
      %v530 = vpop.f32.mrf.mxu0
      %531 = vdwg.mxu0
      %v532 = vlaneseq
      %v533 = vshrl.u32 %v532, 7
      %v534 = vsub.s32 0, %v533
      %v535 = vrot.slane %v527, %v534
      %537 = vrot.lane.b32.xlu0 %v197, 120
      %v538 = vpop.permute.xlu0 %537
      %v540 = vsel %vm217, %v538, 0
      %542 = vmatprep.subr.bf16.mxu0 0
      %543 = vmatpush1.bf16.xpose.msra.mxu0 0
      %544 = vmatprep.subr.bf16.mxu0 0
      %545 = vmatpush1.bf16.xpose.msra.mxu0 0
      %546 = vmatprep.subr.bf16.mxu0 0
      %547 = vmatpush1.bf16.xpose.msra.mxu0 0
      %548 = vmatprep.subr.bf16.mxu0 0
      %549 = vmatpush1.bf16.xpose.msra.mxu0 0
      %550 = vmatprep.subr.bf16.mxu0 0
      %551 = vmatpush1.bf16.xpose.msra.mxu0 0
      %552 = vmatprep.subr.bf16.mxu0 0
      %553 = vmatpush1.bf16.xpose.msra.mxu0 0
      %554 = vmatprep.subr.bf16.mxu0 0
      %555 = vmatpush1.bf16.xpose.msra.mxu0 0
      %556 = vmatprep.subr.bf16.mxu0 0
      %557 = vmatpush1.bf16.xpose.msra.mxu0 %v490
      %558 = vmatprep.subr.bf16.mxu0 0
      %559 = vmatpush2.bf16.xpose.msra.mxu0 0
      %560 = vmatprep.subr.bf16.mxu0 0
      %561 = vmatpush2.bf16.xpose.msra.mxu0 0
      %562 = vmatprep.subr.bf16.mxu0 0
      %563 = vmatpush2.bf16.xpose.msra.mxu0 0
      %564 = vmatprep.subr.bf16.mxu0 0
      %565 = vmatpush2.bf16.xpose.msra.mxu0 0
      %566 = vmatprep.subr.bf16.mxu0 0
      %567 = vmatpush2.bf16.xpose.msra.mxu0 0
      %568 = vmatprep.subr.bf16.mxu0 0
      %569 = vmatpush2.bf16.xpose.msra.mxu0 0
      %570 = vmatprep.subr.bf16.mxu0 0
      %571 = vmatpush2.bf16.xpose.msra.mxu0 0
      %572 = vmatprep.subr.bf16.mxu0 0
      %573 = vmatpush2.bf16.xpose.msra.mxu0 0
      %574 = vmatprep.mubr.bf16.mxu0 0
      %575 = vmatmul.mubr.bf16.gmra.mxu0 %v540
      %v576 = vpop.f32.mrf.mxu0
      %v577 = vadd.f32 %v535, %v576
      %v578 = vpop.f32.mrf.mxu0
      %v579 = vpop.f32.mrf.mxu0
      %v580 = vpop.f32.mrf.mxu0
      %581 = vdwg.mxu0
      %v582 = vlaneseq
      %v583 = vshrl.u32 %v582, 7
      %v584 = vsub.s32 1, %v583
      %v585 = vrot.slane %v200, %v584
      %v587 = vunpack.c.l.b16 %v198
      %v588 = vpack.c.b16 %v587, %v587
      %589 = vrot.lane.b32.xlu0 %v588, 120
      %v590 = vpop.permute.xlu0 %589
      %v592 = vsel %vm217, %v590, 0
      %594 = vmatprep.subr.bf16.mxu0 0
      %595 = vmatpush1.bf16.xpose.msra.mxu0 0
      %596 = vmatprep.subr.bf16.mxu0 0
      %597 = vmatpush1.bf16.xpose.msra.mxu0 0
      %598 = vmatprep.subr.bf16.mxu0 0
      %599 = vmatpush1.bf16.xpose.msra.mxu0 0
      %600 = vmatprep.subr.bf16.mxu0 0
      %601 = vmatpush1.bf16.xpose.msra.mxu0 0
      %602 = vmatprep.subr.bf16.mxu0 0
      %603 = vmatpush1.bf16.xpose.msra.mxu0 0
      %604 = vmatprep.subr.bf16.mxu0 0
      %605 = vmatpush1.bf16.xpose.msra.mxu0 0
      %606 = vmatprep.subr.bf16.mxu0 0
      %607 = vmatpush1.bf16.xpose.msra.mxu0 0
      %608 = vmatprep.subr.bf16.mxu0 0
      %609 = vmatpush1.bf16.xpose.msra.mxu0 %v592
      %610 = vmatprep.subr.bf16.mxu0 0
      %611 = vmatpush2.bf16.xpose.msra.mxu0 0
      %612 = vmatprep.subr.bf16.mxu0 0
      %613 = vmatpush2.bf16.xpose.msra.mxu0 0
      %614 = vmatprep.subr.bf16.mxu0 0
      %615 = vmatpush2.bf16.xpose.msra.mxu0 0
      %616 = vmatprep.subr.bf16.mxu0 0
      %617 = vmatpush2.bf16.xpose.msra.mxu0 0
      %618 = vmatprep.subr.bf16.mxu0 0
      %619 = vmatpush2.bf16.xpose.msra.mxu0 0
      %620 = vmatprep.subr.bf16.mxu0 0
      %621 = vmatpush2.bf16.xpose.msra.mxu0 0
      %622 = vmatprep.subr.bf16.mxu0 0
      %623 = vmatpush2.bf16.xpose.msra.mxu0 0
      %624 = vmatprep.subr.bf16.mxu0 0
      %625 = vmatpush2.bf16.xpose.msra.mxu0 0
      %626 = vmatprep.mubr.bf16.mxu0 0
      %627 = vmatmul.mubr.bf16.gmra.mxu0 %v540
      %v628 = vpop.f32.mrf.mxu0
      %v629 = vadd.f32 %v585, %v628
      %v630 = vpop.f32.mrf.mxu0
      %v631 = vpop.f32.mrf.mxu0
      %v632 = vpop.f32.mrf.mxu0
      %633 = vdwg.mxu0
      %635 = vrot.lane.b32.xlu0 %v629, 1
      %v636 = vpop.permute.xlu0 %635
      %v638 = vsel %vm362, 0.0, %v636
      %v640 = vrot.slane %v638, 1
      %v642 = vsel %vm367, %v640, 0.0
      %644 = vrot.lane.b32.xlu0 %v642, 9
      %v645 = vpop.permute.xlu0 %644
      %v647 = vsel %vm373, %v638, %v645
      %649 = vrot.lane.b32.xlu0 %v647, 127
      %v650 = vpop.permute.xlu0 %649
      %v652 = vsel %vm379, %v650, 0.0
      %v653 = vsel %vm382, %v652, %v647
      %655 = vrot.lane.b32.xlu0 %v653, 126
      %v656 = vpop.permute.xlu0 %655
      %v658 = vsel %vm388, %v656, 0.0
      %v659 = vsel %vm391, %v658, %v653
      %661 = vrot.lane.b32.xlu0 %v659, 124
      %v662 = vpop.permute.xlu0 %661
      %v664 = vsel %vm397, %v662, 0.0
      %v665 = vsel %vm400, %v664, %v659
      %667 = vrot.lane.b32.xlu0 %v665, 120
      %v668 = vpop.permute.xlu0 %667
      %v670 = vsel %vm406, %v668, 0.0
      %v671 = vsel %vm409, %v670, %v665
      %v672 = vadd.f32 %v577, %v671
      %v673 = vsel %vm217, %v672, -inf
      %674 = vmax.xlane.f32.xlu0 %v673
      %v675 = vpop.xlane.xlu0 %674
      %v676 = vsub.f32 %v672, %v675
      %v677 = vmul.f32 %v676, 1.442695
      %v678 = vpow.pop %v677
      %v679 = vsel %vm217, %v678, 0.0
      %680 = vadd.xlane.f32.xlu0 %v679
      %v681 = vpop.xlane.xlu0 %680
      %v682 = vrcp.pop %v681
      %v683 = vmul.f32 %v678, %v682
      %v684 = vpack.c.bf16 %v683, %v683
      %685 = vrot.lane.b32.xlu0 %v214, 56
      %v686 = vpop.permute.xlu0 %685
      %v688 = vsel %vm217, %v684, 0
      %v691 = vsel %vm429, %v686, 0
      %693 = vmatprep.subr.bf16.mxu0 0
      %694 = vmatpush1.bf16.msra.mxu0 0
      %695 = vmatprep.subr.bf16.mxu0 0
      %696 = vmatpush1.bf16.msra.mxu0 0
      %697 = vmatprep.subr.bf16.mxu0 0
      %698 = vmatpush1.bf16.msra.mxu0 0
      %699 = vmatprep.subr.bf16.mxu0 0
      %700 = vmatpush1.bf16.msra.mxu0 0
      %701 = vmatprep.subr.bf16.mxu0 0
      %702 = vmatpush1.bf16.msra.mxu0 0
      %703 = vmatprep.subr.bf16.mxu0 0
      %704 = vmatpush1.bf16.msra.mxu0 0
      %705 = vmatprep.subr.bf16.mxu0 0
      %706 = vmatpush1.bf16.msra.mxu0 0
      %707 = vmatprep.subr.bf16.mxu0 0
      %708 = vmatpush1.bf16.msra.mxu0 %v691
      %709 = vmatprep.subr.bf16.mxu0 0
      %710 = vmatpush2.bf16.msra.mxu0 0
      %711 = vmatprep.subr.bf16.mxu0 0
      %712 = vmatpush2.bf16.msra.mxu0 0
      %713 = vmatprep.subr.bf16.mxu0 0
      %714 = vmatpush2.bf16.msra.mxu0 0
      %715 = vmatprep.subr.bf16.mxu0 0
      %716 = vmatpush2.bf16.msra.mxu0 0
      %717 = vmatprep.subr.bf16.mxu0 0
      %718 = vmatpush2.bf16.msra.mxu0 0
      %719 = vmatprep.subr.bf16.mxu0 0
      %720 = vmatpush2.bf16.msra.mxu0 0
      %721 = vmatprep.subr.bf16.mxu0 0
      %722 = vmatpush2.bf16.msra.mxu0 0
      %723 = vmatprep.subr.bf16.mxu0 0
      %724 = vmatpush2.bf16.msra.mxu0 0
      %725 = vmatprep.mubr.bf16.mxu0 0
      %726 = vmatmul.mubr.bf16.gmra.mxu0 %v688
      %v727 = vpop.f32.mrf.mxu0
      %v728 = vadd.f32 0.0, %v727
      %v729 = vpop.f32.mrf.mxu0
      %v730 = vpop.f32.mrf.mxu0
      %v731 = vpop.f32.mrf.mxu0
      %732 = vdwg.mxu0
      %v733 = vrot.slane %v480, 1
      %734 = vrot.lane.b32.xlu0 %v214, 80
      %v735 = vpop.permute.xlu0 %734
      %v737 = vsel %vm217, %v733, 0
      %v740 = vsel %vm217, %v735, 0
      %742 = vmatprep.subr.bf16.mxu0 0
      %743 = vmatpush1.bf16.xpose.msra.mxu0 0
      %744 = vmatprep.subr.bf16.mxu0 0
      %745 = vmatpush1.bf16.xpose.msra.mxu0 0
      %746 = vmatprep.subr.bf16.mxu0 0
      %747 = vmatpush1.bf16.xpose.msra.mxu0 0
      %748 = vmatprep.subr.bf16.mxu0 0
      %749 = vmatpush1.bf16.xpose.msra.mxu0 0
      %750 = vmatprep.subr.bf16.mxu0 0
      %751 = vmatpush1.bf16.xpose.msra.mxu0 0
      %752 = vmatprep.subr.bf16.mxu0 0
      %753 = vmatpush1.bf16.xpose.msra.mxu0 0
      %754 = vmatprep.subr.bf16.mxu0 0
      %755 = vmatpush1.bf16.xpose.msra.mxu0 0
      %756 = vmatprep.subr.bf16.mxu0 0
      %757 = vmatpush1.bf16.xpose.msra.mxu0 %v740
      %758 = vmatprep.subr.bf16.mxu0 0
      %759 = vmatpush2.bf16.xpose.msra.mxu0 0
      %760 = vmatprep.subr.bf16.mxu0 0
      %761 = vmatpush2.bf16.xpose.msra.mxu0 0
      %762 = vmatprep.subr.bf16.mxu0 0
      %763 = vmatpush2.bf16.xpose.msra.mxu0 0
      %764 = vmatprep.subr.bf16.mxu0 0
      %765 = vmatpush2.bf16.xpose.msra.mxu0 0
      %766 = vmatprep.subr.bf16.mxu0 0
      %767 = vmatpush2.bf16.xpose.msra.mxu0 0
      %768 = vmatprep.subr.bf16.mxu0 0
      %769 = vmatpush2.bf16.xpose.msra.mxu0 0
      %770 = vmatprep.subr.bf16.mxu0 0
      %771 = vmatpush2.bf16.xpose.msra.mxu0 0
      %772 = vmatprep.subr.bf16.mxu0 0
      %773 = vmatpush2.bf16.xpose.msra.mxu0 0
      %774 = vmatprep.mubr.bf16.mxu0 0
      %775 = vmatmul.mubr.bf16.gmra.mxu0 %v737
      %v776 = vpop.f32.mrf.mxu0
      %v777 = vadd.f32 0.0, %v776
      %v778 = vpop.f32.mrf.mxu0
      %v779 = vpop.f32.mrf.mxu0
      %v780 = vpop.f32.mrf.mxu0
      %781 = vdwg.mxu0
      %v782 = vlaneseq
      %v783 = vshrl.u32 %v782, 7
      %v784 = vsub.s32 0, %v783
      %v785 = vrot.slane %v777, %v784
      %786 = vrot.lane.b32.xlu0 %v197, 112
      %v787 = vpop.permute.xlu0 %786
      %v789 = vsel %vm217, %v787, 0
      %791 = vmatprep.subr.bf16.mxu0 0
      %792 = vmatpush1.bf16.xpose.msra.mxu0 0
      %793 = vmatprep.subr.bf16.mxu0 0
      %794 = vmatpush1.bf16.xpose.msra.mxu0 0
      %795 = vmatprep.subr.bf16.mxu0 0
      %796 = vmatpush1.bf16.xpose.msra.mxu0 0
      %797 = vmatprep.subr.bf16.mxu0 0
      %798 = vmatpush1.bf16.xpose.msra.mxu0 0
      %799 = vmatprep.subr.bf16.mxu0 0
      %800 = vmatpush1.bf16.xpose.msra.mxu0 0
      %801 = vmatprep.subr.bf16.mxu0 0
      %802 = vmatpush1.bf16.xpose.msra.mxu0 0
      %803 = vmatprep.subr.bf16.mxu0 0
      %804 = vmatpush1.bf16.xpose.msra.mxu0 0
      %805 = vmatprep.subr.bf16.mxu0 0
      %806 = vmatpush1.bf16.xpose.msra.mxu0 %v740
      %807 = vmatprep.subr.bf16.mxu0 0
      %808 = vmatpush2.bf16.xpose.msra.mxu0 0
      %809 = vmatprep.subr.bf16.mxu0 0
      %810 = vmatpush2.bf16.xpose.msra.mxu0 0
      %811 = vmatprep.subr.bf16.mxu0 0
      %812 = vmatpush2.bf16.xpose.msra.mxu0 0
      %813 = vmatprep.subr.bf16.mxu0 0
      %814 = vmatpush2.bf16.xpose.msra.mxu0 0
      %815 = vmatprep.subr.bf16.mxu0 0
      %816 = vmatpush2.bf16.xpose.msra.mxu0 0
      %817 = vmatprep.subr.bf16.mxu0 0
      %818 = vmatpush2.bf16.xpose.msra.mxu0 0
      %819 = vmatprep.subr.bf16.mxu0 0
      %820 = vmatpush2.bf16.xpose.msra.mxu0 0
      %821 = vmatprep.subr.bf16.mxu0 0
      %822 = vmatpush2.bf16.xpose.msra.mxu0 0
      %823 = vmatprep.mubr.bf16.mxu0 0
      %824 = vmatmul.mubr.bf16.gmra.mxu0 %v789
      %v825 = vpop.f32.mrf.mxu0
      %v826 = vadd.f32 %v785, %v825
      %v827 = vpop.f32.mrf.mxu0
      %v828 = vpop.f32.mrf.mxu0
      %v829 = vpop.f32.mrf.mxu0
      %830 = vdwg.mxu0
      %v831 = vlaneseq
      %v832 = vshrl.u32 %v831, 7
      %v833 = vsub.s32 2, %v832
      %v834 = vrot.slane %v200, %v833
      %835 = vrot.lane.b32.xlu0 %v588, 112
      %v836 = vpop.permute.xlu0 %835
      %v838 = vsel %vm217, %v836, 0
      %840 = vmatprep.subr.bf16.mxu0 0
      %841 = vmatpush1.bf16.xpose.msra.mxu0 0
      %842 = vmatprep.subr.bf16.mxu0 0
      %843 = vmatpush1.bf16.xpose.msra.mxu0 0
      %844 = vmatprep.subr.bf16.mxu0 0
      %845 = vmatpush1.bf16.xpose.msra.mxu0 0
      %846 = vmatprep.subr.bf16.mxu0 0
      %847 = vmatpush1.bf16.xpose.msra.mxu0 0
      %848 = vmatprep.subr.bf16.mxu0 0
      %849 = vmatpush1.bf16.xpose.msra.mxu0 0
      %850 = vmatprep.subr.bf16.mxu0 0
      %851 = vmatpush1.bf16.xpose.msra.mxu0 0
      %852 = vmatprep.subr.bf16.mxu0 0
      %853 = vmatpush1.bf16.xpose.msra.mxu0 0
      %854 = vmatprep.subr.bf16.mxu0 0
      %855 = vmatpush1.bf16.xpose.msra.mxu0 %v838
      %856 = vmatprep.subr.bf16.mxu0 0
      %857 = vmatpush2.bf16.xpose.msra.mxu0 0
      %858 = vmatprep.subr.bf16.mxu0 0
      %859 = vmatpush2.bf16.xpose.msra.mxu0 0
      %860 = vmatprep.subr.bf16.mxu0 0
      %861 = vmatpush2.bf16.xpose.msra.mxu0 0
      %862 = vmatprep.subr.bf16.mxu0 0
      %863 = vmatpush2.bf16.xpose.msra.mxu0 0
      %864 = vmatprep.subr.bf16.mxu0 0
      %865 = vmatpush2.bf16.xpose.msra.mxu0 0
      %866 = vmatprep.subr.bf16.mxu0 0
      %867 = vmatpush2.bf16.xpose.msra.mxu0 0
      %868 = vmatprep.subr.bf16.mxu0 0
      %869 = vmatpush2.bf16.xpose.msra.mxu0 0
      %870 = vmatprep.subr.bf16.mxu0 0
      %871 = vmatpush2.bf16.xpose.msra.mxu0 0
      %872 = vmatprep.mubr.bf16.mxu0 0
      %873 = vmatmul.mubr.bf16.gmra.mxu0 %v789
      %v874 = vpop.f32.mrf.mxu0
      %v875 = vadd.f32 %v834, %v874
      %v876 = vpop.f32.mrf.mxu0
      %v877 = vpop.f32.mrf.mxu0
      %v878 = vpop.f32.mrf.mxu0
      %879 = vdwg.mxu0
      %881 = vrot.lane.b32.xlu0 %v875, 1
      %v882 = vpop.permute.xlu0 %881
      %v884 = vsel %vm362, 0.0, %v882
      %v886 = vrot.slane %v884, 1
      %v888 = vsel %vm367, %v886, 0.0
      %890 = vrot.lane.b32.xlu0 %v888, 9
      %v891 = vpop.permute.xlu0 %890
      %v893 = vsel %vm373, %v884, %v891
      %895 = vrot.lane.b32.xlu0 %v893, 127
      %v896 = vpop.permute.xlu0 %895
      %v898 = vsel %vm379, %v896, 0.0
      %v899 = vsel %vm382, %v898, %v893
      %901 = vrot.lane.b32.xlu0 %v899, 126
      %v902 = vpop.permute.xlu0 %901
      %v904 = vsel %vm388, %v902, 0.0
      %v905 = vsel %vm391, %v904, %v899
      %907 = vrot.lane.b32.xlu0 %v905, 124
      %v908 = vpop.permute.xlu0 %907
      %v910 = vsel %vm397, %v908, 0.0
      %v911 = vsel %vm400, %v910, %v905
      %913 = vrot.lane.b32.xlu0 %v911, 120
      %v914 = vpop.permute.xlu0 %913
      %v916 = vsel %vm406, %v914, 0.0
      %v917 = vsel %vm409, %v916, %v911
      %v918 = vadd.f32 %v826, %v917
      %v919 = vsel %vm217, %v918, -inf
      %920 = vmax.xlane.f32.xlu0 %v919
      %v921 = vpop.xlane.xlu0 %920
      %v922 = vsub.f32 %v918, %v921
      %v923 = vmul.f32 %v922, 1.442695
      %v924 = vpow.pop %v923
      %v925 = vsel %vm217, %v924, 0.0
      %926 = vadd.xlane.f32.xlu0 %v925
      %v927 = vpop.xlane.xlu0 %926
      %v928 = vrcp.pop %v927
      %v929 = vmul.f32 %v924, %v928
      %v930 = vpack.c.bf16 %v929, %v929
      %931 = vrot.lane.b32.xlu0 %v214, 48
      %v932 = vpop.permute.xlu0 %931
      %v934 = vsel %vm217, %v930, 0
      %v937 = vsel %vm429, %v932, 0
      %939 = vmatprep.subr.bf16.mxu0 0
      %940 = vmatpush1.bf16.msra.mxu0 0
      %941 = vmatprep.subr.bf16.mxu0 0
      %942 = vmatpush1.bf16.msra.mxu0 0
      %943 = vmatprep.subr.bf16.mxu0 0
      %944 = vmatpush1.bf16.msra.mxu0 0
      %945 = vmatprep.subr.bf16.mxu0 0
      %946 = vmatpush1.bf16.msra.mxu0 0
      %947 = vmatprep.subr.bf16.mxu0 0
      %948 = vmatpush1.bf16.msra.mxu0 0
      %949 = vmatprep.subr.bf16.mxu0 0
      %950 = vmatpush1.bf16.msra.mxu0 0
      %951 = vmatprep.subr.bf16.mxu0 0
      %952 = vmatpush1.bf16.msra.mxu0 0
      %953 = vmatprep.subr.bf16.mxu0 0
      %954 = vmatpush1.bf16.msra.mxu0 %v937
      %955 = vmatprep.subr.bf16.mxu0 0
      %956 = vmatpush2.bf16.msra.mxu0 0
      %957 = vmatprep.subr.bf16.mxu0 0
      %958 = vmatpush2.bf16.msra.mxu0 0
      %959 = vmatprep.subr.bf16.mxu0 0
      %960 = vmatpush2.bf16.msra.mxu0 0
      %961 = vmatprep.subr.bf16.mxu0 0
      %962 = vmatpush2.bf16.msra.mxu0 0
      %963 = vmatprep.subr.bf16.mxu0 0
      %964 = vmatpush2.bf16.msra.mxu0 0
      %965 = vmatprep.subr.bf16.mxu0 0
      %966 = vmatpush2.bf16.msra.mxu0 0
      %967 = vmatprep.subr.bf16.mxu0 0
      %968 = vmatpush2.bf16.msra.mxu0 0
      %969 = vmatprep.subr.bf16.mxu0 0
      %970 = vmatpush2.bf16.msra.mxu0 0
      %971 = vmatprep.mubr.bf16.mxu0 0
      %972 = vmatmul.mubr.bf16.gmra.mxu0 %v934
      %v973 = vpop.f32.mrf.mxu0
      %v974 = vadd.f32 0.0, %v973
      %v975 = vpop.f32.mrf.mxu0
      %v976 = vpop.f32.mrf.mxu0
      %v977 = vpop.f32.mrf.mxu0
      %978 = vdwg.mxu0
      %v979 = vrot.slane %v482, 1
      %980 = vrot.lane.b32.xlu0 %v214, 72
      %v981 = vpop.permute.xlu0 %980
      %v983 = vsel %vm217, %v979, 0
      %v986 = vsel %vm217, %v981, 0
      %988 = vmatprep.subr.bf16.mxu0 0
      %989 = vmatpush1.bf16.xpose.msra.mxu0 0
      %990 = vmatprep.subr.bf16.mxu0 0
      %991 = vmatpush1.bf16.xpose.msra.mxu0 0
      %992 = vmatprep.subr.bf16.mxu0 0
      %993 = vmatpush1.bf16.xpose.msra.mxu0 0
      %994 = vmatprep.subr.bf16.mxu0 0
      %995 = vmatpush1.bf16.xpose.msra.mxu0 0
      %996 = vmatprep.subr.bf16.mxu0 0
      %997 = vmatpush1.bf16.xpose.msra.mxu0 0
      %998 = vmatprep.subr.bf16.mxu0 0
      %999 = vmatpush1.bf16.xpose.msra.mxu0 0
      %1000 = vmatprep.subr.bf16.mxu0 0
      %1001 = vmatpush1.bf16.xpose.msra.mxu0 0
      %1002 = vmatprep.subr.bf16.mxu0 0
      %1003 = vmatpush1.bf16.xpose.msra.mxu0 %v986
      %1004 = vmatprep.subr.bf16.mxu0 0
      %1005 = vmatpush2.bf16.xpose.msra.mxu0 0
      %1006 = vmatprep.subr.bf16.mxu0 0
      %1007 = vmatpush2.bf16.xpose.msra.mxu0 0
      %1008 = vmatprep.subr.bf16.mxu0 0
      %1009 = vmatpush2.bf16.xpose.msra.mxu0 0
      %1010 = vmatprep.subr.bf16.mxu0 0
      %1011 = vmatpush2.bf16.xpose.msra.mxu0 0
      %1012 = vmatprep.subr.bf16.mxu0 0
      %1013 = vmatpush2.bf16.xpose.msra.mxu0 0
      %1014 = vmatprep.subr.bf16.mxu0 0
      %1015 = vmatpush2.bf16.xpose.msra.mxu0 0
      %1016 = vmatprep.subr.bf16.mxu0 0
      %1017 = vmatpush2.bf16.xpose.msra.mxu0 0
      %1018 = vmatprep.subr.bf16.mxu0 0
      %1019 = vmatpush2.bf16.xpose.msra.mxu0 0
      %1020 = vmatprep.mubr.bf16.mxu0 0
      %1021 = vmatmul.mubr.bf16.gmra.mxu0 %v983
      %v1022 = vpop.f32.mrf.mxu0
      %v1023 = vadd.f32 0.0, %v1022
      %v1024 = vpop.f32.mrf.mxu0
      %v1025 = vpop.f32.mrf.mxu0
      %v1026 = vpop.f32.mrf.mxu0
      %1027 = vdwg.mxu0
      %v1028 = vlaneseq
      %v1029 = vshrl.u32 %v1028, 7
      %v1030 = vsub.s32 0, %v1029
      %v1031 = vrot.slane %v1023, %v1030
      %1032 = vrot.lane.b32.xlu0 %v197, 104
      %v1033 = vpop.permute.xlu0 %1032
      %v1035 = vsel %vm217, %v1033, 0
      %1037 = vmatprep.subr.bf16.mxu0 0
      %1038 = vmatpush1.bf16.xpose.msra.mxu0 0
      %1039 = vmatprep.subr.bf16.mxu0 0
      %1040 = vmatpush1.bf16.xpose.msra.mxu0 0
      %1041 = vmatprep.subr.bf16.mxu0 0
      %1042 = vmatpush1.bf16.xpose.msra.mxu0 0
      %1043 = vmatprep.subr.bf16.mxu0 0
      %1044 = vmatpush1.bf16.xpose.msra.mxu0 0
      %1045 = vmatprep.subr.bf16.mxu0 0
      %1046 = vmatpush1.bf16.xpose.msra.mxu0 0
      %1047 = vmatprep.subr.bf16.mxu0 0
      %1048 = vmatpush1.bf16.xpose.msra.mxu0 0
      %1049 = vmatprep.subr.bf16.mxu0 0
      %1050 = vmatpush1.bf16.xpose.msra.mxu0 0
      %1051 = vmatprep.subr.bf16.mxu0 0
      %1052 = vmatpush1.bf16.xpose.msra.mxu0 %v986
      %1053 = vmatprep.subr.bf16.mxu0 0
      %1054 = vmatpush2.bf16.xpose.msra.mxu0 0
      %1055 = vmatprep.subr.bf16.mxu0 0
      %1056 = vmatpush2.bf16.xpose.msra.mxu0 0
      %1057 = vmatprep.subr.bf16.mxu0 0
      %1058 = vmatpush2.bf16.xpose.msra.mxu0 0
      %1059 = vmatprep.subr.bf16.mxu0 0
      %1060 = vmatpush2.bf16.xpose.msra.mxu0 0
      %1061 = vmatprep.subr.bf16.mxu0 0
      %1062 = vmatpush2.bf16.xpose.msra.mxu0 0
      %1063 = vmatprep.subr.bf16.mxu0 0
      %1064 = vmatpush2.bf16.xpose.msra.mxu0 0
      %1065 = vmatprep.subr.bf16.mxu0 0
      %1066 = vmatpush2.bf16.xpose.msra.mxu0 0
      %1067 = vmatprep.subr.bf16.mxu0 0
      %1068 = vmatpush2.bf16.xpose.msra.mxu0 0
      %1069 = vmatprep.mubr.bf16.mxu0 0
      %1070 = vmatmul.mubr.bf16.gmra.mxu0 %v1035
      %v1071 = vpop.f32.mrf.mxu0
      %v1072 = vadd.f32 %v1031, %v1071
      %v1073 = vpop.f32.mrf.mxu0
      %v1074 = vpop.f32.mrf.mxu0
      %v1075 = vpop.f32.mrf.mxu0
      %1076 = vdwg.mxu0
      %v1077 = vlaneseq
      %v1078 = vshrl.u32 %v1077, 7
      %v1079 = vsub.s32 3, %v1078
      %v1080 = vrot.slane %v200, %v1079
      %1081 = vrot.lane.b32.xlu0 %v588, 104
      %v1082 = vpop.permute.xlu0 %1081
      %v1084 = vsel %vm217, %v1082, 0
      %1086 = vmatprep.subr.bf16.mxu0 0
      %1087 = vmatpush1.bf16.xpose.msra.mxu0 0
      %1088 = vmatprep.subr.bf16.mxu0 0
      %1089 = vmatpush1.bf16.xpose.msra.mxu0 0
      %1090 = vmatprep.subr.bf16.mxu0 0
      %1091 = vmatpush1.bf16.xpose.msra.mxu0 0
      %1092 = vmatprep.subr.bf16.mxu0 0
      %1093 = vmatpush1.bf16.xpose.msra.mxu0 0
      %1094 = vmatprep.subr.bf16.mxu0 0
      %1095 = vmatpush1.bf16.xpose.msra.mxu0 0
      %1096 = vmatprep.subr.bf16.mxu0 0
      %1097 = vmatpush1.bf16.xpose.msra.mxu0 0
      %1098 = vmatprep.subr.bf16.mxu0 0
      %1099 = vmatpush1.bf16.xpose.msra.mxu0 0
      %1100 = vmatprep.subr.bf16.mxu0 0
      %1101 = vmatpush1.bf16.xpose.msra.mxu0 %v1084
      %1102 = vmatprep.subr.bf16.mxu0 0
      %1103 = vmatpush2.bf16.xpose.msra.mxu0 0
      %1104 = vmatprep.subr.bf16.mxu0 0
      %1105 = vmatpush2.bf16.xpose.msra.mxu0 0
      %1106 = vmatprep.subr.bf16.mxu0 0
      %1107 = vmatpush2.bf16.xpose.msra.mxu0 0
      %1108 = vmatprep.subr.bf16.mxu0 0
      %1109 = vmatpush2.bf16.xpose.msra.mxu0 0
      %1110 = vmatprep.subr.bf16.mxu0 0
      %1111 = vmatpush2.bf16.xpose.msra.mxu0 0
      %1112 = vmatprep.subr.bf16.mxu0 0
      %1113 = vmatpush2.bf16.xpose.msra.mxu0 0
      %1114 = vmatprep.subr.bf16.mxu0 0
      %1115 = vmatpush2.bf16.xpose.msra.mxu0 0
      %1116 = vmatprep.subr.bf16.mxu0 0
      %1117 = vmatpush2.bf16.xpose.msra.mxu0 0
      %1118 = vmatprep.mubr.bf16.mxu0 0
      %1119 = vmatmul.mubr.bf16.gmra.mxu0 %v1035
      %v1120 = vpop.f32.mrf.mxu0
      %v1121 = vadd.f32 %v1080, %v1120
      %v1122 = vpop.f32.mrf.mxu0
      %v1123 = vpop.f32.mrf.mxu0
      %v1124 = vpop.f32.mrf.mxu0
      %1125 = vdwg.mxu0
      %1127 = vrot.lane.b32.xlu0 %v1121, 1
      %v1128 = vpop.permute.xlu0 %1127
      %v1130 = vsel %vm362, 0.0, %v1128
      %v1132 = vrot.slane %v1130, 1
      %v1134 = vsel %vm367, %v1132, 0.0
      %1136 = vrot.lane.b32.xlu0 %v1134, 9
      %v1137 = vpop.permute.xlu0 %1136
      %v1139 = vsel %vm373, %v1130, %v1137
      %1141 = vrot.lane.b32.xlu0 %v1139, 127
      %v1142 = vpop.permute.xlu0 %1141
      %v1144 = vsel %vm379, %v1142, 0.0
      %v1145 = vsel %vm382, %v1144, %v1139
      %1147 = vrot.lane.b32.xlu0 %v1145, 126
      %v1148 = vpop.permute.xlu0 %1147
      %v1150 = vsel %vm388, %v1148, 0.0
      %v1151 = vsel %vm391, %v1150, %v1145
      %1153 = vrot.lane.b32.xlu0 %v1151, 124
      %v1154 = vpop.permute.xlu0 %1153
      %v1156 = vsel %vm397, %v1154, 0.0
      %v1157 = vsel %vm400, %v1156, %v1151
      %1159 = vrot.lane.b32.xlu0 %v1157, 120
      %v1160 = vpop.permute.xlu0 %1159
      %v1162 = vsel %vm406, %v1160, 0.0
      %v1163 = vsel %vm409, %v1162, %v1157
      %v1164 = vadd.f32 %v1072, %v1163
      %v1165 = vsel %vm217, %v1164, -inf
      %1166 = vmax.xlane.f32.xlu0 %v1165
      %v1167 = vpop.xlane.xlu0 %1166
      %v1168 = vsub.f32 %v1164, %v1167
      %v1169 = vmul.f32 %v1168, 1.442695
      %v1170 = vpow.pop %v1169
      %v1171 = vsel %vm217, %v1170, 0.0
      %1172 = vadd.xlane.f32.xlu0 %v1171
      %v1173 = vpop.xlane.xlu0 %1172
      %v1174 = vrcp.pop %v1173
      %v1175 = vmul.f32 %v1170, %v1174
      %v1176 = vpack.c.bf16 %v1175, %v1175
      %1177 = vrot.lane.b32.xlu0 %v214, 40
      %v1178 = vpop.permute.xlu0 %1177
      %v1180 = vsel %vm217, %v1176, 0
      %v1183 = vsel %vm429, %v1178, 0
      %1185 = vmatprep.subr.bf16.mxu0 0
      %1186 = vmatpush1.bf16.msra.mxu0 0
      %1187 = vmatprep.subr.bf16.mxu0 0
      %1188 = vmatpush1.bf16.msra.mxu0 0
      %1189 = vmatprep.subr.bf16.mxu0 0
      %1190 = vmatpush1.bf16.msra.mxu0 0
      %1191 = vmatprep.subr.bf16.mxu0 0
      %1192 = vmatpush1.bf16.msra.mxu0 0
      %1193 = vmatprep.subr.bf16.mxu0 0
      %1194 = vmatpush1.bf16.msra.mxu0 0
      %1195 = vmatprep.subr.bf16.mxu0 0
      %1196 = vmatpush1.bf16.msra.mxu0 0
      %1197 = vmatprep.subr.bf16.mxu0 0
      %1198 = vmatpush1.bf16.msra.mxu0 0
      %1199 = vmatprep.subr.bf16.mxu0 0
      %1200 = vmatpush1.bf16.msra.mxu0 %v1183
      %1201 = vmatprep.subr.bf16.mxu0 0
      %1202 = vmatpush2.bf16.msra.mxu0 0
      %1203 = vmatprep.subr.bf16.mxu0 0
      %1204 = vmatpush2.bf16.msra.mxu0 0
      %1205 = vmatprep.subr.bf16.mxu0 0
      %1206 = vmatpush2.bf16.msra.mxu0 0
      %1207 = vmatprep.subr.bf16.mxu0 0
      %1208 = vmatpush2.bf16.msra.mxu0 0
      %1209 = vmatprep.subr.bf16.mxu0 0
      %1210 = vmatpush2.bf16.msra.mxu0 0
      %1211 = vmatprep.subr.bf16.mxu0 0
      %1212 = vmatpush2.bf16.msra.mxu0 0
      %1213 = vmatprep.subr.bf16.mxu0 0
      %1214 = vmatpush2.bf16.msra.mxu0 0
      %1215 = vmatprep.subr.bf16.mxu0 0
      %1216 = vmatpush2.bf16.msra.mxu0 0
      %1217 = vmatprep.mubr.bf16.mxu0 0
      %1218 = vmatmul.mubr.bf16.gmra.mxu0 %v1180
      %v1219 = vpop.f32.mrf.mxu0
      %v1220 = vadd.f32 0.0, %v1219
      %v1221 = vpop.f32.mrf.mxu0
      %v1222 = vpop.f32.mrf.mxu0
      %v1223 = vpop.f32.mrf.mxu0
      %1224 = vdwg.mxu0
      %1226 = vrot.lane.b32.xlu0 %v728, 8
      %v1227 = vpop.permute.xlu0 %1226
      %1230 = vrot.lane.b32.xlu0 %v974, 16
      %v1231 = vpop.permute.xlu0 %1230
      %1234 = vrot.lane.b32.xlu0 %v1220, 24
      %v1235 = vpop.permute.xlu0 %1234
      %v1237 = vsel %vm217, %v468, %v1227
      %v1238 = vsel %vm388, %v1237, %v1231
      %vm1239 = vcmask 195584
      %v1240 = vsel %vm1239, %v1238, %v1235
      %v1241 = vpack.c.bf16 %v1240, %v1240
      %vm1242 = vcmask 257024
      %1243 = vst.msk [vmem:[%s192] sm:$0xf] %vm1242, %v1241
      %p1244 = scmp.lt.s32.totalorder %s15, 1
      %s1245 = scalar_select %p1244, %s15, 1
      %s1246 = smul.addr %s1245, 4
      %s1247 = scalar_lea.vmem %s4, %s1246
      // Predicated region
      $region37: #{rel_learnable_encoder_layer.6} parent=35 // pred_check
        %p1248 = pneg %p122
      $region38: #{rel_learnable_encoder_layer.6} parent=35 // pred_check_branch
        %1250 = sbr.rel (%p1248) target = $region40
      $region39: #{rel_learnable_encoder_layer.6} parent=35 // pred_region
        _
      $region40: #{rel_learnable_encoder_layer.6} parent=35 // pred_fallthru
        _
    $region36: #{rel_learnable_encoder_layer.6} parent=5 // pred_fallthru
      _
    %p1251 = scmp.le.s32.totalorder 2, %s10
    // Predicated region
    $region41: #{rel_learnable_encoder_layer.6} parent=5 // pred_check
      %p1252 = pneg %p1251
    $region42: #{rel_learnable_encoder_layer.6} parent=5 // pred_check_branch
      %1254 = sbr.rel (%p1252) target = $region44
    $region43: #{rel_learnable_encoder_layer.6} parent=5 // pred_region
      %s1255 = ssub.s32 %s10, 2
      // Predicated region
      $region45: #{rel_learnable_encoder_layer.6} parent=43 // pred_check
        %p1256 = pneg %p128
      $region46: #{rel_learnable_encoder_layer.6} parent=43 // pred_check_branch
        %1258 = sbr.rel (%p1256) target = $region48
      $region47: #{rel_learnable_encoder_layer.6} parent=43 // pred_region
        %p1259 = scmp.lt.s32.totalorder %s16, 1
        %s1260 = scalar_select %p1259, %s16, 1
        %s1261 = smul.addr %s1260, 4
        %s1262 = scalar_lea.vmem %s4, %s1261
      $region48: #{rel_learnable_encoder_layer.6} parent=43 // pred_fallthru
        _
    $region44: #{rel_learnable_encoder_layer.6} parent=5 // pred_fallthru
      _
  $region6: #{rel_learnable_encoder_layer.6} parent=0 // loop_footer
    %s14 = sadd.s32 1, %s10
  $region7: #{rel_learnable_encoder_layer.6} parent=0 // loop_footer_branch
    %9 = sbr.rel target = $region3
  $region8: #{rel_learnable_encoder_layer.6} parent=0 // loop_exit
    _

</llo_original>
